<compile_context>
chip_gen: v7x
topology: tpu7x:2x2x1
jax: 0.10.0
libtpu: 0.0.40
codegen_flags: <defaults>
</compile_context>

<pallas_src>
import math
from functools import partial

import jax
import jax.numpy as jnp
from jax.experimental import pallas as pl
from jax.experimental.pallas import tpu as pltpu


def _attention_kernel(x_ref, wqkv_ref, wp_ref, bp_ref, o_ref, attn_ref, *,
                      num_heads, seq_len, batch_tile, scale):
    # x_ref:    (TB*N, C)  input slab (input dtype, possibly bf16)
    # wqkv_ref: (C, 3C)    fused, pre-transposed [Wq^T | Wk^T | Wv^T]
    # wp_ref:   (C, C)     pre-transposed Wproj^T ((in, out) layout)
    # bp_ref:   (1, C)     proj bias (f32)
    # o_ref:    (TB*N, C)  output slab
    # attn_ref: (TB*N, C)  f32 VMEM scratch accumulator for merged head outputs
    C = x_ref.shape[-1]
    hd = C // num_heads
    rows = batch_tile * seq_len

    x = x_ref[...]                                   # (rows, C)
    # Single fused QKV matmul; f32 accumulation regardless of operand dtype.
    qkv = jnp.dot(x, wqkv_ref[...], preferred_element_type=jnp.float32)  # (rows, 3C)

    q = qkv[:, :C] * scale                           # scale applied once to q
    k = qkv[:, C:2 * C]
    v = qkv[:, 2 * C:]

    # Leading-dim split only (lane dim C untouched): (rows, C) -> (TB, N, C)
    q3 = q.reshape(batch_tile, seq_len, C)
    k3 = k.reshape(batch_tile, seq_len, C)
    v3 = v.reshape(batch_tile, seq_len, C)

    # Static unroll over heads; batched over the TB batch elements inside.
    for h in range(num_heads):
        lo = h * hd
        qh = q3[..., lo:lo + hd]                     # (TB, N, hd)
        kh = k3[..., lo:lo + hd]
        vh = v3[..., lo:lo + hd]
        s = jnp.einsum('bnd,bmd->bnm', qh, kh,
                       preferred_element_type=jnp.float32)          # (TB, N, N)
        s = s - jnp.max(s, axis=-1, keepdims=True)
        p = jnp.exp(s)
        p = p * pl.reciprocal(jnp.sum(p, axis=-1, keepdims=True), approx=True)
        oh = jnp.einsum('bnm,bmd->bnd', p, vh,
                        preferred_element_type=jnp.float32)         # (TB, N, hd)
        # Write this head's output at its column offset (no lane concatenate).
        attn_ref[:, lo:lo + hd] = oh.reshape(rows, hd)

    # Output projection (pre-transposed weight) + bias, lane-dense 2-D store.
    y = jnp.dot(attn_ref[...].astype(wp_ref.dtype), wp_ref[...],
                preferred_element_type=jnp.float32) + bp_ref[...]
    o_ref[...] = y.astype(o_ref.dtype)


def _pick_batch_tile(B, N, target_rows=256):
    """Largest divisor of B whose slab (TB*N rows) stays modest; prefer >=2
    grid steps (v7x has 2 TensorCores) when that still leaves >=128 MXU rows."""
    best = 1
    for tb in range(1, B + 1):
        if B % tb != 0:
            continue
        rows = tb * N
        if tb != B and rows % 8 != 0:   # keep block rows sublane-aligned when tiling
            continue
        if rows <= max(target_rows, N):
            best = tb
    if best == B and B > 1:
        for tb in range(B // 2, 0, -1):
            if B % tb == 0 and tb * N >= 128 and (tb * N) % 8 == 0:
                return tb
    return best


def attention_lora_forward(x, wq, wk, wv, wp, bp, *, num_heads,
                           batch_tile=None, param_dtype=None):
    """x: (B, N, C). Weights in PyTorch nn.Linear layout (out, in); bp: (C,).
    param_dtype=jnp.bfloat16 casts x and the weights for the MXU matmuls
    (f32 accumulation and f32 softmax math are kept inside the kernel)."""
    B, N, C = x.shape
    assert C % num_heads == 0
    head_dim = C // num_heads
    scale = head_dim ** (-0.5)

    if param_dtype is not None:
        x = x.astype(param_dtype)
        wq, wk, wv, wp = (w.astype(param_dtype) for w in (wq, wk, wv, wp))

    # Wrapper-side weight prep (free layout plumbing, done once):
    #   fuse QKV and pre-transpose everything to (in, out) layout.
    wqkv_t = jnp.concatenate([wq.T, wk.T, wv.T], axis=1)   # (C, 3C)
    wp_t = wp.T                                            # (C, C)
    bp2 = bp.astype(jnp.float32).reshape(1, C)

    tb = batch_tile if batch_tile is not None else _pick_batch_tile(B, N)
    assert B % tb == 0, "batch_tile must divide B"
    rows = tb * N

    # Present x / out as lane-dense 2-D slabs (B*N, C); per-step block (TB*N, C).
    x2 = x.reshape(B * N, C)

    kernel = partial(_attention_kernel, num_heads=num_heads, seq_len=N,
                     batch_tile=tb, scale=scale)

    out2 = pl.pallas_call(
        kernel,
        out_shape=jax.ShapeDtypeStruct((B * N, C), x.dtype),
        grid=(B // tb,),
        in_specs=[
            pl.BlockSpec((rows, C), lambda b: (b, 0)),       # x slab
            pl.BlockSpec((C, 3 * C), lambda b: (0, 0)),      # fused Wqkv^T
            pl.BlockSpec((C, C), lambda b: (0, 0)),          # Wproj^T
            pl.BlockSpec((1, C), lambda b: (0, 0)),          # proj bias
        ],
        out_specs=pl.BlockSpec((rows, C), lambda b: (b, 0)),
        scratch_shapes=[pltpu.VMEM((rows, C), jnp.float32)],  # merged head outputs
        compiler_params=pltpu.CompilerParams(
            dimension_semantics=("parallel",),
            vmem_limit_bytes=32 * 1024 * 1024),
    )(x2, wqkv_t, wp_t, bp2)

    return out2.reshape(B, N, C)


def _reference(x, wq, wk, wv, wp, bp, *, num_heads):
    """Pure-JAX reference mirroring the PyTorch forward (adapt=None, no dropout)."""
    B, N, C = x.shape
    hd = C // num_heads
    scale = hd ** (-0.5)
    q = x @ wq.T
    k = x @ wk.T
    v = x @ wv.T

    def split(t):  # (B, N, C) -> (B*H, N, hd)
        return t.reshape(B, N, num_heads, hd).transpose(0, 2, 1, 3).reshape(B * num_heads, N, hd)

    q, k, v = split(q), split(k), split(v)
    attn = jnp.einsum('bnd,bmd->bnm', q, k) * scale
    attn = jax.nn.softmax(attn, axis=-1)
    out = jnp.einsum('bnm,bmd->bnd', attn, v)
    out = out.reshape(B, num_heads, N, hd).transpose(0, 2, 1, 3).reshape(B, N, C)
    return out @ wp.T + bp


if __name__ == "__main__":
    # Small shapes consistent with the module: dim=32, num_heads=8 -> head_dim=4
    B, N, C = 2, 8, 32
    num_heads = 8

    key = jax.random.PRNGKey(0)
    kx, kq, kk, kv, kp, kb = jax.random.split(key, 6)
    bound = 1.0 / math.sqrt(C)   # PyTorch default Linear init range
    x = jax.random.normal(kx, (B, N, C), dtype=jnp.float32)
    wq = jax.random.uniform(kq, (C, C), jnp.float32, -bound, bound)
    wk = jax.random.uniform(kk, (C, C), jnp.float32, -bound, bound)
    wv = jax.random.uniform(kv, (C, C), jnp.float32, -bound, bound)
    wp = jax.random.uniform(kp, (C, C), jnp.float32, -bound, bound)
    bp = jax.random.uniform(kb, (C,), jnp.float32, -bound, bound)

    # TODO(synk): adapt / LoRA branch (adapt is not None) not implemented — the
    # default forward call (adapt=None) never exercises it.

    ref = _reference(x, wq, wk, wv, wp, bp, num_heads=num_heads)

    # f32 path (tolerance relaxed slightly because the softmax normalization
    # uses the approximate hardware reciprocal).
    out = attention_lora_forward(x, wq, wk, wv, wp, bp, num_heads=num_heads)
    out = jax.block_until_ready(out)
    assert out.shape == (B, N, C)
    assert jnp.allclose(out, ref, atol=5e-3, rtol=5e-3), "f32 mismatch vs reference"

    # bf16 parameter/activation path (v6e/v7x MXU); loose tolerance for bf16.
    out_bf16 = attention_lora_forward(x, wq, wk, wv, wp, bp, num_heads=num_heads,
                                      param_dtype=jnp.bfloat16)
    out_bf16 = jax.block_until_ready(out_bf16)
    assert out_bf16.shape == (B, N, C)
    assert jnp.allclose(out_bf16.astype(jnp.float32), ref, atol=1e-1, rtol=1e-1), \
        "bf16 mismatch vs reference"

    print("KERNEL_OK")
</pallas_src>

<mosaic_0001>
module attributes {stable_mosaic.version = 11 : i64} {
  func.func @_attention_kernel(%arg0: i32, %arg1: memref<16x32xf32, #tpu.memory_space<vmem>>, %arg2: memref<32x96xf32, #tpu.memory_space<vmem>>, %arg3: memref<32x32xf32, #tpu.memory_space<vmem>>, %arg4: memref<1x32xf32, #tpu.memory_space<vmem>>, %arg5: memref<16x32xf32, #tpu.memory_space<vmem>>, %arg6: memref<16x32xf32, #tpu.memory_space<vmem>>) attributes {dimension_semantics = [#tpu.dimension_semantics<parallel>], iteration_bounds = array<i64: 1>, scalar_prefetch = 0 : i64, scratch_operands = 1 : i64, tpu.core_type = #tpu.core_type<tc>, window_params = [{transform_indices = @transform_0, window_bounds = array<i64: 16, 32>}, {pipeline_mode = #tpu.pipeline_mode<synchronous>, transform_indices = @transform_1, window_bounds = array<i64: 32, 96>}, {pipeline_mode = #tpu.pipeline_mode<synchronous>, transform_indices = @transform_2, window_bounds = array<i64: 32, 32>}, {pipeline_mode = #tpu.pipeline_mode<synchronous>, transform_indices = @transform_3, window_bounds = array<i64: 1, 32>}, {transform_indices = @transform_4, window_bounds = array<i64: 16, 32>}]} {
    %c0 = arith.constant 0 : index
    %c0_0 = arith.constant 0 : index
    %0 = vector.load %arg1[%c0, %c0_0] : memref<16x32xf32, #tpu.memory_space<vmem>>, vector<16x32xf32>
    %c0_1 = arith.constant 0 : index
    %c0_2 = arith.constant 0 : index
    %1 = vector.load %arg2[%c0_1, %c0_2] : memref<32x96xf32, #tpu.memory_space<vmem>>, vector<32x96xf32>
    %cst = arith.constant dense<0.000000e+00> : vector<16x96xf32>
    %2 = tpu.matmul %0, %1, %cst {dimension_numbers = #tpu.dot_dimension_numbers<[1], [0], [0], [1], [0, 0, 1, 1], [], []>} : vector<16x32xf32>, vector<32x96xf32>, vector<16x96xf32> -> vector<16x96xf32>
    %3 = vector.extract_strided_slice %2 {offsets = [0, 0], sizes = [16, 32], strides = [1, 1]} : vector<16x96xf32> to vector<16x32xf32>
    %cst_3 = arith.constant 5.000000e-01 : f32
    %4 = vector.broadcast %cst_3 : f32 to vector<16x32xf32>
    %5 = arith.mulf %3, %4 : vector<16x32xf32>
    %6 = vector.extract_strided_slice %2 {offsets = [0, 32], sizes = [16, 32], strides = [1, 1]} : vector<16x96xf32> to vector<16x32xf32>
    %7 = vector.extract_strided_slice %2 {offsets = [0, 64], sizes = [16, 32], strides = [1, 1]} : vector<16x96xf32> to vector<16x32xf32>
    %8 = vector.shape_cast %5 : vector<16x32xf32> to vector<2x8x32xf32>
    %9 = vector.shape_cast %6 : vector<16x32xf32> to vector<2x8x32xf32>
    %10 = vector.shape_cast %7 : vector<16x32xf32> to vector<2x8x32xf32>
    %11 = vector.extract_strided_slice %8 {offsets = [0, 0, 0], sizes = [2, 8, 4], strides = [1, 1, 1]} : vector<2x8x32xf32> to vector<2x8x4xf32>
    %12 = vector.extract_strided_slice %9 {offsets = [0, 0, 0], sizes = [2, 8, 4], strides = [1, 1, 1]} : vector<2x8x32xf32> to vector<2x8x4xf32>
    %13 = vector.extract_strided_slice %10 {offsets = [0, 0, 0], sizes = [2, 8, 4], strides = [1, 1, 1]} : vector<2x8x32xf32> to vector<2x8x4xf32>
    "tpu.trace_start"() <{level = 10 : i32, message = "bnd,bmd->bnm"}> : () -> ()
    %cst_4 = arith.constant dense<0.000000e+00> : vector<2x8x8xf32>
    %14 = tpu.matmul %11, %12, %cst_4 {dimension_numbers = #tpu.dot_dimension_numbers<[2], [2], [1], [1], [0, 0, 0, 1, 1, 1], [0], [0]>} : vector<2x8x4xf32>, vector<2x8x4xf32>, vector<2x8x8xf32> -> vector<2x8x8xf32>
    "tpu.trace_stop"() : () -> ()
    %cst_5 = arith.constant dense<0xFF800000> : vector<2x8xf32>
    %15 = vector.multi_reduction <maximumf>, %14, %cst_5 [2] : vector<2x8x8xf32> to vector<2x8xf32>
    %16 = vector.shape_cast %15 : vector<2x8xf32> to vector<2x8x1xf32>
    %17 = vector.broadcast %16 : vector<2x8x1xf32> to vector<2x8x8xf32>
    %18 = arith.subf %14, %17 : vector<2x8x8xf32>
    %19 = math.exp %18 : vector<2x8x8xf32>
    %cst_6 = arith.constant dense<0.000000e+00> : vector<2x8xf32>
    %20 = vector.multi_reduction <add>, %19, %cst_6 [2] : vector<2x8x8xf32> to vector<2x8xf32>
    %21 = vector.shape_cast %20 : vector<2x8xf32> to vector<2x8x1xf32>
    %22 = tpu.reciprocal %21 {approx = true} : vector<2x8x1xf32> -> vector<2x8x1xf32>
    %23 = vector.broadcast %22 : vector<2x8x1xf32> to vector<2x8x8xf32>
    %24 = arith.mulf %19, %23 : vector<2x8x8xf32>
    "tpu.trace_start"() <{level = 10 : i32, message = "bnm,bmd->bnd"}> : () -> ()
    %cst_7 = arith.constant dense<0.000000e+00> : vector<2x8x4xf32>
    %25 = tpu.matmul %24, %13, %cst_7 {dimension_numbers = #tpu.dot_dimension_numbers<[2], [1], [1], [2], [0, 0, 0, 1, 1, 2], [0], [0]>} : vector<2x8x8xf32>, vector<2x8x4xf32>, vector<2x8x4xf32> -> vector<2x8x4xf32>
    "tpu.trace_stop"() : () -> ()
    %26 = vector.shape_cast %25 : vector<2x8x4xf32> to vector<16x4xf32>
    %c0_8 = arith.constant 0 : index
    %c0_9 = arith.constant 0 : index
    %27 = vector.load %arg6[%c0_8, %c0_9] : memref<16x32xf32, #tpu.memory_space<vmem>>, vector<16x4xf32>
    tpu.vector_store %arg6[%c0_8, %c0_9], %26 {strides = array<i32>} : memref<16x32xf32, #tpu.memory_space<vmem>>, vector<16x4xf32>,
    %28 = vector.extract_strided_slice %8 {offsets = [0, 0, 4], sizes = [2, 8, 4], strides = [1, 1, 1]} : vector<2x8x32xf32> to vector<2x8x4xf32>
    %29 = vector.extract_strided_slice %9 {offsets = [0, 0, 4], sizes = [2, 8, 4], strides = [1, 1, 1]} : vector<2x8x32xf32> to vector<2x8x4xf32>
    %30 = vector.extract_strided_slice %10 {offsets = [0, 0, 4], sizes = [2, 8, 4], strides = [1, 1, 1]} : vector<2x8x32xf32> to vector<2x8x4xf32>
    "tpu.trace_start"() <{level = 10 : i32, message = "bnd,bmd->bnm"}> : () -> ()
    %cst_10 = arith.constant dense<0.000000e+00> : vector<2x8x8xf32>
    %31 = tpu.matmul %28, %29, %cst_10 {dimension_numbers = #tpu.dot_dimension_numbers<[2], [2], [1], [1], [0, 0, 0, 1, 1, 1], [0], [0]>} : vector<2x8x4xf32>, vector<2x8x4xf32>, vector<2x8x8xf32> -> vector<2x8x8xf32>
    "tpu.trace_stop"() : () -> ()
    %cst_11 = arith.constant dense<0xFF800000> : vector<2x8xf32>
    %32 = vector.multi_reduction <maximumf>, %31, %cst_11 [2] : vector<2x8x8xf32> to vector<2x8xf32>
    %33 = vector.shape_cast %32 : vector<2x8xf32> to vector<2x8x1xf32>
    %34 = vector.broadcast %33 : vector<2x8x1xf32> to vector<2x8x8xf32>
    %35 = arith.subf %31, %34 : vector<2x8x8xf32>
    %36 = math.exp %35 : vector<2x8x8xf32>
    %cst_12 = arith.constant dense<0.000000e+00> : vector<2x8xf32>
    %37 = vector.multi_reduction <add>, %36, %cst_12 [2] : vector<2x8x8xf32> to vector<2x8xf32>
    %38 = vector.shape_cast %37 : vector<2x8xf32> to vector<2x8x1xf32>
    %39 = tpu.reciprocal %38 {approx = true} : vector<2x8x1xf32> -> vector<2x8x1xf32>
    %40 = vector.broadcast %39 : vector<2x8x1xf32> to vector<2x8x8xf32>
    %41 = arith.mulf %36, %40 : vector<2x8x8xf32>
    "tpu.trace_start"() <{level = 10 : i32, message = "bnm,bmd->bnd"}> : () -> ()
    %cst_13 = arith.constant dense<0.000000e+00> : vector<2x8x4xf32>
    %42 = tpu.matmul %41, %30, %cst_13 {dimension_numbers = #tpu.dot_dimension_numbers<[2], [1], [1], [2], [0, 0, 0, 1, 1, 2], [0], [0]>} : vector<2x8x8xf32>, vector<2x8x4xf32>, vector<2x8x4xf32> -> vector<2x8x4xf32>
    "tpu.trace_stop"() : () -> ()
    %43 = vector.shape_cast %42 : vector<2x8x4xf32> to vector<16x4xf32>
    %c0_14 = arith.constant 0 : index
    %c4 = arith.constant 4 : index
    %44 = vector.load %arg6[%c0_14, %c4] : memref<16x32xf32, #tpu.memory_space<vmem>>, vector<16x4xf32>
    tpu.vector_store %arg6[%c0_14, %c4], %43 {strides = array<i32>} : memref<16x32xf32, #tpu.memory_space<vmem>>, vector<16x4xf32>,
    %45 = vector.extract_strided_slice %8 {offsets = [0, 0, 8], sizes = [2, 8, 4], strides = [1, 1, 1]} : vector<2x8x32xf32> to vector<2x8x4xf32>
    %46 = vector.extract_strided_slice %9 {offsets = [0, 0, 8], sizes = [2, 8, 4], strides = [1, 1, 1]} : vector<2x8x32xf32> to vector<2x8x4xf32>
    %47 = vector.extract_strided_slice %10 {offsets = [0, 0, 8], sizes = [2, 8, 4], strides = [1, 1, 1]} : vector<2x8x32xf32> to vector<2x8x4xf32>
    "tpu.trace_start"() <{level = 10 : i32, message = "bnd,bmd->bnm"}> : () -> ()
    %cst_15 = arith.constant dense<0.000000e+00> : vector<2x8x8xf32>
    %48 = tpu.matmul %45, %46, %cst_15 {dimension_numbers = #tpu.dot_dimension_numbers<[2], [2], [1], [1], [0, 0, 0, 1, 1, 1], [0], [0]>} : vector<2x8x4xf32>, vector<2x8x4xf32>, vector<2x8x8xf32> -> vector<2x8x8xf32>
    "tpu.trace_stop"() : () -> ()
    %cst_16 = arith.constant dense<0xFF800000> : vector<2x8xf32>
    %49 = vector.multi_reduction <maximumf>, %48, %cst_16 [2] : vector<2x8x8xf32> to vector<2x8xf32>
    %50 = vector.shape_cast %49 : vector<2x8xf32> to vector<2x8x1xf32>
    %51 = vector.broadcast %50 : vector<2x8x1xf32> to vector<2x8x8xf32>
    %52 = arith.subf %48, %51 : vector<2x8x8xf32>
    %53 = math.exp %52 : vector<2x8x8xf32>
    %cst_17 = arith.constant dense<0.000000e+00> : vector<2x8xf32>
    %54 = vector.multi_reduction <add>, %53, %cst_17 [2] : vector<2x8x8xf32> to vector<2x8xf32>
    %55 = vector.shape_cast %54 : vector<2x8xf32> to vector<2x8x1xf32>
    %56 = tpu.reciprocal %55 {approx = true} : vector<2x8x1xf32> -> vector<2x8x1xf32>
    %57 = vector.broadcast %56 : vector<2x8x1xf32> to vector<2x8x8xf32>
    %58 = arith.mulf %53, %57 : vector<2x8x8xf32>
    "tpu.trace_start"() <{level = 10 : i32, message = "bnm,bmd->bnd"}> : () -> ()
    %cst_18 = arith.constant dense<0.000000e+00> : vector<2x8x4xf32>
    %59 = tpu.matmul %58, %47, %cst_18 {dimension_numbers = #tpu.dot_dimension_numbers<[2], [1], [1], [2], [0, 0, 0, 1, 1, 2], [0], [0]>} : vector<2x8x8xf32>, vector<2x8x4xf32>, vector<2x8x4xf32> -> vector<2x8x4xf32>
    "tpu.trace_stop"() : () -> ()
    %60 = vector.shape_cast %59 : vector<2x8x4xf32> to vector<16x4xf32>
    %c0_19 = arith.constant 0 : index
    %c8 = arith.constant 8 : index
    %61 = vector.load %arg6[%c0_19, %c8] : memref<16x32xf32, #tpu.memory_space<vmem>>, vector<16x4xf32>
    tpu.vector_store %arg6[%c0_19, %c8], %60 {strides = array<i32>} : memref<16x32xf32, #tpu.memory_space<vmem>>, vector<16x4xf32>,
    %62 = vector.extract_strided_slice %8 {offsets = [0, 0, 12], sizes = [2, 8, 4], strides = [1, 1, 1]} : vector<2x8x32xf32> to vector<2x8x4xf32>
    %63 = vector.extract_strided_slice %9 {offsets = [0, 0, 12], sizes = [2, 8, 4], strides = [1, 1, 1]} : vector<2x8x32xf32> to vector<2x8x4xf32>
    %64 = vector.extract_strided_slice %10 {offsets = [0, 0, 12], sizes = [2, 8, 4], strides = [1, 1, 1]} : vector<2x8x32xf32> to vector<2x8x4xf32>
    "tpu.trace_start"() <{level = 10 : i32, message = "bnd,bmd->bnm"}> : () -> ()
    %cst_20 = arith.constant dense<0.000000e+00> : vector<2x8x8xf32>
    %65 = tpu.matmul %62, %63, %cst_20 {dimension_numbers = #tpu.dot_dimension_numbers<[2], [2], [1], [1], [0, 0, 0, 1, 1, 1], [0], [0]>} : vector<2x8x4xf32>, vector<2x8x4xf32>, vector<2x8x8xf32> -> vector<2x8x8xf32>
    "tpu.trace_stop"() : () -> ()
    %cst_21 = arith.constant dense<0xFF800000> : vector<2x8xf32>
    %66 = vector.multi_reduction <maximumf>, %65, %cst_21 [2] : vector<2x8x8xf32> to vector<2x8xf32>
    %67 = vector.shape_cast %66 : vector<2x8xf32> to vector<2x8x1xf32>
    %68 = vector.broadcast %67 : vector<2x8x1xf32> to vector<2x8x8xf32>
    %69 = arith.subf %65, %68 : vector<2x8x8xf32>
    %70 = math.exp %69 : vector<2x8x8xf32>
    %cst_22 = arith.constant dense<0.000000e+00> : vector<2x8xf32>
    %71 = vector.multi_reduction <add>, %70, %cst_22 [2] : vector<2x8x8xf32> to vector<2x8xf32>
    %72 = vector.shape_cast %71 : vector<2x8xf32> to vector<2x8x1xf32>
    %73 = tpu.reciprocal %72 {approx = true} : vector<2x8x1xf32> -> vector<2x8x1xf32>
    %74 = vector.broadcast %73 : vector<2x8x1xf32> to vector<2x8x8xf32>
    %75 = arith.mulf %70, %74 : vector<2x8x8xf32>
    "tpu.trace_start"() <{level = 10 : i32, message = "bnm,bmd->bnd"}> : () -> ()
    %cst_23 = arith.constant dense<0.000000e+00> : vector<2x8x4xf32>
    %76 = tpu.matmul %75, %64, %cst_23 {dimension_numbers = #tpu.dot_dimension_numbers<[2], [1], [1], [2], [0, 0, 0, 1, 1, 2], [0], [0]>} : vector<2x8x8xf32>, vector<2x8x4xf32>, vector<2x8x4xf32> -> vector<2x8x4xf32>
    "tpu.trace_stop"() : () -> ()
    %77 = vector.shape_cast %76 : vector<2x8x4xf32> to vector<16x4xf32>
    %c0_24 = arith.constant 0 : index
    %c12 = arith.constant 12 : index
    %78 = vector.load %arg6[%c0_24, %c12] : memref<16x32xf32, #tpu.memory_space<vmem>>, vector<16x4xf32>
    tpu.vector_store %arg6[%c0_24, %c12], %77 {strides = array<i32>} : memref<16x32xf32, #tpu.memory_space<vmem>>, vector<16x4xf32>,
    %79 = vector.extract_strided_slice %8 {offsets = [0, 0, 16], sizes = [2, 8, 4], strides = [1, 1, 1]} : vector<2x8x32xf32> to vector<2x8x4xf32>
    %80 = vector.extract_strided_slice %9 {offsets = [0, 0, 16], sizes = [2, 8, 4], strides = [1, 1, 1]} : vector<2x8x32xf32> to vector<2x8x4xf32>
    %81 = vector.extract_strided_slice %10 {offsets = [0, 0, 16], sizes = [2, 8, 4], strides = [1, 1, 1]} : vector<2x8x32xf32> to vector<2x8x4xf32>
    "tpu.trace_start"() <{level = 10 : i32, message = "bnd,bmd->bnm"}> : () -> ()
    %cst_25 = arith.constant dense<0.000000e+00> : vector<2x8x8xf32>
    %82 = tpu.matmul %79, %80, %cst_25 {dimension_numbers = #tpu.dot_dimension_numbers<[2], [2], [1], [1], [0, 0, 0, 1, 1, 1], [0], [0]>} : vector<2x8x4xf32>, vector<2x8x4xf32>, vector<2x8x8xf32> -> vector<2x8x8xf32>
    "tpu.trace_stop"() : () -> ()
    %cst_26 = arith.constant dense<0xFF800000> : vector<2x8xf32>
    %83 = vector.multi_reduction <maximumf>, %82, %cst_26 [2] : vector<2x8x8xf32> to vector<2x8xf32>
    %84 = vector.shape_cast %83 : vector<2x8xf32> to vector<2x8x1xf32>
    %85 = vector.broadcast %84 : vector<2x8x1xf32> to vector<2x8x8xf32>
    %86 = arith.subf %82, %85 : vector<2x8x8xf32>
    %87 = math.exp %86 : vector<2x8x8xf32>
    %cst_27 = arith.constant dense<0.000000e+00> : vector<2x8xf32>
    %88 = vector.multi_reduction <add>, %87, %cst_27 [2] : vector<2x8x8xf32> to vector<2x8xf32>
    %89 = vector.shape_cast %88 : vector<2x8xf32> to vector<2x8x1xf32>
    %90 = tpu.reciprocal %89 {approx = true} : vector<2x8x1xf32> -> vector<2x8x1xf32>
    %91 = vector.broadcast %90 : vector<2x8x1xf32> to vector<2x8x8xf32>
    %92 = arith.mulf %87, %91 : vector<2x8x8xf32>
    "tpu.trace_start"() <{level = 10 : i32, message = "bnm,bmd->bnd"}> : () -> ()
    %cst_28 = arith.constant dense<0.000000e+00> : vector<2x8x4xf32>
    %93 = tpu.matmul %92, %81, %cst_28 {dimension_numbers = #tpu.dot_dimension_numbers<[2], [1], [1], [2], [0, 0, 0, 1, 1, 2], [0], [0]>} : vector<2x8x8xf32>, vector<2x8x4xf32>, vector<2x8x4xf32> -> vector<2x8x4xf32>
    "tpu.trace_stop"() : () -> ()
    %94 = vector.shape_cast %93 : vector<2x8x4xf32> to vector<16x4xf32>
    %c0_29 = arith.constant 0 : index
    %c16 = arith.constant 16 : index
    %95 = vector.load %arg6[%c0_29, %c16] : memref<16x32xf32, #tpu.memory_space<vmem>>, vector<16x4xf32>
    tpu.vector_store %arg6[%c0_29, %c16], %94 {strides = array<i32>} : memref<16x32xf32, #tpu.memory_space<vmem>>, vector<16x4xf32>,
    %96 = vector.extract_strided_slice %8 {offsets = [0, 0, 20], sizes = [2, 8, 4], strides = [1, 1, 1]} : vector<2x8x32xf32> to vector<2x8x4xf32>
    %97 = vector.extract_strided_slice %9 {offsets = [0, 0, 20], sizes = [2, 8, 4], strides = [1, 1, 1]} : vector<2x8x32xf32> to vector<2x8x4xf32>
    %98 = vector.extract_strided_slice %10 {offsets = [0, 0, 20], sizes = [2, 8, 4], strides = [1, 1, 1]} : vector<2x8x32xf32> to vector<2x8x4xf32>
    "tpu.trace_start"() <{level = 10 : i32, message = "bnd,bmd->bnm"}> : () -> ()
    %cst_30 = arith.constant dense<0.000000e+00> : vector<2x8x8xf32>
    %99 = tpu.matmul %96, %97, %cst_30 {dimension_numbers = #tpu.dot_dimension_numbers<[2], [2], [1], [1], [0, 0, 0, 1, 1, 1], [0], [0]>} : vector<2x8x4xf32>, vector<2x8x4xf32>, vector<2x8x8xf32> -> vector<2x8x8xf32>
    "tpu.trace_stop"() : () -> ()
    %cst_31 = arith.constant dense<0xFF800000> : vector<2x8xf32>
    %100 = vector.multi_reduction <maximumf>, %99, %cst_31 [2] : vector<2x8x8xf32> to vector<2x8xf32>
    %101 = vector.shape_cast %100 : vector<2x8xf32> to vector<2x8x1xf32>
    %102 = vector.broadcast %101 : vector<2x8x1xf32> to vector<2x8x8xf32>
    %103 = arith.subf %99, %102 : vector<2x8x8xf32>
    %104 = math.exp %103 : vector<2x8x8xf32>
    %cst_32 = arith.constant dense<0.000000e+00> : vector<2x8xf32>
    %105 = vector.multi_reduction <add>, %104, %cst_32 [2] : vector<2x8x8xf32> to vector<2x8xf32>
    %106 = vector.shape_cast %105 : vector<2x8xf32> to vector<2x8x1xf32>
    %107 = tpu.reciprocal %106 {approx = true} : vector<2x8x1xf32> -> vector<2x8x1xf32>
    %108 = vector.broadcast %107 : vector<2x8x1xf32> to vector<2x8x8xf32>
    %109 = arith.mulf %104, %108 : vector<2x8x8xf32>
    "tpu.trace_start"() <{level = 10 : i32, message = "bnm,bmd->bnd"}> : () -> ()
    %cst_33 = arith.constant dense<0.000000e+00> : vector<2x8x4xf32>
    %110 = tpu.matmul %109, %98, %cst_33 {dimension_numbers = #tpu.dot_dimension_numbers<[2], [1], [1], [2], [0, 0, 0, 1, 1, 2], [0], [0]>} : vector<2x8x8xf32>, vector<2x8x4xf32>, vector<2x8x4xf32> -> vector<2x8x4xf32>
    "tpu.trace_stop"() : () -> ()
    %111 = vector.shape_cast %110 : vector<2x8x4xf32> to vector<16x4xf32>
    %c0_34 = arith.constant 0 : index
    %c20 = arith.constant 20 : index
    %112 = vector.load %arg6[%c0_34, %c20] : memref<16x32xf32, #tpu.memory_space<vmem>>, vector<16x4xf32>
    tpu.vector_store %arg6[%c0_34, %c20], %111 {strides = array<i32>} : memref<16x32xf32, #tpu.memory_space<vmem>>, vector<16x4xf32>,
    %113 = vector.extract_strided_slice %8 {offsets = [0, 0, 24], sizes = [2, 8, 4], strides = [1, 1, 1]} : vector<2x8x32xf32> to vector<2x8x4xf32>
    %114 = vector.extract_strided_slice %9 {offsets = [0, 0, 24], sizes = [2, 8, 4], strides = [1, 1, 1]} : vector<2x8x32xf32> to vector<2x8x4xf32>
    %115 = vector.extract_strided_slice %10 {offsets = [0, 0, 24], sizes = [2, 8, 4], strides = [1, 1, 1]} : vector<2x8x32xf32> to vector<2x8x4xf32>
    "tpu.trace_start"() <{level = 10 : i32, message = "bnd,bmd->bnm"}> : () -> ()
    %cst_35 = arith.constant dense<0.000000e+00> : vector<2x8x8xf32>
    %116 = tpu.matmul %113, %114, %cst_35 {dimension_numbers = #tpu.dot_dimension_numbers<[2], [2], [1], [1], [0, 0, 0, 1, 1, 1], [0], [0]>} : vector<2x8x4xf32>, vector<2x8x4xf32>, vector<2x8x8xf32> -> vector<2x8x8xf32>
    "tpu.trace_stop"() : () -> ()
    %cst_36 = arith.constant dense<0xFF800000> : vector<2x8xf32>
    %117 = vector.multi_reduction <maximumf>, %116, %cst_36 [2] : vector<2x8x8xf32> to vector<2x8xf32>
    %118 = vector.shape_cast %117 : vector<2x8xf32> to vector<2x8x1xf32>
    %119 = vector.broadcast %118 : vector<2x8x1xf32> to vector<2x8x8xf32>
    %120 = arith.subf %116, %119 : vector<2x8x8xf32>
    %121 = math.exp %120 : vector<2x8x8xf32>
    %cst_37 = arith.constant dense<0.000000e+00> : vector<2x8xf32>
    %122 = vector.multi_reduction <add>, %121, %cst_37 [2] : vector<2x8x8xf32> to vector<2x8xf32>
    %123 = vector.shape_cast %122 : vector<2x8xf32> to vector<2x8x1xf32>
    %124 = tpu.reciprocal %123 {approx = true} : vector<2x8x1xf32> -> vector<2x8x1xf32>
    %125 = vector.broadcast %124 : vector<2x8x1xf32> to vector<2x8x8xf32>
    %126 = arith.mulf %121, %125 : vector<2x8x8xf32>
    "tpu.trace_start"() <{level = 10 : i32, message = "bnm,bmd->bnd"}> : () -> ()
    %cst_38 = arith.constant dense<0.000000e+00> : vector<2x8x4xf32>
    %127 = tpu.matmul %126, %115, %cst_38 {dimension_numbers = #tpu.dot_dimension_numbers<[2], [1], [1], [2], [0, 0, 0, 1, 1, 2], [0], [0]>} : vector<2x8x8xf32>, vector<2x8x4xf32>, vector<2x8x4xf32> -> vector<2x8x4xf32>
    "tpu.trace_stop"() : () -> ()
    %128 = vector.shape_cast %127 : vector<2x8x4xf32> to vector<16x4xf32>
    %c0_39 = arith.constant 0 : index
    %c24 = arith.constant 24 : index
    %129 = vector.load %arg6[%c0_39, %c24] : memref<16x32xf32, #tpu.memory_space<vmem>>, vector<16x4xf32>
    tpu.vector_store %arg6[%c0_39, %c24], %128 {strides = array<i32>} : memref<16x32xf32, #tpu.memory_space<vmem>>, vector<16x4xf32>,
    %130 = vector.extract_strided_slice %8 {offsets = [0, 0, 28], sizes = [2, 8, 4], strides = [1, 1, 1]} : vector<2x8x32xf32> to vector<2x8x4xf32>
    %131 = vector.extract_strided_slice %9 {offsets = [0, 0, 28], sizes = [2, 8, 4], strides = [1, 1, 1]} : vector<2x8x32xf32> to vector<2x8x4xf32>
    %132 = vector.extract_strided_slice %10 {offsets = [0, 0, 28], sizes = [2, 8, 4], strides = [1, 1, 1]} : vector<2x8x32xf32> to vector<2x8x4xf32>
    "tpu.trace_start"() <{level = 10 : i32, message = "bnd,bmd->bnm"}> : () -> ()
    %cst_40 = arith.constant dense<0.000000e+00> : vector<2x8x8xf32>
    %133 = tpu.matmul %130, %131, %cst_40 {dimension_numbers = #tpu.dot_dimension_numbers<[2], [2], [1], [1], [0, 0, 0, 1, 1, 1], [0], [0]>} : vector<2x8x4xf32>, vector<2x8x4xf32>, vector<2x8x8xf32> -> vector<2x8x8xf32>
    "tpu.trace_stop"() : () -> ()
    %cst_41 = arith.constant dense<0xFF800000> : vector<2x8xf32>
    %134 = vector.multi_reduction <maximumf>, %133, %cst_41 [2] : vector<2x8x8xf32> to vector<2x8xf32>
    %135 = vector.shape_cast %134 : vector<2x8xf32> to vector<2x8x1xf32>
    %136 = vector.broadcast %135 : vector<2x8x1xf32> to vector<2x8x8xf32>
    %137 = arith.subf %133, %136 : vector<2x8x8xf32>
    %138 = math.exp %137 : vector<2x8x8xf32>
    %cst_42 = arith.constant dense<0.000000e+00> : vector<2x8xf32>
    %139 = vector.multi_reduction <add>, %138, %cst_42 [2] : vector<2x8x8xf32> to vector<2x8xf32>
    %140 = vector.shape_cast %139 : vector<2x8xf32> to vector<2x8x1xf32>
    %141 = tpu.reciprocal %140 {approx = true} : vector<2x8x1xf32> -> vector<2x8x1xf32>
    %142 = vector.broadcast %141 : vector<2x8x1xf32> to vector<2x8x8xf32>
    %143 = arith.mulf %138, %142 : vector<2x8x8xf32>
    "tpu.trace_start"() <{level = 10 : i32, message = "bnm,bmd->bnd"}> : () -> ()
    %cst_43 = arith.constant dense<0.000000e+00> : vector<2x8x4xf32>
    %144 = tpu.matmul %143, %132, %cst_43 {dimension_numbers = #tpu.dot_dimension_numbers<[2], [1], [1], [2], [0, 0, 0, 1, 1, 2], [0], [0]>} : vector<2x8x8xf32>, vector<2x8x4xf32>, vector<2x8x4xf32> -> vector<2x8x4xf32>
    "tpu.trace_stop"() : () -> ()
    %145 = vector.shape_cast %144 : vector<2x8x4xf32> to vector<16x4xf32>
    %c0_44 = arith.constant 0 : index
    %c28 = arith.constant 28 : index
    %146 = vector.load %arg6[%c0_44, %c28] : memref<16x32xf32, #tpu.memory_space<vmem>>, vector<16x4xf32>
    tpu.vector_store %arg6[%c0_44, %c28], %145 {strides = array<i32>} : memref<16x32xf32, #tpu.memory_space<vmem>>, vector<16x4xf32>,
    %c0_45 = arith.constant 0 : index
    %c0_46 = arith.constant 0 : index
    %147 = vector.load %arg6[%c0_45, %c0_46] : memref<16x32xf32, #tpu.memory_space<vmem>>, vector<16x32xf32>
    %c0_47 = arith.constant 0 : index
    %c0_48 = arith.constant 0 : index
    %148 = vector.load %arg3[%c0_47, %c0_48] : memref<32x32xf32, #tpu.memory_space<vmem>>, vector<32x32xf32>
    %cst_49 = arith.constant dense<0.000000e+00> : vector<16x32xf32>
    %149 = tpu.matmul %147, %148, %cst_49 {dimension_numbers = #tpu.dot_dimension_numbers<[1], [0], [0], [1], [0, 0, 1, 1], [], []>} : vector<16x32xf32>, vector<32x32xf32>, vector<16x32xf32> -> vector<16x32xf32>
    %c0_50 = arith.constant 0 : index
    %c0_51 = arith.constant 0 : index
    %150 = vector.load %arg4[%c0_50, %c0_51] : memref<1x32xf32, #tpu.memory_space<vmem>>, vector<1x32xf32>
    %151 = vector.broadcast %150 : vector<1x32xf32> to vector<16x32xf32>
    %152 = arith.addf %149, %151 : vector<16x32xf32>
    %c0_52 = arith.constant 0 : index
    %c0_53 = arith.constant 0 : index
    %153 = vector.load %arg5[%c0_52, %c0_53] : memref<16x32xf32, #tpu.memory_space<vmem>>, vector<16x32xf32>
    tpu.vector_store %arg5[%c0_52, %c0_53], %152 {strides = array<i32>} : memref<16x32xf32, #tpu.memory_space<vmem>>, vector<16x32xf32>,
    return
  }
  func.func @transform_0(%arg0: i32) -> (i32, i32) {
    %c0_i32 = arith.constant 0 : i32
    %c0_i32_0 = arith.constant 0 : i32
    return %arg0, %c0_i32 : i32, i32
  }
  func.func @transform_1(%arg0: i32) -> (i32, i32) {
    %c0_i32 = arith.constant 0 : i32
    %c0_i32_0 = arith.constant 0 : i32
    %c0_i32_1 = arith.constant 0 : i32
    return %c0_i32, %c0_i32_0 : i32, i32
  }
  func.func @transform_2(%arg0: i32) -> (i32, i32) {
    %c0_i32 = arith.constant 0 : i32
    %c0_i32_0 = arith.constant 0 : i32
    %c0_i32_1 = arith.constant 0 : i32
    return %c0_i32, %c0_i32_0 : i32, i32
  }
  func.func @transform_3(%arg0: i32) -> (i32, i32) {
    %c0_i32 = arith.constant 0 : i32
    %c0_i32_0 = arith.constant 0 : i32
    %c0_i32_1 = arith.constant 0 : i32
    return %c0_i32, %c0_i32_0 : i32, i32
  }
  func.func @transform_4(%arg0: i32) -> (i32, i32) {
    %c0_i32 = arith.constant 0 : i32
    %c0_i32_0 = arith.constant 0 : i32
    return %arg0, %c0_i32 : i32, i32
  }
}

</mosaic_0001>

<llo_original>
// kernel: tpu_custom_call.1
$region0: #{tpu_custom_call.1}
  #allocation0 [shape = 'u32[]', space=smem, size = 0x4, offset = 0x4, fixed_abs, tag = 'smem constant byte address 0x4 - core index']
  #allocation1 [shape = 'u32[144,128]{1,0:T(1,128)}', space=vmem, size = 0x12000, scoped, tag = 'internal scratch']
  #allocation2 [shape = 'f32[16,32]{1,0:T(8,128)}', space=vmem, size = 0x2000, scoped, tag = 'scratch operand']
  %s0 = inlined_call_operand.hbm [shape: f32[16,32], index: 0, kind: input, shape index: {}]
  %s1 = inlined_call_operand.hbm [shape: f32[32,96], index: 1, kind: input, shape index: {}]
  %s2 = inlined_call_operand.hbm [shape: f32[32,32], index: 2, kind: input, shape index: {}]
  %s3 = inlined_call_operand.vmem [shape: f32[1,32], index: 3, kind: input, shape index: {}]
  %s4 = inlined_call_operand.hbm [shape: f32[16,32], index: 4, kind: output, shape index: {}]
  %s5 = sld [smem:[#allocation0]]
  $region38: #{tpu_custom_call.1} parent=0
    _
  %s7 = ssub.s32 1, %s5
  %s8 = scalar_select 0, %s7, %s5
  $region1: #{tpu_custom_call.1} parent=0
    #allocation3 [shape = 'u8[8192]{0}', space=vmem, size = 0x2000, scoped, tag = 'input window, operand 0, single buffered']
    #allocation4 [shape = 's32[1]{0}', space=sflag, size = 0x4, scoped, tag = 'scoped memory for tpu_custom_call.1']
    #allocation5 [shape = 's32[1]{0}', space=sflag, size = 0x4, scoped, tag = 'scoped memory for tpu_custom_call.1']
    #allocation6 [shape = 'u8[16384]{0}', space=vmem, size = 0x4000, scoped, tag = 'input window, operand 1, single buffered']
    #allocation7 [shape = 's32[1]{0}', space=sflag, size = 0x4, scoped, tag = 'scoped memory for tpu_custom_call.1']
    #allocation8 [shape = 'u8[16384]{0}', space=vmem, size = 0x4000, scoped, tag = 'input window, operand 2, single buffered']
    #allocation9 [shape = 'u8[8192]{0}', space=vmem, size = 0x2000, scoped, tag = 'output window, operand 0, single buffered']
    %9 = vsyncpa [#allocation4], 0
    %10 = vsyncpa [#allocation7], 0
    %11 = vsyncpa [#allocation5], 0
    // Predicated region
    $region2: #{tpu_custom_call.1} parent=1 // pred_check
      _
    $region3: #{tpu_custom_call.1} parent=1 // pred_check_branch
      %13 = sbr.rel (0) target = $region5
    $region4: #{tpu_custom_call.1} parent=1 // pred_region
      %s15 = ssub.s32 256, 256
      %16 = vsyncadd [#allocation4], %s15
      %s17 = sshll.u32 [#allocation3], 4
      %s18 = int_to_ptr.vmem [resolvable:$true] %s17
      %23 = dma.hbm_to_vmem [thread:$0]  %s0, 256, %s18, [#allocation4], 128, 128, 8
    $region5: #{tpu_custom_call.1} parent=1 // pred_fallthru
      _
    // Predicated region
    $region6: #{tpu_custom_call.1} parent=1 // pred_check
      _
    $region7: #{tpu_custom_call.1} parent=1 // pred_check_branch
      %25 = sbr.rel (0) target = $region9
    $region8: #{tpu_custom_call.1} parent=1 // pred_region
      %s27 = ssub.s32 512, 512
      %28 = vsyncadd [#allocation7], %s27
      %s29 = sshll.u32 [#allocation6], 4
      %s30 = int_to_ptr.vmem [resolvable:$true] %s29
      %35 = dma.hbm_to_vmem [thread:$0]  %s1, 512, %s30, [#allocation7], 128, 128, 8
    $region9: #{tpu_custom_call.1} parent=1 // pred_fallthru
      _
    // Predicated region
    $region10: #{tpu_custom_call.1} parent=1 // pred_check
      _
    $region11: #{tpu_custom_call.1} parent=1 // pred_check_branch
      %37 = sbr.rel (0) target = $region13
    $region12: #{tpu_custom_call.1} parent=1 // pred_region
      %s39 = ssub.s32 512, 512
      %40 = vsyncadd [#allocation7], %s39
      %s41 = sshll.u32 [#allocation8], 4
      %s42 = int_to_ptr.vmem [resolvable:$true] %s41
      %47 = dma.hbm_to_vmem [thread:$0]  %s2, 512, %s42, [#allocation7], 128, 128, 8
    $region13: #{tpu_custom_call.1} parent=1 // pred_fallthru
      _
    // Predicated region
    $region14: #{tpu_custom_call.1} parent=1 // pred_check
      _
    $region15: #{tpu_custom_call.1} parent=1 // pred_check_branch
      %49 = sbr.rel (0) target = $region17
    $region16: #{tpu_custom_call.1} parent=1 // pred_region
      _
    $region17: #{tpu_custom_call.1} parent=1 // pred_fallthru
      _
    // Predicated region
    $region18: #{tpu_custom_call.1} parent=1 // pred_check
      _
    $region19: #{tpu_custom_call.1} parent=1 // pred_check_branch
      %51 = sbr.rel (0) target = $region21
    $region20: #{tpu_custom_call.1} parent=1 // pred_region
      %52 = dma.done [#allocation4], 256
    $region21: #{tpu_custom_call.1} parent=1 // pred_fallthru
      _
    // Predicated region
    $region22: #{tpu_custom_call.1} parent=1 // pred_check
      _
    $region23: #{tpu_custom_call.1} parent=1 // pred_check_branch
      %54 = sbr.rel (0) target = $region25
    $region24: #{tpu_custom_call.1} parent=1 // pred_region
      %55 = dma.done [#allocation7], 512
    $region25: #{tpu_custom_call.1} parent=1 // pred_fallthru
      _
    // Predicated region
    $region26: #{tpu_custom_call.1} parent=1 // pred_check
      _
    $region27: #{tpu_custom_call.1} parent=1 // pred_check_branch
      %57 = sbr.rel (0) target = $region29
    $region28: #{tpu_custom_call.1} parent=1 // pred_region
      %58 = dma.done [#allocation7], 512
    $region29: #{tpu_custom_call.1} parent=1 // pred_fallthru
      _
    %v59 = vld [vmem:[#allocation3] sm:$0xff]
    %v60 = vld [vmem:[#allocation3 + $0x8] sm:$0xff]
    %v61 = vld [vmem:[#allocation6] sm:$0xff]
    %v62 = vld [vmem:[#allocation6 + $0x8] sm:$0xff]
    %v63 = vld [vmem:[#allocation6 + $0x10] sm:$0xff]
    %v64 = vld [vmem:[#allocation6 + $0x18] sm:$0xff]
    %vm65 = vcmask 261120
    %v67 = vsel %vm65, %v59, 0
    %v70 = vsel %vm65, %v60, 0
    %72 = vmatprep.subr.mxu0 0.0
    %73 = vmatpush1.msra.mxu0 %v61
    %74 = vmatprep.subr.mxu0 0.0
    %75 = vmatpush1.msra.mxu0 %v62
    %76 = vmatprep.subr.mxu0 0.0
    %77 = vmatpush1.msra.mxu0 %v63
    %78 = vmatprep.subr.mxu0 0.0
    %79 = vmatpush1.msra.mxu0 %v64
    %80 = vmatprep.subr.mxu0 0.0
    %81 = vmatpush1.msra.mxu0 0.0
    %82 = vmatprep.subr.mxu0 0.0
    %83 = vmatpush1.msra.mxu0 0.0
    %84 = vmatprep.subr.mxu0 0.0
    %85 = vmatpush1.msra.mxu0 0.0
    %86 = vmatprep.subr.mxu0 0.0
    %87 = vmatpush1.msra.mxu0 0.0
    %88 = vmatprep.subr.mxu0 0.0
    %89 = vmatpush1.msra.mxu0 0.0
    %90 = vmatprep.subr.mxu0 0.0
    %91 = vmatpush1.msra.mxu0 0.0
    %92 = vmatprep.subr.mxu0 0.0
    %93 = vmatpush1.msra.mxu0 0.0
    %94 = vmatprep.subr.mxu0 0.0
    %95 = vmatpush1.msra.mxu0 0.0
    %96 = vmatprep.subr.mxu0 0.0
    %97 = vmatpush1.msra.mxu0 0.0
    %98 = vmatprep.subr.mxu0 0.0
    %99 = vmatpush1.msra.mxu0 0.0
    %100 = vmatprep.subr.mxu0 0.0
    %101 = vmatpush1.msra.mxu0 0.0
    %102 = vmatprep.subr.mxu0 0.0
    %103 = vmatpush1.msra.mxu0 0.0
    %104 = vmatprep.subr.mxu0 0.0
    %105 = vmatpush1.msra.mxu0 0.0
    %106 = vmatprep.subr.mxu0 0.0
    %107 = vmatpush1.msra.mxu0 0.0
    %108 = vmatprep.subr.mxu0 0.0
    %109 = vmatpush1.msra.mxu0 0.0
    %110 = vmatprep.subr.mxu0 0.0
    %111 = vmatpush1.msra.mxu0 0.0
    %112 = vmatprep.subr.mxu0 0.0
    %113 = vmatpush1.msra.mxu0 0.0
    %114 = vmatprep.subr.mxu0 0.0
    %115 = vmatpush1.msra.mxu0 0.0
    %116 = vmatprep.subr.mxu0 0.0
    %117 = vmatpush1.msra.mxu0 0.0
    %118 = vmatprep.subr.mxu0 0.0
    %119 = vmatpush1.msra.mxu0 0.0
    %120 = vmatprep.subr.mxu0 0.0
    %121 = vmatpush1.msra.mxu0 0.0
    %122 = vmatprep.subr.mxu0 0.0
    %123 = vmatpush1.msra.mxu0 0.0
    %124 = vmatprep.subr.mxu0 0.0
    %125 = vmatpush1.msra.mxu0 0.0
    %126 = vmatprep.subr.mxu0 0.0
    %127 = vmatpush1.msra.mxu0 0.0
    %128 = vmatprep.subr.mxu0 0.0
    %129 = vmatpush1.msra.mxu0 0.0
    %130 = vmatprep.subr.mxu0 0.0
    %131 = vmatpush1.msra.mxu0 0.0
    %132 = vmatprep.subr.mxu0 0.0
    %133 = vmatpush1.msra.mxu0 0.0
    %134 = vmatprep.subr.mxu0 0.0
    %135 = vmatpush1.msra.mxu0 0.0
    %136 = vmatprep.mubr.f32.mxu0 0.0
    %137 = vmatmul.mubr.f32.gmra.mrb[0].mxu0 %v67
    %v138 = vpop.f32.mrb[0].mxu0
    %v139 = vadd.f32 0.0, %v138
    %v140 = vpop.f32.mrb[0].mxu0
    %141 = vmatprep.mubr.f32.mxu0 0.0
    %142 = vmatmul.mubr.f32.gmra.mrb[0].mxu0 %v70
    %v143 = vpop.f32.mrb[0].mxu0
    %v144 = vadd.f32 0.0, %v143
    %v145 = vpop.f32.mrb[0].mxu0
    %146 = vdwg.mxu0
    %v147 = vmul.f32 %v139, 0.5
    %v148 = vmul.f32 %v144, 0.5
    %150 = vrot.lane.b32.xlu0 %v139, 96
    %v151 = vpop.permute.xlu0 %150
    %vm152 = vcmask 31744
    %v154 = vsel %vm152, %v147, 0
    %v156 = vsel %vm152, %v151, 0
    %158 = vmatprep.subr.mxu0 0.0
    %159 = vmatpush1.xpose.msra.mxu0 %v156
    %160 = vmatprep.subr.mxu0 0.0
    %161 = vmatpush1.xpose.msra.mxu0 0.0
    %162 = vmatprep.subr.mxu0 0.0
    %163 = vmatpush1.xpose.msra.mxu0 0.0
    %164 = vmatprep.subr.mxu0 0.0
    %165 = vmatpush1.xpose.msra.mxu0 0.0
    %166 = vmatprep.subr.mxu0 0.0
    %167 = vmatpush1.xpose.msra.mxu0 0.0
    %168 = vmatprep.subr.mxu0 0.0
    %169 = vmatpush1.xpose.msra.mxu0 0.0
    %170 = vmatprep.subr.mxu0 0.0
    %171 = vmatpush1.xpose.msra.mxu0 0.0
    %172 = vmatprep.subr.mxu0 0.0
    %173 = vmatpush1.xpose.msra.mxu0 0.0
    %174 = vmatprep.subr.mxu0 0.0
    %175 = vmatpush1.xpose.msra.mxu0 0.0
    %176 = vmatprep.subr.mxu0 0.0
    %177 = vmatpush1.xpose.msra.mxu0 0.0
    %178 = vmatprep.subr.mxu0 0.0
    %179 = vmatpush1.xpose.msra.mxu0 0.0
    %180 = vmatprep.subr.mxu0 0.0
    %181 = vmatpush1.xpose.msra.mxu0 0.0
    %182 = vmatprep.subr.mxu0 0.0
    %183 = vmatpush1.xpose.msra.mxu0 0.0
    %184 = vmatprep.subr.mxu0 0.0
    %185 = vmatpush1.xpose.msra.mxu0 0.0
    %186 = vmatprep.subr.mxu0 0.0
    %187 = vmatpush1.xpose.msra.mxu0 0.0
    %188 = vmatprep.subr.mxu0 0.0
    %189 = vmatpush1.xpose.msra.mxu0 0.0
    %190 = vmatprep.subr.mxu0 0.0
    %191 = vmatpush1.xpose.msra.mxu0 0.0
    %192 = vmatprep.subr.mxu0 0.0
    %193 = vmatpush1.xpose.msra.mxu0 0.0
    %194 = vmatprep.subr.mxu0 0.0
    %195 = vmatpush1.xpose.msra.mxu0 0.0
    %196 = vmatprep.subr.mxu0 0.0
    %197 = vmatpush1.xpose.msra.mxu0 0.0
    %198 = vmatprep.subr.mxu0 0.0
    %199 = vmatpush1.xpose.msra.mxu0 0.0
    %200 = vmatprep.subr.mxu0 0.0
    %201 = vmatpush1.xpose.msra.mxu0 0.0
    %202 = vmatprep.subr.mxu0 0.0
    %203 = vmatpush1.xpose.msra.mxu0 0.0
    %204 = vmatprep.subr.mxu0 0.0
    %205 = vmatpush1.xpose.msra.mxu0 0.0
    %206 = vmatprep.subr.mxu0 0.0
    %207 = vmatpush1.xpose.msra.mxu0 0.0
    %208 = vmatprep.subr.mxu0 0.0
    %209 = vmatpush1.xpose.msra.mxu0 0.0
    %210 = vmatprep.subr.mxu0 0.0
    %211 = vmatpush1.xpose.msra.mxu0 0.0
    %212 = vmatprep.subr.mxu0 0.0
    %213 = vmatpush1.xpose.msra.mxu0 0.0
    %214 = vmatprep.subr.mxu0 0.0
    %215 = vmatpush1.xpose.msra.mxu0 0.0
    %216 = vmatprep.subr.mxu0 0.0
    %217 = vmatpush1.xpose.msra.mxu0 0.0
    %218 = vmatprep.subr.mxu0 0.0
    %219 = vmatpush1.xpose.msra.mxu0 0.0
    %220 = vmatprep.subr.mxu0 0.0
    %221 = vmatpush1.xpose.msra.mxu0 0.0
    %222 = vmatprep.mubr.f32.mxu0 0.0
    %223 = vmatmul.mubr.f32.gmra.mrb[0].mxu0 %v154
    %v224 = vpop.f32.mrb[0].mxu0
    %v225 = vadd.f32 0.0, %v224
    %v226 = vpop.f32.mrb[0].mxu0
    %227 = vdwg.mxu0
    %229 = vrot.lane.b32.xlu0 %v144, 96
    %v230 = vpop.permute.xlu0 %229
    %v232 = vsel %vm152, %v148, 0
    %v234 = vsel %vm152, %v230, 0
    %236 = vmatprep.subr.mxu0 0.0
    %237 = vmatpush1.xpose.msra.mxu0 %v234
    %238 = vmatprep.subr.mxu0 0.0
    %239 = vmatpush1.xpose.msra.mxu0 0.0
    %240 = vmatprep.subr.mxu0 0.0
    %241 = vmatpush1.xpose.msra.mxu0 0.0
    %242 = vmatprep.subr.mxu0 0.0
    %243 = vmatpush1.xpose.msra.mxu0 0.0
    %244 = vmatprep.subr.mxu0 0.0
    %245 = vmatpush1.xpose.msra.mxu0 0.0
    %246 = vmatprep.subr.mxu0 0.0
    %247 = vmatpush1.xpose.msra.mxu0 0.0
    %248 = vmatprep.subr.mxu0 0.0
    %249 = vmatpush1.xpose.msra.mxu0 0.0
    %250 = vmatprep.subr.mxu0 0.0
    %251 = vmatpush1.xpose.msra.mxu0 0.0
    %252 = vmatprep.subr.mxu0 0.0
    %253 = vmatpush1.xpose.msra.mxu0 0.0
    %254 = vmatprep.subr.mxu0 0.0
    %255 = vmatpush1.xpose.msra.mxu0 0.0
    %256 = vmatprep.subr.mxu0 0.0
    %257 = vmatpush1.xpose.msra.mxu0 0.0
    %258 = vmatprep.subr.mxu0 0.0
    %259 = vmatpush1.xpose.msra.mxu0 0.0
    %260 = vmatprep.subr.mxu0 0.0
    %261 = vmatpush1.xpose.msra.mxu0 0.0
    %262 = vmatprep.subr.mxu0 0.0
    %263 = vmatpush1.xpose.msra.mxu0 0.0
    %264 = vmatprep.subr.mxu0 0.0
    %265 = vmatpush1.xpose.msra.mxu0 0.0
    %266 = vmatprep.subr.mxu0 0.0
    %267 = vmatpush1.xpose.msra.mxu0 0.0
    %268 = vmatprep.subr.mxu0 0.0
    %269 = vmatpush1.xpose.msra.mxu0 0.0
    %270 = vmatprep.subr.mxu0 0.0
    %271 = vmatpush1.xpose.msra.mxu0 0.0
    %272 = vmatprep.subr.mxu0 0.0
    %273 = vmatpush1.xpose.msra.mxu0 0.0
    %274 = vmatprep.subr.mxu0 0.0
    %275 = vmatpush1.xpose.msra.mxu0 0.0
    %276 = vmatprep.subr.mxu0 0.0
    %277 = vmatpush1.xpose.msra.mxu0 0.0
    %278 = vmatprep.subr.mxu0 0.0
    %279 = vmatpush1.xpose.msra.mxu0 0.0
    %280 = vmatprep.subr.mxu0 0.0
    %281 = vmatpush1.xpose.msra.mxu0 0.0
    %282 = vmatprep.subr.mxu0 0.0
    %283 = vmatpush1.xpose.msra.mxu0 0.0
    %284 = vmatprep.subr.mxu0 0.0
    %285 = vmatpush1.xpose.msra.mxu0 0.0
    %286 = vmatprep.subr.mxu0 0.0
    %287 = vmatpush1.xpose.msra.mxu0 0.0
    %288 = vmatprep.subr.mxu0 0.0
    %289 = vmatpush1.xpose.msra.mxu0 0.0
    %290 = vmatprep.subr.mxu0 0.0
    %291 = vmatpush1.xpose.msra.mxu0 0.0
    %292 = vmatprep.subr.mxu0 0.0
    %293 = vmatpush1.xpose.msra.mxu0 0.0
    %294 = vmatprep.subr.mxu0 0.0
    %295 = vmatpush1.xpose.msra.mxu0 0.0
    %296 = vmatprep.subr.mxu0 0.0
    %297 = vmatpush1.xpose.msra.mxu0 0.0
    %298 = vmatprep.subr.mxu0 0.0
    %299 = vmatpush1.xpose.msra.mxu0 0.0
    %300 = vmatprep.mubr.f32.mxu0 0.0
    %301 = vmatmul.mubr.f32.gmra.mrb[0].mxu0 %v232
    %v302 = vpop.f32.mrb[0].mxu0
    %v303 = vadd.f32 0.0, %v302
    %v304 = vpop.f32.mrb[0].mxu0
    %305 = vdwg.mxu0
    %vm306 = vcmask 64512
    %v307 = vsel %vm306, %v225, -inf
    %308 = vmax.xlane.f32.xlu0 %v307
    %v309 = vpop.xlane.xlu0 %308
    %v310 = vsel %vm306, %v303, -inf
    %311 = vmax.xlane.f32.xlu0 %v310
    %v312 = vpop.xlane.xlu0 %311
    %v313 = vsub.f32 %v225, %v309
    %v314 = vsub.f32 %v303, %v312
    %v315 = vmul.f32 %v313, 1.442695
    %v316 = vpow.pop %v315
    %v317 = vmul.f32 %v314, 1.442695
    %v318 = vpow.pop %v317
    %v319 = vsel %vm306, %v316, 0.0
    %320 = vadd.xlane.f32.xlu0 %v319
    %v321 = vpop.xlane.xlu0 %320
    %v322 = vsel %vm306, %v318, 0.0
    %323 = vadd.xlane.f32.xlu0 %v322
    %v324 = vpop.xlane.xlu0 %323
    %v325 = vrcp.pop %v321
    %v326 = vrcp.pop %v324
    %v327 = vmul.f32 %v316, %v325
    %v328 = vmul.f32 %v318, %v326
    %329 = vrot.lane.b32.xlu0 %v139, 64
    %v330 = vpop.permute.xlu0 %329
    %v333 = vsel %vm306, %v327, 0
    %335 = vmatprep.subr.mxu0 0.0
    %336 = vmatpush1.msra.mxu0 %v330
    %337 = vmatprep.subr.mxu0 0.0
    %338 = vmatpush1.msra.mxu0 0.0
    %339 = vmatprep.subr.mxu0 0.0
    %340 = vmatpush1.msra.mxu0 0.0
    %341 = vmatprep.subr.mxu0 0.0
    %342 = vmatpush1.msra.mxu0 0.0
    %343 = vmatprep.subr.mxu0 0.0
    %344 = vmatpush1.msra.mxu0 0.0
    %345 = vmatprep.subr.mxu0 0.0
    %346 = vmatpush1.msra.mxu0 0.0
    %347 = vmatprep.subr.mxu0 0.0
    %348 = vmatpush1.msra.mxu0 0.0
    %349 = vmatprep.subr.mxu0 0.0
    %350 = vmatpush1.msra.mxu0 0.0
    %351 = vmatprep.subr.mxu0 0.0
    %352 = vmatpush1.msra.mxu0 0.0
    %353 = vmatprep.subr.mxu0 0.0
    %354 = vmatpush1.msra.mxu0 0.0
    %355 = vmatprep.subr.mxu0 0.0
    %356 = vmatpush1.msra.mxu0 0.0
    %357 = vmatprep.subr.mxu0 0.0
    %358 = vmatpush1.msra.mxu0 0.0
    %359 = vmatprep.subr.mxu0 0.0
    %360 = vmatpush1.msra.mxu0 0.0
    %361 = vmatprep.subr.mxu0 0.0
    %362 = vmatpush1.msra.mxu0 0.0
    %363 = vmatprep.subr.mxu0 0.0
    %364 = vmatpush1.msra.mxu0 0.0
    %365 = vmatprep.subr.mxu0 0.0
    %366 = vmatpush1.msra.mxu0 0.0
    %367 = vmatprep.subr.mxu0 0.0
    %368 = vmatpush1.msra.mxu0 0.0
    %369 = vmatprep.subr.mxu0 0.0
    %370 = vmatpush1.msra.mxu0 0.0
    %371 = vmatprep.subr.mxu0 0.0
    %372 = vmatpush1.msra.mxu0 0.0
    %373 = vmatprep.subr.mxu0 0.0
    %374 = vmatpush1.msra.mxu0 0.0
    %375 = vmatprep.subr.mxu0 0.0
    %376 = vmatpush1.msra.mxu0 0.0
    %377 = vmatprep.subr.mxu0 0.0
    %378 = vmatpush1.msra.mxu0 0.0
    %379 = vmatprep.subr.mxu0 0.0
    %380 = vmatpush1.msra.mxu0 0.0
    %381 = vmatprep.subr.mxu0 0.0
    %382 = vmatpush1.msra.mxu0 0.0
    %383 = vmatprep.subr.mxu0 0.0
    %384 = vmatpush1.msra.mxu0 0.0
    %385 = vmatprep.subr.mxu0 0.0
    %386 = vmatpush1.msra.mxu0 0.0
    %387 = vmatprep.subr.mxu0 0.0
    %388 = vmatpush1.msra.mxu0 0.0
    %389 = vmatprep.subr.mxu0 0.0
    %390 = vmatpush1.msra.mxu0 0.0
    %391 = vmatprep.subr.mxu0 0.0
    %392 = vmatpush1.msra.mxu0 0.0
    %393 = vmatprep.subr.mxu0 0.0
    %394 = vmatpush1.msra.mxu0 0.0
    %395 = vmatprep.subr.mxu0 0.0
    %396 = vmatpush1.msra.mxu0 0.0
    %397 = vmatprep.subr.mxu0 0.0
    %398 = vmatpush1.msra.mxu0 0.0
    %399 = vmatprep.mubr.f32.mxu0 0.0
    %400 = vmatmul.mubr.f32.gmra.mrb[0].mxu0 %v333
    %v401 = vpop.f32.mrb[0].mxu0
    %v402 = vadd.f32 0.0, %v401
    %v403 = vpop.f32.mrb[0].mxu0
    %404 = vdwg.mxu0
    %405 = vrot.lane.b32.xlu0 %v144, 64
    %v406 = vpop.permute.xlu0 %405
    %v409 = vsel %vm306, %v328, 0
    %411 = vmatprep.subr.mxu0 0.0
    %412 = vmatpush1.msra.mxu0 %v406
    %413 = vmatprep.subr.mxu0 0.0
    %414 = vmatpush1.msra.mxu0 0.0
    %415 = vmatprep.subr.mxu0 0.0
    %416 = vmatpush1.msra.mxu0 0.0
    %417 = vmatprep.subr.mxu0 0.0
    %418 = vmatpush1.msra.mxu0 0.0
    %419 = vmatprep.subr.mxu0 0.0
    %420 = vmatpush1.msra.mxu0 0.0
    %421 = vmatprep.subr.mxu0 0.0
    %422 = vmatpush1.msra.mxu0 0.0
    %423 = vmatprep.subr.mxu0 0.0
    %424 = vmatpush1.msra.mxu0 0.0
    %425 = vmatprep.subr.mxu0 0.0
    %426 = vmatpush1.msra.mxu0 0.0
    %427 = vmatprep.subr.mxu0 0.0
    %428 = vmatpush1.msra.mxu0 0.0
    %429 = vmatprep.subr.mxu0 0.0
    %430 = vmatpush1.msra.mxu0 0.0
    %431 = vmatprep.subr.mxu0 0.0
    %432 = vmatpush1.msra.mxu0 0.0
    %433 = vmatprep.subr.mxu0 0.0
    %434 = vmatpush1.msra.mxu0 0.0
    %435 = vmatprep.subr.mxu0 0.0
    %436 = vmatpush1.msra.mxu0 0.0
    %437 = vmatprep.subr.mxu0 0.0
    %438 = vmatpush1.msra.mxu0 0.0
    %439 = vmatprep.subr.mxu0 0.0
    %440 = vmatpush1.msra.mxu0 0.0
    %441 = vmatprep.subr.mxu0 0.0
    %442 = vmatpush1.msra.mxu0 0.0
    %443 = vmatprep.subr.mxu0 0.0
    %444 = vmatpush1.msra.mxu0 0.0
    %445 = vmatprep.subr.mxu0 0.0
    %446 = vmatpush1.msra.mxu0 0.0
    %447 = vmatprep.subr.mxu0 0.0
    %448 = vmatpush1.msra.mxu0 0.0
    %449 = vmatprep.subr.mxu0 0.0
    %450 = vmatpush1.msra.mxu0 0.0
    %451 = vmatprep.subr.mxu0 0.0
    %452 = vmatpush1.msra.mxu0 0.0
    %453 = vmatprep.subr.mxu0 0.0
    %454 = vmatpush1.msra.mxu0 0.0
    %455 = vmatprep.subr.mxu0 0.0
    %456 = vmatpush1.msra.mxu0 0.0
    %457 = vmatprep.subr.mxu0 0.0
    %458 = vmatpush1.msra.mxu0 0.0
    %459 = vmatprep.subr.mxu0 0.0
    %460 = vmatpush1.msra.mxu0 0.0
    %461 = vmatprep.subr.mxu0 0.0
    %462 = vmatpush1.msra.mxu0 0.0
    %463 = vmatprep.subr.mxu0 0.0
    %464 = vmatpush1.msra.mxu0 0.0
    %465 = vmatprep.subr.mxu0 0.0
    %466 = vmatpush1.msra.mxu0 0.0
    %467 = vmatprep.subr.mxu0 0.0
    %468 = vmatpush1.msra.mxu0 0.0
    %469 = vmatprep.subr.mxu0 0.0
    %470 = vmatpush1.msra.mxu0 0.0
    %471 = vmatprep.subr.mxu0 0.0
    %472 = vmatpush1.msra.mxu0 0.0
    %473 = vmatprep.subr.mxu0 0.0
    %474 = vmatpush1.msra.mxu0 0.0
    %475 = vmatprep.mubr.f32.mxu0 0.0
    %476 = vmatmul.mubr.f32.gmra.mrb[0].mxu0 %v409
    %v477 = vpop.f32.mrb[0].mxu0
    %v478 = vadd.f32 0.0, %v477
    %v479 = vpop.f32.mrb[0].mxu0
    %480 = vdwg.mxu0
    %481 = vst.msk [vmem:[#allocation2] sm:$0xff] %vm152, %v402
    %482 = vst.msk [vmem:[#allocation2 + $0x8] sm:$0xff] %vm152, %v478
    %483 = vrot.lane.b32.xlu0 %v147, 124
    %v484 = vpop.permute.xlu0 %483
    %485 = vrot.lane.b32.xlu0 %v139, 92
    %v486 = vpop.permute.xlu0 %485
    %v487 = vsel %vm152, %v484, 0
    %v489 = vsel %vm152, %v486, 0
    %491 = vmatprep.subr.mxu0 0.0
    %492 = vmatpush1.xpose.msra.mxu0 %v489
    %493 = vmatprep.subr.mxu0 0.0
    %494 = vmatpush1.xpose.msra.mxu0 0.0
    %495 = vmatprep.subr.mxu0 0.0
    %496 = vmatpush1.xpose.msra.mxu0 0.0
    %497 = vmatprep.subr.mxu0 0.0
    %498 = vmatpush1.xpose.msra.mxu0 0.0
    %499 = vmatprep.subr.mxu0 0.0
    %500 = vmatpush1.xpose.msra.mxu0 0.0
    %501 = vmatprep.subr.mxu0 0.0
    %502 = vmatpush1.xpose.msra.mxu0 0.0
    %503 = vmatprep.subr.mxu0 0.0
    %504 = vmatpush1.xpose.msra.mxu0 0.0
    %505 = vmatprep.subr.mxu0 0.0
    %506 = vmatpush1.xpose.msra.mxu0 0.0
    %507 = vmatprep.subr.mxu0 0.0
    %508 = vmatpush1.xpose.msra.mxu0 0.0
    %509 = vmatprep.subr.mxu0 0.0
    %510 = vmatpush1.xpose.msra.mxu0 0.0
    %511 = vmatprep.subr.mxu0 0.0
    %512 = vmatpush1.xpose.msra.mxu0 0.0
    %513 = vmatprep.subr.mxu0 0.0
    %514 = vmatpush1.xpose.msra.mxu0 0.0
    %515 = vmatprep.subr.mxu0 0.0
    %516 = vmatpush1.xpose.msra.mxu0 0.0
    %517 = vmatprep.subr.mxu0 0.0
    %518 = vmatpush1.xpose.msra.mxu0 0.0
    %519 = vmatprep.subr.mxu0 0.0
    %520 = vmatpush1.xpose.msra.mxu0 0.0
    %521 = vmatprep.subr.mxu0 0.0
    %522 = vmatpush1.xpose.msra.mxu0 0.0
    %523 = vmatprep.subr.mxu0 0.0
    %524 = vmatpush1.xpose.msra.mxu0 0.0
    %525 = vmatprep.subr.mxu0 0.0
    %526 = vmatpush1.xpose.msra.mxu0 0.0
    %527 = vmatprep.subr.mxu0 0.0
    %528 = vmatpush1.xpose.msra.mxu0 0.0
    %529 = vmatprep.subr.mxu0 0.0
    %530 = vmatpush1.xpose.msra.mxu0 0.0
    %531 = vmatprep.subr.mxu0 0.0
    %532 = vmatpush1.xpose.msra.mxu0 0.0
    %533 = vmatprep.subr.mxu0 0.0
    %534 = vmatpush1.xpose.msra.mxu0 0.0
    %535 = vmatprep.subr.mxu0 0.0
    %536 = vmatpush1.xpose.msra.mxu0 0.0
    %537 = vmatprep.subr.mxu0 0.0
    %538 = vmatpush1.xpose.msra.mxu0 0.0
    %539 = vmatprep.subr.mxu0 0.0
    %540 = vmatpush1.xpose.msra.mxu0 0.0
    %541 = vmatprep.subr.mxu0 0.0
    %542 = vmatpush1.xpose.msra.mxu0 0.0
    %543 = vmatprep.subr.mxu0 0.0
    %544 = vmatpush1.xpose.msra.mxu0 0.0
    %545 = vmatprep.subr.mxu0 0.0
    %546 = vmatpush1.xpose.msra.mxu0 0.0
    %547 = vmatprep.subr.mxu0 0.0
    %548 = vmatpush1.xpose.msra.mxu0 0.0
    %549 = vmatprep.subr.mxu0 0.0
    %550 = vmatpush1.xpose.msra.mxu0 0.0
    %551 = vmatprep.subr.mxu0 0.0
    %552 = vmatpush1.xpose.msra.mxu0 0.0
    %553 = vmatprep.subr.mxu0 0.0
    %554 = vmatpush1.xpose.msra.mxu0 0.0
    %555 = vmatprep.mubr.f32.mxu0 0.0
    %556 = vmatmul.mubr.f32.gmra.mrb[0].mxu0 %v487
    %v557 = vpop.f32.mrb[0].mxu0
    %v558 = vadd.f32 0.0, %v557
    %v559 = vpop.f32.mrb[0].mxu0
    %560 = vdwg.mxu0
    %561 = vrot.lane.b32.xlu0 %v148, 124
    %v562 = vpop.permute.xlu0 %561
    %563 = vrot.lane.b32.xlu0 %v144, 92
    %v564 = vpop.permute.xlu0 %563
    %v565 = vsel %vm152, %v562, 0
    %v567 = vsel %vm152, %v564, 0
    %569 = vmatprep.subr.mxu0 0.0
    %570 = vmatpush1.xpose.msra.mxu0 %v567
    %571 = vmatprep.subr.mxu0 0.0
    %572 = vmatpush1.xpose.msra.mxu0 0.0
    %573 = vmatprep.subr.mxu0 0.0
    %574 = vmatpush1.xpose.msra.mxu0 0.0
    %575 = vmatprep.subr.mxu0 0.0
    %576 = vmatpush1.xpose.msra.mxu0 0.0
    %577 = vmatprep.subr.mxu0 0.0
    %578 = vmatpush1.xpose.msra.mxu0 0.0
    %579 = vmatprep.subr.mxu0 0.0
    %580 = vmatpush1.xpose.msra.mxu0 0.0
    %581 = vmatprep.subr.mxu0 0.0
    %582 = vmatpush1.xpose.msra.mxu0 0.0
    %583 = vmatprep.subr.mxu0 0.0
    %584 = vmatpush1.xpose.msra.mxu0 0.0
    %585 = vmatprep.subr.mxu0 0.0
    %586 = vmatpush1.xpose.msra.mxu0 0.0
    %587 = vmatprep.subr.mxu0 0.0
    %588 = vmatpush1.xpose.msra.mxu0 0.0
    %589 = vmatprep.subr.mxu0 0.0
    %590 = vmatpush1.xpose.msra.mxu0 0.0
    %591 = vmatprep.subr.mxu0 0.0
    %592 = vmatpush1.xpose.msra.mxu0 0.0
    %593 = vmatprep.subr.mxu0 0.0
    %594 = vmatpush1.xpose.msra.mxu0 0.0
    %595 = vmatprep.subr.mxu0 0.0
    %596 = vmatpush1.xpose.msra.mxu0 0.0
    %597 = vmatprep.subr.mxu0 0.0
    %598 = vmatpush1.xpose.msra.mxu0 0.0
    %599 = vmatprep.subr.mxu0 0.0
    %600 = vmatpush1.xpose.msra.mxu0 0.0
    %601 = vmatprep.subr.mxu0 0.0
    %602 = vmatpush1.xpose.msra.mxu0 0.0
    %603 = vmatprep.subr.mxu0 0.0
    %604 = vmatpush1.xpose.msra.mxu0 0.0
    %605 = vmatprep.subr.mxu0 0.0
    %606 = vmatpush1.xpose.msra.mxu0 0.0
    %607 = vmatprep.subr.mxu0 0.0
    %608 = vmatpush1.xpose.msra.mxu0 0.0
    %609 = vmatprep.subr.mxu0 0.0
    %610 = vmatpush1.xpose.msra.mxu0 0.0
    %611 = vmatprep.subr.mxu0 0.0
    %612 = vmatpush1.xpose.msra.mxu0 0.0
    %613 = vmatprep.subr.mxu0 0.0
    %614 = vmatpush1.xpose.msra.mxu0 0.0
    %615 = vmatprep.subr.mxu0 0.0
    %616 = vmatpush1.xpose.msra.mxu0 0.0
    %617 = vmatprep.subr.mxu0 0.0
    %618 = vmatpush1.xpose.msra.mxu0 0.0
    %619 = vmatprep.subr.mxu0 0.0
    %620 = vmatpush1.xpose.msra.mxu0 0.0
    %621 = vmatprep.subr.mxu0 0.0
    %622 = vmatpush1.xpose.msra.mxu0 0.0
    %623 = vmatprep.subr.mxu0 0.0
    %624 = vmatpush1.xpose.msra.mxu0 0.0
    %625 = vmatprep.subr.mxu0 0.0
    %626 = vmatpush1.xpose.msra.mxu0 0.0
    %627 = vmatprep.subr.mxu0 0.0
    %628 = vmatpush1.xpose.msra.mxu0 0.0
    %629 = vmatprep.subr.mxu0 0.0
    %630 = vmatpush1.xpose.msra.mxu0 0.0
    %631 = vmatprep.subr.mxu0 0.0
    %632 = vmatpush1.xpose.msra.mxu0 0.0
    %633 = vmatprep.mubr.f32.mxu0 0.0
    %634 = vmatmul.mubr.f32.gmra.mrb[0].mxu0 %v565
    %v635 = vpop.f32.mrb[0].mxu0
    %v636 = vadd.f32 0.0, %v635
    %v637 = vpop.f32.mrb[0].mxu0
    %638 = vdwg.mxu0
    %v639 = vsel %vm306, %v558, -inf
    %640 = vmax.xlane.f32.xlu0 %v639
    %v641 = vpop.xlane.xlu0 %640
    %v642 = vsel %vm306, %v636, -inf
    %643 = vmax.xlane.f32.xlu0 %v642
    %v644 = vpop.xlane.xlu0 %643
    %v645 = vsub.f32 %v558, %v641
    %v646 = vsub.f32 %v636, %v644
    %v647 = vmul.f32 %v645, 1.442695
    %v648 = vpow.pop %v647
    %v649 = vmul.f32 %v646, 1.442695
    %v650 = vpow.pop %v649
    %v651 = vsel %vm306, %v648, 0.0
    %652 = vadd.xlane.f32.xlu0 %v651
    %v653 = vpop.xlane.xlu0 %652
    %v654 = vsel %vm306, %v650, 0.0
    %655 = vadd.xlane.f32.xlu0 %v654
    %v656 = vpop.xlane.xlu0 %655
    %v657 = vrcp.pop %v653
    %v658 = vrcp.pop %v656
    %v659 = vmul.f32 %v648, %v657
    %v660 = vmul.f32 %v650, %v658
    %661 = vrot.lane.b32.xlu0 %v139, 60
    %v662 = vpop.permute.xlu0 %661
    %v665 = vsel %vm306, %v659, 0
    %667 = vmatprep.subr.mxu0 0.0
    %668 = vmatpush1.msra.mxu0 %v662
    %669 = vmatprep.subr.mxu0 0.0
    %670 = vmatpush1.msra.mxu0 0.0
    %671 = vmatprep.subr.mxu0 0.0
    %672 = vmatpush1.msra.mxu0 0.0
    %673 = vmatprep.subr.mxu0 0.0
    %674 = vmatpush1.msra.mxu0 0.0
    %675 = vmatprep.subr.mxu0 0.0
    %676 = vmatpush1.msra.mxu0 0.0
    %677 = vmatprep.subr.mxu0 0.0
    %678 = vmatpush1.msra.mxu0 0.0
    %679 = vmatprep.subr.mxu0 0.0
    %680 = vmatpush1.msra.mxu0 0.0
    %681 = vmatprep.subr.mxu0 0.0
    %682 = vmatpush1.msra.mxu0 0.0
    %683 = vmatprep.subr.mxu0 0.0
    %684 = vmatpush1.msra.mxu0 0.0
    %685 = vmatprep.subr.mxu0 0.0
    %686 = vmatpush1.msra.mxu0 0.0
    %687 = vmatprep.subr.mxu0 0.0
    %688 = vmatpush1.msra.mxu0 0.0
    %689 = vmatprep.subr.mxu0 0.0
    %690 = vmatpush1.msra.mxu0 0.0
    %691 = vmatprep.subr.mxu0 0.0
    %692 = vmatpush1.msra.mxu0 0.0
    %693 = vmatprep.subr.mxu0 0.0
    %694 = vmatpush1.msra.mxu0 0.0
    %695 = vmatprep.subr.mxu0 0.0
    %696 = vmatpush1.msra.mxu0 0.0
    %697 = vmatprep.subr.mxu0 0.0
    %698 = vmatpush1.msra.mxu0 0.0
    %699 = vmatprep.subr.mxu0 0.0
    %700 = vmatpush1.msra.mxu0 0.0
    %701 = vmatprep.subr.mxu0 0.0
    %702 = vmatpush1.msra.mxu0 0.0
    %703 = vmatprep.subr.mxu0 0.0
    %704 = vmatpush1.msra.mxu0 0.0
    %705 = vmatprep.subr.mxu0 0.0
    %706 = vmatpush1.msra.mxu0 0.0
    %707 = vmatprep.subr.mxu0 0.0
    %708 = vmatpush1.msra.mxu0 0.0
    %709 = vmatprep.subr.mxu0 0.0
    %710 = vmatpush1.msra.mxu0 0.0
    %711 = vmatprep.subr.mxu0 0.0
    %712 = vmatpush1.msra.mxu0 0.0
    %713 = vmatprep.subr.mxu0 0.0
    %714 = vmatpush1.msra.mxu0 0.0
    %715 = vmatprep.subr.mxu0 0.0
    %716 = vmatpush1.msra.mxu0 0.0
    %717 = vmatprep.subr.mxu0 0.0
    %718 = vmatpush1.msra.mxu0 0.0
    %719 = vmatprep.subr.mxu0 0.0
    %720 = vmatpush1.msra.mxu0 0.0
    %721 = vmatprep.subr.mxu0 0.0
    %722 = vmatpush1.msra.mxu0 0.0
    %723 = vmatprep.subr.mxu0 0.0
    %724 = vmatpush1.msra.mxu0 0.0
    %725 = vmatprep.subr.mxu0 0.0
    %726 = vmatpush1.msra.mxu0 0.0
    %727 = vmatprep.subr.mxu0 0.0
    %728 = vmatpush1.msra.mxu0 0.0
    %729 = vmatprep.subr.mxu0 0.0
    %730 = vmatpush1.msra.mxu0 0.0
    %731 = vmatprep.mubr.f32.mxu0 0.0
    %732 = vmatmul.mubr.f32.gmra.mrb[0].mxu0 %v665
    %v733 = vpop.f32.mrb[0].mxu0
    %v734 = vadd.f32 0.0, %v733
    %v735 = vpop.f32.mrb[0].mxu0
    %736 = vdwg.mxu0
    %737 = vrot.lane.b32.xlu0 %v144, 60
    %v738 = vpop.permute.xlu0 %737
    %v741 = vsel %vm306, %v660, 0
    %743 = vmatprep.subr.mxu0 0.0
    %744 = vmatpush1.msra.mxu0 %v738
    %745 = vmatprep.subr.mxu0 0.0
    %746 = vmatpush1.msra.mxu0 0.0
    %747 = vmatprep.subr.mxu0 0.0
    %748 = vmatpush1.msra.mxu0 0.0
    %749 = vmatprep.subr.mxu0 0.0
    %750 = vmatpush1.msra.mxu0 0.0
    %751 = vmatprep.subr.mxu0 0.0
    %752 = vmatpush1.msra.mxu0 0.0
    %753 = vmatprep.subr.mxu0 0.0
    %754 = vmatpush1.msra.mxu0 0.0
    %755 = vmatprep.subr.mxu0 0.0
    %756 = vmatpush1.msra.mxu0 0.0
    %757 = vmatprep.subr.mxu0 0.0
    %758 = vmatpush1.msra.mxu0 0.0
    %759 = vmatprep.subr.mxu0 0.0
    %760 = vmatpush1.msra.mxu0 0.0
    %761 = vmatprep.subr.mxu0 0.0
    %762 = vmatpush1.msra.mxu0 0.0
    %763 = vmatprep.subr.mxu0 0.0
    %764 = vmatpush1.msra.mxu0 0.0
    %765 = vmatprep.subr.mxu0 0.0
    %766 = vmatpush1.msra.mxu0 0.0
    %767 = vmatprep.subr.mxu0 0.0
    %768 = vmatpush1.msra.mxu0 0.0
    %769 = vmatprep.subr.mxu0 0.0
    %770 = vmatpush1.msra.mxu0 0.0
    %771 = vmatprep.subr.mxu0 0.0
    %772 = vmatpush1.msra.mxu0 0.0
    %773 = vmatprep.subr.mxu0 0.0
    %774 = vmatpush1.msra.mxu0 0.0
    %775 = vmatprep.subr.mxu0 0.0
    %776 = vmatpush1.msra.mxu0 0.0
    %777 = vmatprep.subr.mxu0 0.0
    %778 = vmatpush1.msra.mxu0 0.0
    %779 = vmatprep.subr.mxu0 0.0
    %780 = vmatpush1.msra.mxu0 0.0
    %781 = vmatprep.subr.mxu0 0.0
    %782 = vmatpush1.msra.mxu0 0.0
    %783 = vmatprep.subr.mxu0 0.0
    %784 = vmatpush1.msra.mxu0 0.0
    %785 = vmatprep.subr.mxu0 0.0
    %786 = vmatpush1.msra.mxu0 0.0
    %787 = vmatprep.subr.mxu0 0.0
    %788 = vmatpush1.msra.mxu0 0.0
    %789 = vmatprep.subr.mxu0 0.0
    %790 = vmatpush1.msra.mxu0 0.0
    %791 = vmatprep.subr.mxu0 0.0
    %792 = vmatpush1.msra.mxu0 0.0
    %793 = vmatprep.subr.mxu0 0.0
    %794 = vmatpush1.msra.mxu0 0.0
    %795 = vmatprep.subr.mxu0 0.0
    %796 = vmatpush1.msra.mxu0 0.0
    %797 = vmatprep.subr.mxu0 0.0
    %798 = vmatpush1.msra.mxu0 0.0
    %799 = vmatprep.subr.mxu0 0.0
    %800 = vmatpush1.msra.mxu0 0.0
    %801 = vmatprep.subr.mxu0 0.0
    %802 = vmatpush1.msra.mxu0 0.0
    %803 = vmatprep.subr.mxu0 0.0
    %804 = vmatpush1.msra.mxu0 0.0
    %805 = vmatprep.subr.mxu0 0.0
    %806 = vmatpush1.msra.mxu0 0.0
    %807 = vmatprep.mubr.f32.mxu0 0.0
    %808 = vmatmul.mubr.f32.gmra.mrb[0].mxu0 %v741
    %v809 = vpop.f32.mrb[0].mxu0
    %v810 = vadd.f32 0.0, %v809
    %v811 = vpop.f32.mrb[0].mxu0
    %812 = vdwg.mxu0
    %815 = vrot.lane.b32.xlu0 %v734, 4
    %v816 = vpop.permute.xlu0 %815
    %817 = vrot.lane.b32.xlu0 %v810, 4
    %v818 = vpop.permute.xlu0 %817
    %vm821 = vcmask 64544
    %822 = vst.msk [vmem:[#allocation2] sm:$0xff] %vm821, %v816
    %823 = vst.msk [vmem:[#allocation2 + $0x8] sm:$0xff] %vm821, %v818
    %824 = vrot.lane.b32.xlu0 %v147, 120
    %v825 = vpop.permute.xlu0 %824
    %826 = vrot.lane.b32.xlu0 %v139, 88
    %v827 = vpop.permute.xlu0 %826
    %v828 = vsel %vm152, %v825, 0
    %v830 = vsel %vm152, %v827, 0
    %832 = vmatprep.subr.mxu0 0.0
    %833 = vmatpush1.xpose.msra.mxu0 %v830
    %834 = vmatprep.subr.mxu0 0.0
    %835 = vmatpush1.xpose.msra.mxu0 0.0
    %836 = vmatprep.subr.mxu0 0.0
    %837 = vmatpush1.xpose.msra.mxu0 0.0
    %838 = vmatprep.subr.mxu0 0.0
    %839 = vmatpush1.xpose.msra.mxu0 0.0
    %840 = vmatprep.subr.mxu0 0.0
    %841 = vmatpush1.xpose.msra.mxu0 0.0
    %842 = vmatprep.subr.mxu0 0.0
    %843 = vmatpush1.xpose.msra.mxu0 0.0
    %844 = vmatprep.subr.mxu0 0.0
    %845 = vmatpush1.xpose.msra.mxu0 0.0
    %846 = vmatprep.subr.mxu0 0.0
    %847 = vmatpush1.xpose.msra.mxu0 0.0
    %848 = vmatprep.subr.mxu0 0.0
    %849 = vmatpush1.xpose.msra.mxu0 0.0
    %850 = vmatprep.subr.mxu0 0.0
    %851 = vmatpush1.xpose.msra.mxu0 0.0
    %852 = vmatprep.subr.mxu0 0.0
    %853 = vmatpush1.xpose.msra.mxu0 0.0
    %854 = vmatprep.subr.mxu0 0.0
    %855 = vmatpush1.xpose.msra.mxu0 0.0
    %856 = vmatprep.subr.mxu0 0.0
    %857 = vmatpush1.xpose.msra.mxu0 0.0
    %858 = vmatprep.subr.mxu0 0.0
    %859 = vmatpush1.xpose.msra.mxu0 0.0
    %860 = vmatprep.subr.mxu0 0.0
    %861 = vmatpush1.xpose.msra.mxu0 0.0
    %862 = vmatprep.subr.mxu0 0.0
    %863 = vmatpush1.xpose.msra.mxu0 0.0
    %864 = vmatprep.subr.mxu0 0.0
    %865 = vmatpush1.xpose.msra.mxu0 0.0
    %866 = vmatprep.subr.mxu0 0.0
    %867 = vmatpush1.xpose.msra.mxu0 0.0
    %868 = vmatprep.subr.mxu0 0.0
    %869 = vmatpush1.xpose.msra.mxu0 0.0
    %870 = vmatprep.subr.mxu0 0.0
    %871 = vmatpush1.xpose.msra.mxu0 0.0
    %872 = vmatprep.subr.mxu0 0.0
    %873 = vmatpush1.xpose.msra.mxu0 0.0
    %874 = vmatprep.subr.mxu0 0.0
    %875 = vmatpush1.xpose.msra.mxu0 0.0
    %876 = vmatprep.subr.mxu0 0.0
    %877 = vmatpush1.xpose.msra.mxu0 0.0
    %878 = vmatprep.subr.mxu0 0.0
    %879 = vmatpush1.xpose.msra.mxu0 0.0
    %880 = vmatprep.subr.mxu0 0.0
    %881 = vmatpush1.xpose.msra.mxu0 0.0
    %882 = vmatprep.subr.mxu0 0.0
    %883 = vmatpush1.xpose.msra.mxu0 0.0
    %884 = vmatprep.subr.mxu0 0.0
    %885 = vmatpush1.xpose.msra.mxu0 0.0
    %886 = vmatprep.subr.mxu0 0.0
    %887 = vmatpush1.xpose.msra.mxu0 0.0
    %888 = vmatprep.subr.mxu0 0.0
    %889 = vmatpush1.xpose.msra.mxu0 0.0
    %890 = vmatprep.subr.mxu0 0.0
    %891 = vmatpush1.xpose.msra.mxu0 0.0
    %892 = vmatprep.subr.mxu0 0.0
    %893 = vmatpush1.xpose.msra.mxu0 0.0
    %894 = vmatprep.subr.mxu0 0.0
    %895 = vmatpush1.xpose.msra.mxu0 0.0
    %896 = vmatprep.mubr.f32.mxu0 0.0
    %897 = vmatmul.mubr.f32.gmra.mrb[0].mxu0 %v828
    %v898 = vpop.f32.mrb[0].mxu0
    %v899 = vadd.f32 0.0, %v898
    %v900 = vpop.f32.mrb[0].mxu0
    %901 = vdwg.mxu0
    %902 = vrot.lane.b32.xlu0 %v148, 120
    %v903 = vpop.permute.xlu0 %902
    %904 = vrot.lane.b32.xlu0 %v144, 88
    %v905 = vpop.permute.xlu0 %904
    %v906 = vsel %vm152, %v903, 0
    %v908 = vsel %vm152, %v905, 0
    %910 = vmatprep.subr.mxu0 0.0
    %911 = vmatpush1.xpose.msra.mxu0 %v908
    %912 = vmatprep.subr.mxu0 0.0
    %913 = vmatpush1.xpose.msra.mxu0 0.0
    %914 = vmatprep.subr.mxu0 0.0
    %915 = vmatpush1.xpose.msra.mxu0 0.0
    %916 = vmatprep.subr.mxu0 0.0
    %917 = vmatpush1.xpose.msra.mxu0 0.0
    %918 = vmatprep.subr.mxu0 0.0
    %919 = vmatpush1.xpose.msra.mxu0 0.0
    %920 = vmatprep.subr.mxu0 0.0
    %921 = vmatpush1.xpose.msra.mxu0 0.0
    %922 = vmatprep.subr.mxu0 0.0
    %923 = vmatpush1.xpose.msra.mxu0 0.0
    %924 = vmatprep.subr.mxu0 0.0
    %925 = vmatpush1.xpose.msra.mxu0 0.0
    %926 = vmatprep.subr.mxu0 0.0
    %927 = vmatpush1.xpose.msra.mxu0 0.0
    %928 = vmatprep.subr.mxu0 0.0
    %929 = vmatpush1.xpose.msra.mxu0 0.0
    %930 = vmatprep.subr.mxu0 0.0
    %931 = vmatpush1.xpose.msra.mxu0 0.0
    %932 = vmatprep.subr.mxu0 0.0
    %933 = vmatpush1.xpose.msra.mxu0 0.0
    %934 = vmatprep.subr.mxu0 0.0
    %935 = vmatpush1.xpose.msra.mxu0 0.0
    %936 = vmatprep.subr.mxu0 0.0
    %937 = vmatpush1.xpose.msra.mxu0 0.0
    %938 = vmatprep.subr.mxu0 0.0
    %939 = vmatpush1.xpose.msra.mxu0 0.0
    %940 = vmatprep.subr.mxu0 0.0
    %941 = vmatpush1.xpose.msra.mxu0 0.0
    %942 = vmatprep.subr.mxu0 0.0
    %943 = vmatpush1.xpose.msra.mxu0 0.0
    %944 = vmatprep.subr.mxu0 0.0
    %945 = vmatpush1.xpose.msra.mxu0 0.0
    %946 = vmatprep.subr.mxu0 0.0
    %947 = vmatpush1.xpose.msra.mxu0 0.0
    %948 = vmatprep.subr.mxu0 0.0
    %949 = vmatpush1.xpose.msra.mxu0 0.0
    %950 = vmatprep.subr.mxu0 0.0
    %951 = vmatpush1.xpose.msra.mxu0 0.0
    %952 = vmatprep.subr.mxu0 0.0
    %953 = vmatpush1.xpose.msra.mxu0 0.0
    %954 = vmatprep.subr.mxu0 0.0
    %955 = vmatpush1.xpose.msra.mxu0 0.0
    %956 = vmatprep.subr.mxu0 0.0
    %957 = vmatpush1.xpose.msra.mxu0 0.0
    %958 = vmatprep.subr.mxu0 0.0
    %959 = vmatpush1.xpose.msra.mxu0 0.0
    %960 = vmatprep.subr.mxu0 0.0
    %961 = vmatpush1.xpose.msra.mxu0 0.0
    %962 = vmatprep.subr.mxu0 0.0
    %963 = vmatpush1.xpose.msra.mxu0 0.0
    %964 = vmatprep.subr.mxu0 0.0
    %965 = vmatpush1.xpose.msra.mxu0 0.0
    %966 = vmatprep.subr.mxu0 0.0
    %967 = vmatpush1.xpose.msra.mxu0 0.0
    %968 = vmatprep.subr.mxu0 0.0
    %969 = vmatpush1.xpose.msra.mxu0 0.0
    %970 = vmatprep.subr.mxu0 0.0
    %971 = vmatpush1.xpose.msra.mxu0 0.0
    %972 = vmatprep.subr.mxu0 0.0
    %973 = vmatpush1.xpose.msra.mxu0 0.0
    %974 = vmatprep.mubr.f32.mxu0 0.0
    %975 = vmatmul.mubr.f32.gmra.mrb[0].mxu0 %v906
    %v976 = vpop.f32.mrb[0].mxu0
    %v977 = vadd.f32 0.0, %v976
    %v978 = vpop.f32.mrb[0].mxu0
    %979 = vdwg.mxu0
    %v980 = vsel %vm306, %v899, -inf
    %981 = vmax.xlane.f32.xlu0 %v980
    %v982 = vpop.xlane.xlu0 %981
    %v983 = vsel %vm306, %v977, -inf
    %984 = vmax.xlane.f32.xlu0 %v983
    %v985 = vpop.xlane.xlu0 %984
    %v986 = vsub.f32 %v899, %v982
    %v987 = vsub.f32 %v977, %v985
    %v988 = vmul.f32 %v986, 1.442695
    %v989 = vpow.pop %v988
    %v990 = vmul.f32 %v987, 1.442695
    %v991 = vpow.pop %v990
    %v992 = vsel %vm306, %v989, 0.0
    %993 = vadd.xlane.f32.xlu0 %v992
    %v994 = vpop.xlane.xlu0 %993
    %v995 = vsel %vm306, %v991, 0.0
    %996 = vadd.xlane.f32.xlu0 %v995
    %v997 = vpop.xlane.xlu0 %996
    %v998 = vrcp.pop %v994
    %v999 = vrcp.pop %v997
    %v1000 = vmul.f32 %v989, %v998
    %v1001 = vmul.f32 %v991, %v999
    %1002 = vrot.lane.b32.xlu0 %v139, 56
    %v1003 = vpop.permute.xlu0 %1002
    %v1006 = vsel %vm306, %v1000, 0
    %1008 = vmatprep.subr.mxu0 0.0
    %1009 = vmatpush1.msra.mxu0 %v1003
    %1010 = vmatprep.subr.mxu0 0.0
    %1011 = vmatpush1.msra.mxu0 0.0
    %1012 = vmatprep.subr.mxu0 0.0
    %1013 = vmatpush1.msra.mxu0 0.0
    %1014 = vmatprep.subr.mxu0 0.0
    %1015 = vmatpush1.msra.mxu0 0.0
    %1016 = vmatprep.subr.mxu0 0.0
    %1017 = vmatpush1.msra.mxu0 0.0
    %1018 = vmatprep.subr.mxu0 0.0
    %1019 = vmatpush1.msra.mxu0 0.0
    %1020 = vmatprep.subr.mxu0 0.0
    %1021 = vmatpush1.msra.mxu0 0.0
    %1022 = vmatprep.subr.mxu0 0.0
    %1023 = vmatpush1.msra.mxu0 0.0
    %1024 = vmatprep.subr.mxu0 0.0
    %1025 = vmatpush1.msra.mxu0 0.0
    %1026 = vmatprep.subr.mxu0 0.0
    %1027 = vmatpush1.msra.mxu0 0.0
    %1028 = vmatprep.subr.mxu0 0.0
    %1029 = vmatpush1.msra.mxu0 0.0
    %1030 = vmatprep.subr.mxu0 0.0
    %1031 = vmatpush1.msra.mxu0 0.0
    %1032 = vmatprep.subr.mxu0 0.0
    %1033 = vmatpush1.msra.mxu0 0.0
    %1034 = vmatprep.subr.mxu0 0.0
    %1035 = vmatpush1.msra.mxu0 0.0
    %1036 = vmatprep.subr.mxu0 0.0
    %1037 = vmatpush1.msra.mxu0 0.0
    %1038 = vmatprep.subr.mxu0 0.0
    %1039 = vmatpush1.msra.mxu0 0.0
    %1040 = vmatprep.subr.mxu0 0.0
    %1041 = vmatpush1.msra.mxu0 0.0
    %1042 = vmatprep.subr.mxu0 0.0
    %1043 = vmatpush1.msra.mxu0 0.0
    %1044 = vmatprep.subr.mxu0 0.0
    %1045 = vmatpush1.msra.mxu0 0.0
    %1046 = vmatprep.subr.mxu0 0.0
    %1047 = vmatpush1.msra.mxu0 0.0
    %1048 = vmatprep.subr.mxu0 0.0
    %1049 = vmatpush1.msra.mxu0 0.0
    %1050 = vmatprep.subr.mxu0 0.0
    %1051 = vmatpush1.msra.mxu0 0.0
    %1052 = vmatprep.subr.mxu0 0.0
    %1053 = vmatpush1.msra.mxu0 0.0
    %1054 = vmatprep.subr.mxu0 0.0
    %1055 = vmatpush1.msra.mxu0 0.0
    %1056 = vmatprep.subr.mxu0 0.0
    %1057 = vmatpush1.msra.mxu0 0.0
    %1058 = vmatprep.subr.mxu0 0.0
    %1059 = vmatpush1.msra.mxu0 0.0
    %1060 = vmatprep.subr.mxu0 0.0
    %1061 = vmatpush1.msra.mxu0 0.0
    %1062 = vmatprep.subr.mxu0 0.0
    %1063 = vmatpush1.msra.mxu0 0.0
    %1064 = vmatprep.subr.mxu0 0.0
    %1065 = vmatpush1.msra.mxu0 0.0
    %1066 = vmatprep.subr.mxu0 0.0
    %1067 = vmatpush1.msra.mxu0 0.0
    %1068 = vmatprep.subr.mxu0 0.0
    %1069 = vmatpush1.msra.mxu0 0.0
    %1070 = vmatprep.subr.mxu0 0.0
    %1071 = vmatpush1.msra.mxu0 0.0
    %1072 = vmatprep.mubr.f32.mxu0 0.0
    %1073 = vmatmul.mubr.f32.gmra.mrb[0].mxu0 %v1006
    %v1074 = vpop.f32.mrb[0].mxu0
    %v1075 = vadd.f32 0.0, %v1074
    %v1076 = vpop.f32.mrb[0].mxu0
    %1077 = vdwg.mxu0
    %1078 = vrot.lane.b32.xlu0 %v144, 56
    %v1079 = vpop.permute.xlu0 %1078
    %v1082 = vsel %vm306, %v1001, 0
    %1084 = vmatprep.subr.mxu0 0.0
    %1085 = vmatpush1.msra.mxu0 %v1079
    %1086 = vmatprep.subr.mxu0 0.0
    %1087 = vmatpush1.msra.mxu0 0.0
    %1088 = vmatprep.subr.mxu0 0.0
    %1089 = vmatpush1.msra.mxu0 0.0
    %1090 = vmatprep.subr.mxu0 0.0
    %1091 = vmatpush1.msra.mxu0 0.0
    %1092 = vmatprep.subr.mxu0 0.0
    %1093 = vmatpush1.msra.mxu0 0.0
    %1094 = vmatprep.subr.mxu0 0.0
    %1095 = vmatpush1.msra.mxu0 0.0
    %1096 = vmatprep.subr.mxu0 0.0
    %1097 = vmatpush1.msra.mxu0 0.0
    %1098 = vmatprep.subr.mxu0 0.0
    %1099 = vmatpush1.msra.mxu0 0.0
    %1100 = vmatprep.subr.mxu0 0.0
    %1101 = vmatpush1.msra.mxu0 0.0
    %1102 = vmatprep.subr.mxu0 0.0
    %1103 = vmatpush1.msra.mxu0 0.0
    %1104 = vmatprep.subr.mxu0 0.0
    %1105 = vmatpush1.msra.mxu0 0.0
    %1106 = vmatprep.subr.mxu0 0.0
    %1107 = vmatpush1.msra.mxu0 0.0
    %1108 = vmatprep.subr.mxu0 0.0
    %1109 = vmatpush1.msra.mxu0 0.0
    %1110 = vmatprep.subr.mxu0 0.0
    %1111 = vmatpush1.msra.mxu0 0.0
    %1112 = vmatprep.subr.mxu0 0.0
    %1113 = vmatpush1.msra.mxu0 0.0
    %1114 = vmatprep.subr.mxu0 0.0
    %1115 = vmatpush1.msra.mxu0 0.0
    %1116 = vmatprep.subr.mxu0 0.0
    %1117 = vmatpush1.msra.mxu0 0.0
    %1118 = vmatprep.subr.mxu0 0.0
    %1119 = vmatpush1.msra.mxu0 0.0
    %1120 = vmatprep.subr.mxu0 0.0
    %1121 = vmatpush1.msra.mxu0 0.0
    %1122 = vmatprep.subr.mxu0 0.0
    %1123 = vmatpush1.msra.mxu0 0.0
    %1124 = vmatprep.subr.mxu0 0.0
    %1125 = vmatpush1.msra.mxu0 0.0
    %1126 = vmatprep.subr.mxu0 0.0
    %1127 = vmatpush1.msra.mxu0 0.0
    %1128 = vmatprep.subr.mxu0 0.0
    %1129 = vmatpush1.msra.mxu0 0.0
    %1130 = vmatprep.subr.mxu0 0.0
    %1131 = vmatpush1.msra.mxu0 0.0
    %1132 = vmatprep.subr.mxu0 0.0
    %1133 = vmatpush1.msra.mxu0 0.0
    %1134 = vmatprep.subr.mxu0 0.0
    %1135 = vmatpush1.msra.mxu0 0.0
    %1136 = vmatprep.subr.mxu0 0.0
    %1137 = vmatpush1.msra.mxu0 0.0
    %1138 = vmatprep.subr.mxu0 0.0
    %1139 = vmatpush1.msra.mxu0 0.0
    %1140 = vmatprep.subr.mxu0 0.0
    %1141 = vmatpush1.msra.mxu0 0.0
    %1142 = vmatprep.subr.mxu0 0.0
    %1143 = vmatpush1.msra.mxu0 0.0
    %1144 = vmatprep.subr.mxu0 0.0
    %1145 = vmatpush1.msra.mxu0 0.0
    %1146 = vmatprep.subr.mxu0 0.0
    %1147 = vmatpush1.msra.mxu0 0.0
    %1148 = vmatprep.mubr.f32.mxu0 0.0
    %1149 = vmatmul.mubr.f32.gmra.mrb[0].mxu0 %v1082
    %v1150 = vpop.f32.mrb[0].mxu0
    %v1151 = vadd.f32 0.0, %v1150
    %v1152 = vpop.f32.mrb[0].mxu0
    %1153 = vdwg.mxu0
    %1156 = vrot.lane.b32.xlu0 %v1075, 8
    %v1157 = vpop.permute.xlu0 %1156
    %1158 = vrot.lane.b32.xlu0 %v1151, 8
    %v1159 = vpop.permute.xlu0 %1158
    %vm1162 = vcmask 97344
    %1163 = vst.msk [vmem:[#allocation2] sm:$0xff] %vm1162, %v1157
    %1164 = vst.msk [vmem:[#allocation2 + $0x8] sm:$0xff] %vm1162, %v1159
    %1165 = vrot.lane.b32.xlu0 %v147, 116
    %v1166 = vpop.permute.xlu0 %1165
    %1167 = vrot.lane.b32.xlu0 %v139, 84
    %v1168 = vpop.permute.xlu0 %1167
    %v1169 = vsel %vm152, %v1166, 0
    %v1171 = vsel %vm152, %v1168, 0
    %1173 = vmatprep.subr.mxu0 0.0
    %1174 = vmatpush1.xpose.msra.mxu0 %v1171
    %1175 = vmatprep.subr.mxu0 0.0
    %1176 = vmatpush1.xpose.msra.mxu0 0.0
    %1177 = vmatprep.subr.mxu0 0.0
    %1178 = vmatpush1.xpose.msra.mxu0 0.0
    %1179 = vmatprep.subr.mxu0 0.0
    %1180 = vmatpush1.xpose.msra.mxu0 0.0
    %1181 = vmatprep.subr.mxu0 0.0
    %1182 = vmatpush1.xpose.msra.mxu0 0.0
    %1183 = vmatprep.subr.mxu0 0.0
    %1184 = vmatpush1.xpose.msra.mxu0 0.0
    %1185 = vmatprep.subr.mxu0 0.0
    %1186 = vmatpush1.xpose.msra.mxu0 0.0
    %1187 = vmatprep.subr.mxu0 0.0
    %1188 = vmatpush1.xpose.msra.mxu0 0.0
    %1189 = vmatprep.subr.mxu0 0.0
    %1190 = vmatpush1.xpose.msra.mxu0 0.0
    %1191 = vmatprep.subr.mxu0 0.0
    %1192 = vmatpush1.xpose.msra.mxu0 0.0
    %1193 = vmatprep.subr.mxu0 0.0
    %1194 = vmatpush1.xpose.msra.mxu0 0.0
    %1195 = vmatprep.subr.mxu0 0.0
    %1196 = vmatpush1.xpose.msra.mxu0 0.0
    %1197 = vmatprep.subr.mxu0 0.0
    %1198 = vmatpush1.xpose.msra.mxu0 0.0
    %1199 = vmatprep.subr.mxu0 0.0
    %1200 = vmatpush1.xpose.msra.mxu0 0.0
    %1201 = vmatprep.subr.mxu0 0.0
    %1202 = vmatpush1.xpose.msra.mxu0 0.0
    %1203 = vmatprep.subr.mxu0 0.0
    %1204 = vmatpush1.xpose.msra.mxu0 0.0
    %1205 = vmatprep.subr.mxu0 0.0
    %1206 = vmatpush1.xpose.msra.mxu0 0.0
    %1207 = vmatprep.subr.mxu0 0.0
    %1208 = vmatpush1.xpose.msra.mxu0 0.0
    %1209 = vmatprep.subr.mxu0 0.0
    %1210 = vmatpush1.xpose.msra.mxu0 0.0
    %1211 = vmatprep.subr.mxu0 0.0
    %1212 = vmatpush1.xpose.msra.mxu0 0.0
    %1213 = vmatprep.subr.mxu0 0.0
    %1214 = vmatpush1.xpose.msra.mxu0 0.0
    %1215 = vmatprep.subr.mxu0 0.0
    %1216 = vmatpush1.xpose.msra.mxu0 0.0
    %1217 = vmatprep.subr.mxu0 0.0
    %1218 = vmatpush1.xpose.msra.mxu0 0.0
    %1219 = vmatprep.subr.mxu0 0.0
    %1220 = vmatpush1.xpose.msra.mxu0 0.0
    %1221 = vmatprep.subr.mxu0 0.0
    %1222 = vmatpush1.xpose.msra.mxu0 0.0
    %1223 = vmatprep.subr.mxu0 0.0
    %1224 = vmatpush1.xpose.msra.mxu0 0.0
    %1225 = vmatprep.subr.mxu0 0.0
    %1226 = vmatpush1.xpose.msra.mxu0 0.0
    %1227 = vmatprep.subr.mxu0 0.0
    %1228 = vmatpush1.xpose.msra.mxu0 0.0
    %1229 = vmatprep.subr.mxu0 0.0
    %1230 = vmatpush1.xpose.msra.mxu0 0.0
    %1231 = vmatprep.subr.mxu0 0.0
    %1232 = vmatpush1.xpose.msra.mxu0 0.0
    %1233 = vmatprep.subr.mxu0 0.0
    %1234 = vmatpush1.xpose.msra.mxu0 0.0
    %1235 = vmatprep.subr.mxu0 0.0
    %1236 = vmatpush1.xpose.msra.mxu0 0.0
    %1237 = vmatprep.mubr.f32.mxu0 0.0
    %1238 = vmatmul.mubr.f32.gmra.mrb[0].mxu0 %v1169
    %v1239 = vpop.f32.mrb[0].mxu0
    %v1240 = vadd.f32 0.0, %v1239
    %v1241 = vpop.f32.mrb[0].mxu0
    %1242 = vdwg.mxu0
    %1243 = vrot.lane.b32.xlu0 %v148, 116
    %v1244 = vpop.permute.xlu0 %1243
    %1245 = vrot.lane.b32.xlu0 %v144, 84
    %v1246 = vpop.permute.xlu0 %1245
    %v1247 = vsel %vm152, %v1244, 0
    %v1249 = vsel %vm152, %v1246, 0
    %1251 = vmatprep.subr.mxu0 0.0
    %1252 = vmatpush1.xpose.msra.mxu0 %v1249
    %1253 = vmatprep.subr.mxu0 0.0
    %1254 = vmatpush1.xpose.msra.mxu0 0.0
    %1255 = vmatprep.subr.mxu0 0.0
    %1256 = vmatpush1.xpose.msra.mxu0 0.0
    %1257 = vmatprep.subr.mxu0 0.0
    %1258 = vmatpush1.xpose.msra.mxu0 0.0
    %1259 = vmatprep.subr.mxu0 0.0
    %1260 = vmatpush1.xpose.msra.mxu0 0.0
    %1261 = vmatprep.subr.mxu0 0.0
    %1262 = vmatpush1.xpose.msra.mxu0 0.0
    %1263 = vmatprep.subr.mxu0 0.0
    %1264 = vmatpush1.xpose.msra.mxu0 0.0
    %1265 = vmatprep.subr.mxu0 0.0
    %1266 = vmatpush1.xpose.msra.mxu0 0.0
    %1267 = vmatprep.subr.mxu0 0.0
    %1268 = vmatpush1.xpose.msra.mxu0 0.0
    %1269 = vmatprep.subr.mxu0 0.0
    %1270 = vmatpush1.xpose.msra.mxu0 0.0
    %1271 = vmatprep.subr.mxu0 0.0
    %1272 = vmatpush1.xpose.msra.mxu0 0.0
    %1273 = vmatprep.subr.mxu0 0.0
    %1274 = vmatpush1.xpose.msra.mxu0 0.0
    %1275 = vmatprep.subr.mxu0 0.0
    %1276 = vmatpush1.xpose.msra.mxu0 0.0
    %1277 = vmatprep.subr.mxu0 0.0
    %1278 = vmatpush1.xpose.msra.mxu0 0.0
    %1279 = vmatprep.subr.mxu0 0.0
    %1280 = vmatpush1.xpose.msra.mxu0 0.0
    %1281 = vmatprep.subr.mxu0 0.0
    %1282 = vmatpush1.xpose.msra.mxu0 0.0
    %1283 = vmatprep.subr.mxu0 0.0
    %1284 = vmatpush1.xpose.msra.mxu0 0.0
    %1285 = vmatprep.subr.mxu0 0.0
    %1286 = vmatpush1.xpose.msra.mxu0 0.0
    %1287 = vmatprep.subr.mxu0 0.0
    %1288 = vmatpush1.xpose.msra.mxu0 0.0
    %1289 = vmatprep.subr.mxu0 0.0
    %1290 = vmatpush1.xpose.msra.mxu0 0.0
    %1291 = vmatprep.subr.mxu0 0.0
    %1292 = vmatpush1.xpose.msra.mxu0 0.0
    %1293 = vmatprep.subr.mxu0 0.0
    %1294 = vmatpush1.xpose.msra.mxu0 0.0
    %1295 = vmatprep.subr.mxu0 0.0
    %1296 = vmatpush1.xpose.msra.mxu0 0.0
    %1297 = vmatprep.subr.mxu0 0.0
    %1298 = vmatpush1.xpose.msra.mxu0 0.0
    %1299 = vmatprep.subr.mxu0 0.0
    %1300 = vmatpush1.xpose.msra.mxu0 0.0
    %1301 = vmatprep.subr.mxu0 0.0
    %1302 = vmatpush1.xpose.msra.mxu0 0.0
    %1303 = vmatprep.subr.mxu0 0.0
    %1304 = vmatpush1.xpose.msra.mxu0 0.0
    %1305 = vmatprep.subr.mxu0 0.0
    %1306 = vmatpush1.xpose.msra.mxu0 0.0
    %1307 = vmatprep.subr.mxu0 0.0
    %1308 = vmatpush1.xpose.msra.mxu0 0.0
    %1309 = vmatprep.subr.mxu0 0.0
    %1310 = vmatpush1.xpose.msra.mxu0 0.0
    %1311 = vmatprep.subr.mxu0 0.0
    %1312 = vmatpush1.xpose.msra.mxu0 0.0
    %1313 = vmatprep.subr.mxu0 0.0
    %1314 = vmatpush1.xpose.msra.mxu0 0.0
    %1315 = vmatprep.mubr.f32.mxu0 0.0
    %1316 = vmatmul.mubr.f32.gmra.mrb[0].mxu0 %v1247
    %v1317 = vpop.f32.mrb[0].mxu0
    %v1318 = vadd.f32 0.0, %v1317
    %v1319 = vpop.f32.mrb[0].mxu0
    %1320 = vdwg.mxu0
    %v1321 = vsel %vm306, %v1240, -inf
    %1322 = vmax.xlane.f32.xlu0 %v1321
    %v1323 = vpop.xlane.xlu0 %1322
    %v1324 = vsel %vm306, %v1318, -inf
    %1325 = vmax.xlane.f32.xlu0 %v1324
    %v1326 = vpop.xlane.xlu0 %1325
    %v1327 = vsub.f32 %v1240, %v1323
    %v1328 = vsub.f32 %v1318, %v1326
    %v1329 = vmul.f32 %v1327, 1.442695
    %v1330 = vpow.pop %v1329
    %v1331 = vmul.f32 %v1328, 1.442695
    %v1332 = vpow.pop %v1331
    %v1333 = vsel %vm306, %v1330, 0.0
    %1334 = vadd.xlane.f32.xlu0 %v1333
    %v1335 = vpop.xlane.xlu0 %1334
    %v1336 = vsel %vm306, %v1332, 0.0
    %1337 = vadd.xlane.f32.xlu0 %v1336
    %v1338 = vpop.xlane.xlu0 %1337
    %v1339 = vrcp.pop %v1335
    %v1340 = vrcp.pop %v1338
    %v1341 = vmul.f32 %v1330, %v1339
    %v1342 = vmul.f32 %v1332, %v1340
    %1343 = vrot.lane.b32.xlu0 %v139, 52
    %v1344 = vpop.permute.xlu0 %1343
    %v1347 = vsel %vm306, %v1341, 0
    %1349 = vmatprep.subr.mxu0 0.0
    %1350 = vmatpush1.msra.mxu0 %v1344
    %1351 = vmatprep.subr.mxu0 0.0
    %1352 = vmatpush1.msra.mxu0 0.0
    %1353 = vmatprep.subr.mxu0 0.0
    %1354 = vmatpush1.msra.mxu0 0.0
    %1355 = vmatprep.subr.mxu0 0.0
    %1356 = vmatpush1.msra.mxu0 0.0
    %1357 = vmatprep.subr.mxu0 0.0
    %1358 = vmatpush1.msra.mxu0 0.0
    %1359 = vmatprep.subr.mxu0 0.0
    %1360 = vmatpush1.msra.mxu0 0.0
    %1361 = vmatprep.subr.mxu0 0.0
    %1362 = vmatpush1.msra.mxu0 0.0
    %1363 = vmatprep.subr.mxu0 0.0
    %1364 = vmatpush1.msra.mxu0 0.0
    %1365 = vmatprep.subr.mxu0 0.0
    %1366 = vmatpush1.msra.mxu0 0.0
    %1367 = vmatprep.subr.mxu0 0.0
    %1368 = vmatpush1.msra.mxu0 0.0
    %1369 = vmatprep.subr.mxu0 0.0
    %1370 = vmatpush1.msra.mxu0 0.0
    %1371 = vmatprep.subr.mxu0 0.0
    %1372 = vmatpush1.msra.mxu0 0.0
    %1373 = vmatprep.subr.mxu0 0.0
    %1374 = vmatpush1.msra.mxu0 0.0
    %1375 = vmatprep.subr.mxu0 0.0
    %1376 = vmatpush1.msra.mxu0 0.0
    %1377 = vmatprep.subr.mxu0 0.0
    %1378 = vmatpush1.msra.mxu0 0.0
    %1379 = vmatprep.subr.mxu0 0.0
    %1380 = vmatpush1.msra.mxu0 0.0
    %1381 = vmatprep.subr.mxu0 0.0
    %1382 = vmatpush1.msra.mxu0 0.0
    %1383 = vmatprep.subr.mxu0 0.0
    %1384 = vmatpush1.msra.mxu0 0.0
    %1385 = vmatprep.subr.mxu0 0.0
    %1386 = vmatpush1.msra.mxu0 0.0
    %1387 = vmatprep.subr.mxu0 0.0
    %1388 = vmatpush1.msra.mxu0 0.0
    %1389 = vmatprep.subr.mxu0 0.0
    %1390 = vmatpush1.msra.mxu0 0.0
    %1391 = vmatprep.subr.mxu0 0.0
    %1392 = vmatpush1.msra.mxu0 0.0
    %1393 = vmatprep.subr.mxu0 0.0
    %1394 = vmatpush1.msra.mxu0 0.0
    %1395 = vmatprep.subr.mxu0 0.0
    %1396 = vmatpush1.msra.mxu0 0.0
    %1397 = vmatprep.subr.mxu0 0.0
    %1398 = vmatpush1.msra.mxu0 0.0
    %1399 = vmatprep.subr.mxu0 0.0
    %1400 = vmatpush1.msra.mxu0 0.0
    %1401 = vmatprep.subr.mxu0 0.0
    %1402 = vmatpush1.msra.mxu0 0.0
    %1403 = vmatprep.subr.mxu0 0.0
    %1404 = vmatpush1.msra.mxu0 0.0
    %1405 = vmatprep.subr.mxu0 0.0
    %1406 = vmatpush1.msra.mxu0 0.0
    %1407 = vmatprep.subr.mxu0 0.0
    %1408 = vmatpush1.msra.mxu0 0.0
    %1409 = vmatprep.subr.mxu0 0.0
    %1410 = vmatpush1.msra.mxu0 0.0
    %1411 = vmatprep.subr.mxu0 0.0
    %1412 = vmatpush1.msra.mxu0 0.0
    %1413 = vmatprep.mubr.f32.mxu0 0.0
    %1414 = vmatmul.mubr.f32.gmra.mrb[0].mxu0 %v1347
    %v1415 = vpop.f32.mrb[0].mxu0
    %v1416 = vadd.f32 0.0, %v1415
    %v1417 = vpop.f32.mrb[0].mxu0
    %1418 = vdwg.mxu0
    %1419 = vrot.lane.b32.xlu0 %v144, 52
    %v1420 = vpop.permute.xlu0 %1419
    %v1423 = vsel %vm306, %v1342, 0
    %1425 = vmatprep.subr.mxu0 0.0
    %1426 = vmatpush1.msra.mxu0 %v1420
    %1427 = vmatprep.subr.mxu0 0.0
    %1428 = vmatpush1.msra.mxu0 0.0
    %1429 = vmatprep.subr.mxu0 0.0
    %1430 = vmatpush1.msra.mxu0 0.0
    %1431 = vmatprep.subr.mxu0 0.0
    %1432 = vmatpush1.msra.mxu0 0.0
    %1433 = vmatprep.subr.mxu0 0.0
    %1434 = vmatpush1.msra.mxu0 0.0
    %1435 = vmatprep.subr.mxu0 0.0
    %1436 = vmatpush1.msra.mxu0 0.0
    %1437 = vmatprep.subr.mxu0 0.0
    %1438 = vmatpush1.msra.mxu0 0.0
    %1439 = vmatprep.subr.mxu0 0.0
    %1440 = vmatpush1.msra.mxu0 0.0
    %1441 = vmatprep.subr.mxu0 0.0
    %1442 = vmatpush1.msra.mxu0 0.0
    %1443 = vmatprep.subr.mxu0 0.0
    %1444 = vmatpush1.msra.mxu0 0.0
    %1445 = vmatprep.subr.mxu0 0.0
    %1446 = vmatpush1.msra.mxu0 0.0
    %1447 = vmatprep.subr.mxu0 0.0
    %1448 = vmatpush1.msra.mxu0 0.0
    %1449 = vmatprep.subr.mxu0 0.0
    %1450 = vmatpush1.msra.mxu0 0.0
    %1451 = vmatprep.subr.mxu0 0.0
    %1452 = vmatpush1.msra.mxu0 0.0
    %1453 = vmatprep.subr.mxu0 0.0
    %1454 = vmatpush1.msra.mxu0 0.0
    %1455 = vmatprep.subr.mxu0 0.0
    %1456 = vmatpush1.msra.mxu0 0.0
    %1457 = vmatprep.subr.mxu0 0.0
    %1458 = vmatpush1.msra.mxu0 0.0
    %1459 = vmatprep.subr.mxu0 0.0
    %1460 = vmatpush1.msra.mxu0 0.0
    %1461 = vmatprep.subr.mxu0 0.0
    %1462 = vmatpush1.msra.mxu0 0.0
    %1463 = vmatprep.subr.mxu0 0.0
    %1464 = vmatpush1.msra.mxu0 0.0
    %1465 = vmatprep.subr.mxu0 0.0
    %1466 = vmatpush1.msra.mxu0 0.0
    %1467 = vmatprep.subr.mxu0 0.0
    %1468 = vmatpush1.msra.mxu0 0.0
    %1469 = vmatprep.subr.mxu0 0.0
    %1470 = vmatpush1.msra.mxu0 0.0
    %1471 = vmatprep.subr.mxu0 0.0
    %1472 = vmatpush1.msra.mxu0 0.0
    %1473 = vmatprep.subr.mxu0 0.0
    %1474 = vmatpush1.msra.mxu0 0.0
    %1475 = vmatprep.subr.mxu0 0.0
    %1476 = vmatpush1.msra.mxu0 0.0
    %1477 = vmatprep.subr.mxu0 0.0
    %1478 = vmatpush1.msra.mxu0 0.0
    %1479 = vmatprep.subr.mxu0 0.0
    %1480 = vmatpush1.msra.mxu0 0.0
    %1481 = vmatprep.subr.mxu0 0.0
    %1482 = vmatpush1.msra.mxu0 0.0
    %1483 = vmatprep.subr.mxu0 0.0
    %1484 = vmatpush1.msra.mxu0 0.0
    %1485 = vmatprep.subr.mxu0 0.0
    %1486 = vmatpush1.msra.mxu0 0.0
    %1487 = vmatprep.subr.mxu0 0.0
    %1488 = vmatpush1.msra.mxu0 0.0
    %1489 = vmatprep.mubr.f32.mxu0 0.0
    %1490 = vmatmul.mubr.f32.gmra.mrb[0].mxu0 %v1423
    %v1491 = vpop.f32.mrb[0].mxu0
    %v1492 = vadd.f32 0.0, %v1491
    %v1493 = vpop.f32.mrb[0].mxu0
    %1494 = vdwg.mxu0
    %1497 = vrot.lane.b32.xlu0 %v1416, 12
    %v1498 = vpop.permute.xlu0 %1497
    %1499 = vrot.lane.b32.xlu0 %v1492, 12
    %v1500 = vpop.permute.xlu0 %1499
    %vm1503 = vcmask 130144
    %1504 = vst.msk [vmem:[#allocation2] sm:$0xff] %vm1503, %v1498
    %1505 = vst.msk [vmem:[#allocation2 + $0x8] sm:$0xff] %vm1503, %v1500
    %1506 = vrot.lane.b32.xlu0 %v147, 112
    %v1507 = vpop.permute.xlu0 %1506
    %1508 = vrot.lane.b32.xlu0 %v139, 80
    %v1509 = vpop.permute.xlu0 %1508
    %v1510 = vsel %vm152, %v1507, 0
    %v1512 = vsel %vm152, %v1509, 0
    %1514 = vmatprep.subr.mxu0 0.0
    %1515 = vmatpush1.xpose.msra.mxu0 %v1512
    %1516 = vmatprep.subr.mxu0 0.0
    %1517 = vmatpush1.xpose.msra.mxu0 0.0
    %1518 = vmatprep.subr.mxu0 0.0
    %1519 = vmatpush1.xpose.msra.mxu0 0.0
    %1520 = vmatprep.subr.mxu0 0.0
    %1521 = vmatpush1.xpose.msra.mxu0 0.0
    %1522 = vmatprep.subr.mxu0 0.0
    %1523 = vmatpush1.xpose.msra.mxu0 0.0
    %1524 = vmatprep.subr.mxu0 0.0
    %1525 = vmatpush1.xpose.msra.mxu0 0.0
    %1526 = vmatprep.subr.mxu0 0.0
    %1527 = vmatpush1.xpose.msra.mxu0 0.0
    %1528 = vmatprep.subr.mxu0 0.0
    %1529 = vmatpush1.xpose.msra.mxu0 0.0
    %1530 = vmatprep.subr.mxu0 0.0
    %1531 = vmatpush1.xpose.msra.mxu0 0.0
    %1532 = vmatprep.subr.mxu0 0.0
    %1533 = vmatpush1.xpose.msra.mxu0 0.0
    %1534 = vmatprep.subr.mxu0 0.0
    %1535 = vmatpush1.xpose.msra.mxu0 0.0
    %1536 = vmatprep.subr.mxu0 0.0
    %1537 = vmatpush1.xpose.msra.mxu0 0.0
    %1538 = vmatprep.subr.mxu0 0.0
    %1539 = vmatpush1.xpose.msra.mxu0 0.0
    %1540 = vmatprep.subr.mxu0 0.0
    %1541 = vmatpush1.xpose.msra.mxu0 0.0
    %1542 = vmatprep.subr.mxu0 0.0
    %1543 = vmatpush1.xpose.msra.mxu0 0.0
    %1544 = vmatprep.subr.mxu0 0.0
    %1545 = vmatpush1.xpose.msra.mxu0 0.0
    %1546 = vmatprep.subr.mxu0 0.0
    %1547 = vmatpush1.xpose.msra.mxu0 0.0
    %1548 = vmatprep.subr.mxu0 0.0
    %1549 = vmatpush1.xpose.msra.mxu0 0.0
    %1550 = vmatprep.subr.mxu0 0.0
    %1551 = vmatpush1.xpose.msra.mxu0 0.0
    %1552 = vmatprep.subr.mxu0 0.0
    %1553 = vmatpush1.xpose.msra.mxu0 0.0
    %1554 = vmatprep.subr.mxu0 0.0
    %1555 = vmatpush1.xpose.msra.mxu0 0.0
    %1556 = vmatprep.subr.mxu0 0.0
    %1557 = vmatpush1.xpose.msra.mxu0 0.0
    %1558 = vmatprep.subr.mxu0 0.0
    %1559 = vmatpush1.xpose.msra.mxu0 0.0
    %1560 = vmatprep.subr.mxu0 0.0
    %1561 = vmatpush1.xpose.msra.mxu0 0.0
    %1562 = vmatprep.subr.mxu0 0.0
    %1563 = vmatpush1.xpose.msra.mxu0 0.0
    %1564 = vmatprep.subr.mxu0 0.0
    %1565 = vmatpush1.xpose.msra.mxu0 0.0
    %1566 = vmatprep.subr.mxu0 0.0
    %1567 = vmatpush1.xpose.msra.mxu0 0.0
    %1568 = vmatprep.subr.mxu0 0.0
    %1569 = vmatpush1.xpose.msra.mxu0 0.0
    %1570 = vmatprep.subr.mxu0 0.0
    %1571 = vmatpush1.xpose.msra.mxu0 0.0
    %1572 = vmatprep.subr.mxu0 0.0
    %1573 = vmatpush1.xpose.msra.mxu0 0.0
    %1574 = vmatprep.subr.mxu0 0.0
    %1575 = vmatpush1.xpose.msra.mxu0 0.0
    %1576 = vmatprep.subr.mxu0 0.0
    %1577 = vmatpush1.xpose.msra.mxu0 0.0
    %1578 = vmatprep.mubr.f32.mxu0 0.0
    %1579 = vmatmul.mubr.f32.gmra.mrb[0].mxu0 %v1510
    %v1580 = vpop.f32.mrb[0].mxu0
    %v1581 = vadd.f32 0.0, %v1580
    %v1582 = vpop.f32.mrb[0].mxu0
    %1583 = vdwg.mxu0
    %1584 = vrot.lane.b32.xlu0 %v148, 112
    %v1585 = vpop.permute.xlu0 %1584
    %1586 = vrot.lane.b32.xlu0 %v144, 80
    %v1587 = vpop.permute.xlu0 %1586
    %v1588 = vsel %vm152, %v1585, 0
    %v1590 = vsel %vm152, %v1587, 0
    %1592 = vmatprep.subr.mxu0 0.0
    %1593 = vmatpush1.xpose.msra.mxu0 %v1590
    %1594 = vmatprep.subr.mxu0 0.0
    %1595 = vmatpush1.xpose.msra.mxu0 0.0
    %1596 = vmatprep.subr.mxu0 0.0
    %1597 = vmatpush1.xpose.msra.mxu0 0.0
    %1598 = vmatprep.subr.mxu0 0.0
    %1599 = vmatpush1.xpose.msra.mxu0 0.0
    %1600 = vmatprep.subr.mxu0 0.0
    %1601 = vmatpush1.xpose.msra.mxu0 0.0
    %1602 = vmatprep.subr.mxu0 0.0
    %1603 = vmatpush1.xpose.msra.mxu0 0.0
    %1604 = vmatprep.subr.mxu0 0.0
    %1605 = vmatpush1.xpose.msra.mxu0 0.0
    %1606 = vmatprep.subr.mxu0 0.0
    %1607 = vmatpush1.xpose.msra.mxu0 0.0
    %1608 = vmatprep.subr.mxu0 0.0
    %1609 = vmatpush1.xpose.msra.mxu0 0.0
    %1610 = vmatprep.subr.mxu0 0.0
    %1611 = vmatpush1.xpose.msra.mxu0 0.0
    %1612 = vmatprep.subr.mxu0 0.0
    %1613 = vmatpush1.xpose.msra.mxu0 0.0
    %1614 = vmatprep.subr.mxu0 0.0
    %1615 = vmatpush1.xpose.msra.mxu0 0.0
    %1616 = vmatprep.subr.mxu0 0.0
    %1617 = vmatpush1.xpose.msra.mxu0 0.0
    %1618 = vmatprep.subr.mxu0 0.0
    %1619 = vmatpush1.xpose.msra.mxu0 0.0
    %1620 = vmatprep.subr.mxu0 0.0
    %1621 = vmatpush1.xpose.msra.mxu0 0.0
    %1622 = vmatprep.subr.mxu0 0.0
    %1623 = vmatpush1.xpose.msra.mxu0 0.0
    %1624 = vmatprep.subr.mxu0 0.0
    %1625 = vmatpush1.xpose.msra.mxu0 0.0
    %1626 = vmatprep.subr.mxu0 0.0
    %1627 = vmatpush1.xpose.msra.mxu0 0.0
    %1628 = vmatprep.subr.mxu0 0.0
    %1629 = vmatpush1.xpose.msra.mxu0 0.0
    %1630 = vmatprep.subr.mxu0 0.0
    %1631 = vmatpush1.xpose.msra.mxu0 0.0
    %1632 = vmatprep.subr.mxu0 0.0
    %1633 = vmatpush1.xpose.msra.mxu0 0.0
    %1634 = vmatprep.subr.mxu0 0.0
    %1635 = vmatpush1.xpose.msra.mxu0 0.0
    %1636 = vmatprep.subr.mxu0 0.0
    %1637 = vmatpush1.xpose.msra.mxu0 0.0
    %1638 = vmatprep.subr.mxu0 0.0
    %1639 = vmatpush1.xpose.msra.mxu0 0.0
    %1640 = vmatprep.subr.mxu0 0.0
    %1641 = vmatpush1.xpose.msra.mxu0 0.0
    %1642 = vmatprep.subr.mxu0 0.0
    %1643 = vmatpush1.xpose.msra.mxu0 0.0
    %1644 = vmatprep.subr.mxu0 0.0
    %1645 = vmatpush1.xpose.msra.mxu0 0.0
    %1646 = vmatprep.subr.mxu0 0.0
    %1647 = vmatpush1.xpose.msra.mxu0 0.0
    %1648 = vmatprep.subr.mxu0 0.0
    %1649 = vmatpush1.xpose.msra.mxu0 0.0
    %1650 = vmatprep.subr.mxu0 0.0
    %1651 = vmatpush1.xpose.msra.mxu0 0.0
    %1652 = vmatprep.subr.mxu0 0.0
    %1653 = vmatpush1.xpose.msra.mxu0 0.0
    %1654 = vmatprep.subr.mxu0 0.0
    %1655 = vmatpush1.xpose.msra.mxu0 0.0
    %1656 = vmatprep.mubr.f32.mxu0 0.0
    %1657 = vmatmul.mubr.f32.gmra.mrb[0].mxu0 %v1588
    %v1658 = vpop.f32.mrb[0].mxu0
    %v1659 = vadd.f32 0.0, %v1658
    %v1660 = vpop.f32.mrb[0].mxu0
    %1661 = vdwg.mxu0
    %v1662 = vsel %vm306, %v1581, -inf
    %1663 = vmax.xlane.f32.xlu0 %v1662
    %v1664 = vpop.xlane.xlu0 %1663
    %v1665 = vsel %vm306, %v1659, -inf
    %1666 = vmax.xlane.f32.xlu0 %v1665
    %v1667 = vpop.xlane.xlu0 %1666
    %v1668 = vsub.f32 %v1581, %v1664
    %v1669 = vsub.f32 %v1659, %v1667
    %v1670 = vmul.f32 %v1668, 1.442695
    %v1671 = vpow.pop %v1670
    %v1672 = vmul.f32 %v1669, 1.442695
    %v1673 = vpow.pop %v1672
    %v1674 = vsel %vm306, %v1671, 0.0
    %1675 = vadd.xlane.f32.xlu0 %v1674
    %v1676 = vpop.xlane.xlu0 %1675
    %v1677 = vsel %vm306, %v1673, 0.0
    %1678 = vadd.xlane.f32.xlu0 %v1677
    %v1679 = vpop.xlane.xlu0 %1678
    %v1680 = vrcp.pop %v1676
    %v1681 = vrcp.pop %v1679
    %v1682 = vmul.f32 %v1671, %v1680
    %v1683 = vmul.f32 %v1673, %v1681
    %1684 = vrot.lane.b32.xlu0 %v139, 48
    %v1685 = vpop.permute.xlu0 %1684
    %v1688 = vsel %vm306, %v1682, 0
    %1690 = vmatprep.subr.mxu0 0.0
    %1691 = vmatpush1.msra.mxu0 %v1685
    %1692 = vmatprep.subr.mxu0 0.0
    %1693 = vmatpush1.msra.mxu0 0.0
    %1694 = vmatprep.subr.mxu0 0.0
    %1695 = vmatpush1.msra.mxu0 0.0
    %1696 = vmatprep.subr.mxu0 0.0
    %1697 = vmatpush1.msra.mxu0 0.0
    %1698 = vmatprep.subr.mxu0 0.0
    %1699 = vmatpush1.msra.mxu0 0.0
    %1700 = vmatprep.subr.mxu0 0.0
    %1701 = vmatpush1.msra.mxu0 0.0
    %1702 = vmatprep.subr.mxu0 0.0
    %1703 = vmatpush1.msra.mxu0 0.0
    %1704 = vmatprep.subr.mxu0 0.0
    %1705 = vmatpush1.msra.mxu0 0.0
    %1706 = vmatprep.subr.mxu0 0.0
    %1707 = vmatpush1.msra.mxu0 0.0
    %1708 = vmatprep.subr.mxu0 0.0
    %1709 = vmatpush1.msra.mxu0 0.0
    %1710 = vmatprep.subr.mxu0 0.0
    %1711 = vmatpush1.msra.mxu0 0.0
    %1712 = vmatprep.subr.mxu0 0.0
    %1713 = vmatpush1.msra.mxu0 0.0
    %1714 = vmatprep.subr.mxu0 0.0
    %1715 = vmatpush1.msra.mxu0 0.0
    %1716 = vmatprep.subr.mxu0 0.0
    %1717 = vmatpush1.msra.mxu0 0.0
    %1718 = vmatprep.subr.mxu0 0.0
    %1719 = vmatpush1.msra.mxu0 0.0
    %1720 = vmatprep.subr.mxu0 0.0
    %1721 = vmatpush1.msra.mxu0 0.0
    %1722 = vmatprep.subr.mxu0 0.0
    %1723 = vmatpush1.msra.mxu0 0.0
    %1724 = vmatprep.subr.mxu0 0.0
    %1725 = vmatpush1.msra.mxu0 0.0
    %1726 = vmatprep.subr.mxu0 0.0
    %1727 = vmatpush1.msra.mxu0 0.0
    %1728 = vmatprep.subr.mxu0 0.0
    %1729 = vmatpush1.msra.mxu0 0.0
    %1730 = vmatprep.subr.mxu0 0.0
    %1731 = vmatpush1.msra.mxu0 0.0
    %1732 = vmatprep.subr.mxu0 0.0
    %1733 = vmatpush1.msra.mxu0 0.0
    %1734 = vmatprep.subr.mxu0 0.0
    %1735 = vmatpush1.msra.mxu0 0.0
    %1736 = vmatprep.subr.mxu0 0.0
    %1737 = vmatpush1.msra.mxu0 0.0
    %1738 = vmatprep.subr.mxu0 0.0
    %1739 = vmatpush1.msra.mxu0 0.0
    %1740 = vmatprep.subr.mxu0 0.0
    %1741 = vmatpush1.msra.mxu0 0.0
    %1742 = vmatprep.subr.mxu0 0.0
    %1743 = vmatpush1.msra.mxu0 0.0
    %1744 = vmatprep.subr.mxu0 0.0
    %1745 = vmatpush1.msra.mxu0 0.0
    %1746 = vmatprep.subr.mxu0 0.0
    %1747 = vmatpush1.msra.mxu0 0.0
    %1748 = vmatprep.subr.mxu0 0.0
    %1749 = vmatpush1.msra.mxu0 0.0
    %1750 = vmatprep.subr.mxu0 0.0
    %1751 = vmatpush1.msra.mxu0 0.0
    %1752 = vmatprep.subr.mxu0 0.0
    %1753 = vmatpush1.msra.mxu0 0.0
    %1754 = vmatprep.mubr.f32.mxu0 0.0
    %1755 = vmatmul.mubr.f32.gmra.mrb[0].mxu0 %v1688
    %v1756 = vpop.f32.mrb[0].mxu0
    %v1757 = vadd.f32 0.0, %v1756
    %v1758 = vpop.f32.mrb[0].mxu0
    %1759 = vdwg.mxu0
    %1760 = vrot.lane.b32.xlu0 %v144, 48
    %v1761 = vpop.permute.xlu0 %1760
    %v1764 = vsel %vm306, %v1683, 0
    %1766 = vmatprep.subr.mxu0 0.0
    %1767 = vmatpush1.msra.mxu0 %v1761
    %1768 = vmatprep.subr.mxu0 0.0
    %1769 = vmatpush1.msra.mxu0 0.0
    %1770 = vmatprep.subr.mxu0 0.0
    %1771 = vmatpush1.msra.mxu0 0.0
    %1772 = vmatprep.subr.mxu0 0.0
    %1773 = vmatpush1.msra.mxu0 0.0
    %1774 = vmatprep.subr.mxu0 0.0
    %1775 = vmatpush1.msra.mxu0 0.0
    %1776 = vmatprep.subr.mxu0 0.0
    %1777 = vmatpush1.msra.mxu0 0.0
    %1778 = vmatprep.subr.mxu0 0.0
    %1779 = vmatpush1.msra.mxu0 0.0
    %1780 = vmatprep.subr.mxu0 0.0
    %1781 = vmatpush1.msra.mxu0 0.0
    %1782 = vmatprep.subr.mxu0 0.0
    %1783 = vmatpush1.msra.mxu0 0.0
    %1784 = vmatprep.subr.mxu0 0.0
    %1785 = vmatpush1.msra.mxu0 0.0
    %1786 = vmatprep.subr.mxu0 0.0
    %1787 = vmatpush1.msra.mxu0 0.0
    %1788 = vmatprep.subr.mxu0 0.0
    %1789 = vmatpush1.msra.mxu0 0.0
    %1790 = vmatprep.subr.mxu0 0.0
    %1791 = vmatpush1.msra.mxu0 0.0
    %1792 = vmatprep.subr.mxu0 0.0
    %1793 = vmatpush1.msra.mxu0 0.0
    %1794 = vmatprep.subr.mxu0 0.0
    %1795 = vmatpush1.msra.mxu0 0.0
    %1796 = vmatprep.subr.mxu0 0.0
    %1797 = vmatpush1.msra.mxu0 0.0
    %1798 = vmatprep.subr.mxu0 0.0
    %1799 = vmatpush1.msra.mxu0 0.0
    %1800 = vmatprep.subr.mxu0 0.0
    %1801 = vmatpush1.msra.mxu0 0.0
    %1802 = vmatprep.subr.mxu0 0.0
    %1803 = vmatpush1.msra.mxu0 0.0
    %1804 = vmatprep.subr.mxu0 0.0
    %1805 = vmatpush1.msra.mxu0 0.0
    %1806 = vmatprep.subr.mxu0 0.0
    %1807 = vmatpush1.msra.mxu0 0.0
    %1808 = vmatprep.subr.mxu0 0.0
    %1809 = vmatpush1.msra.mxu0 0.0
    %1810 = vmatprep.subr.mxu0 0.0
    %1811 = vmatpush1.msra.mxu0 0.0
    %1812 = vmatprep.subr.mxu0 0.0
    %1813 = vmatpush1.msra.mxu0 0.0
    %1814 = vmatprep.subr.mxu0 0.0
    %1815 = vmatpush1.msra.mxu0 0.0
    %1816 = vmatprep.subr.mxu0 0.0
    %1817 = vmatpush1.msra.mxu0 0.0
    %1818 = vmatprep.subr.mxu0 0.0
    %1819 = vmatpush1.msra.mxu0 0.0
    %1820 = vmatprep.subr.mxu0 0.0
    %1821 = vmatpush1.msra.mxu0 0.0
    %1822 = vmatprep.subr.mxu0 0.0
    %1823 = vmatpush1.msra.mxu0 0.0
    %1824 = vmatprep.subr.mxu0 0.0
    %1825 = vmatpush1.msra.mxu0 0.0
    %1826 = vmatprep.subr.mxu0 0.0
    %1827 = vmatpush1.msra.mxu0 0.0
    %1828 = vmatprep.subr.mxu0 0.0
    %1829 = vmatpush1.msra.mxu0 0.0
    %1830 = vmatprep.mubr.f32.mxu0 0.0
    %1831 = vmatmul.mubr.f32.gmra.mrb[0].mxu0 %v1764
    %v1832 = vpop.f32.mrb[0].mxu0
    %v1833 = vadd.f32 0.0, %v1832
    %v1834 = vpop.f32.mrb[0].mxu0
    %1835 = vdwg.mxu0
    %1838 = vrot.lane.b32.xlu0 %v1757, 16
    %v1839 = vpop.permute.xlu0 %1838
    %1840 = vrot.lane.b32.xlu0 %v1833, 16
    %v1841 = vpop.permute.xlu0 %1840
    %vm1844 = vcmask 162944
    %1845 = vst.msk [vmem:[#allocation2] sm:$0xff] %vm1844, %v1839
    %1846 = vst.msk [vmem:[#allocation2 + $0x8] sm:$0xff] %vm1844, %v1841
    %1847 = vrot.lane.b32.xlu0 %v147, 108
    %v1848 = vpop.permute.xlu0 %1847
    %1849 = vrot.lane.b32.xlu0 %v139, 76
    %v1850 = vpop.permute.xlu0 %1849
    %v1851 = vsel %vm152, %v1848, 0
    %v1853 = vsel %vm152, %v1850, 0
    %1855 = vmatprep.subr.mxu0 0.0
    %1856 = vmatpush1.xpose.msra.mxu0 %v1853
    %1857 = vmatprep.subr.mxu0 0.0
    %1858 = vmatpush1.xpose.msra.mxu0 0.0
    %1859 = vmatprep.subr.mxu0 0.0
    %1860 = vmatpush1.xpose.msra.mxu0 0.0
    %1861 = vmatprep.subr.mxu0 0.0
    %1862 = vmatpush1.xpose.msra.mxu0 0.0
    %1863 = vmatprep.subr.mxu0 0.0
    %1864 = vmatpush1.xpose.msra.mxu0 0.0
    %1865 = vmatprep.subr.mxu0 0.0
    %1866 = vmatpush1.xpose.msra.mxu0 0.0
    %1867 = vmatprep.subr.mxu0 0.0
    %1868 = vmatpush1.xpose.msra.mxu0 0.0
    %1869 = vmatprep.subr.mxu0 0.0
    %1870 = vmatpush1.xpose.msra.mxu0 0.0
    %1871 = vmatprep.subr.mxu0 0.0
    %1872 = vmatpush1.xpose.msra.mxu0 0.0
    %1873 = vmatprep.subr.mxu0 0.0
    %1874 = vmatpush1.xpose.msra.mxu0 0.0
    %1875 = vmatprep.subr.mxu0 0.0
    %1876 = vmatpush1.xpose.msra.mxu0 0.0
    %1877 = vmatprep.subr.mxu0 0.0
    %1878 = vmatpush1.xpose.msra.mxu0 0.0
    %1879 = vmatprep.subr.mxu0 0.0
    %1880 = vmatpush1.xpose.msra.mxu0 0.0
    %1881 = vmatprep.subr.mxu0 0.0
    %1882 = vmatpush1.xpose.msra.mxu0 0.0
    %1883 = vmatprep.subr.mxu0 0.0
    %1884 = vmatpush1.xpose.msra.mxu0 0.0
    %1885 = vmatprep.subr.mxu0 0.0
    %1886 = vmatpush1.xpose.msra.mxu0 0.0
    %1887 = vmatprep.subr.mxu0 0.0
    %1888 = vmatpush1.xpose.msra.mxu0 0.0
    %1889 = vmatprep.subr.mxu0 0.0
    %1890 = vmatpush1.xpose.msra.mxu0 0.0
    %1891 = vmatprep.subr.mxu0 0.0
    %1892 = vmatpush1.xpose.msra.mxu0 0.0
    %1893 = vmatprep.subr.mxu0 0.0
    %1894 = vmatpush1.xpose.msra.mxu0 0.0
    %1895 = vmatprep.subr.mxu0 0.0
    %1896 = vmatpush1.xpose.msra.mxu0 0.0
    %1897 = vmatprep.subr.mxu0 0.0
    %1898 = vmatpush1.xpose.msra.mxu0 0.0
    %1899 = vmatprep.subr.mxu0 0.0
    %1900 = vmatpush1.xpose.msra.mxu0 0.0
    %1901 = vmatprep.subr.mxu0 0.0
    %1902 = vmatpush1.xpose.msra.mxu0 0.0
    %1903 = vmatprep.subr.mxu0 0.0
    %1904 = vmatpush1.xpose.msra.mxu0 0.0
    %1905 = vmatprep.subr.mxu0 0.0
    %1906 = vmatpush1.xpose.msra.mxu0 0.0
    %1907 = vmatprep.subr.mxu0 0.0
    %1908 = vmatpush1.xpose.msra.mxu0 0.0
    %1909 = vmatprep.subr.mxu0 0.0
    %1910 = vmatpush1.xpose.msra.mxu0 0.0
    %1911 = vmatprep.subr.mxu0 0.0
    %1912 = vmatpush1.xpose.msra.mxu0 0.0
    %1913 = vmatprep.subr.mxu0 0.0
    %1914 = vmatpush1.xpose.msra.mxu0 0.0
    %1915 = vmatprep.subr.mxu0 0.0
    %1916 = vmatpush1.xpose.msra.mxu0 0.0
    %1917 = vmatprep.subr.mxu0 0.0
    %1918 = vmatpush1.xpose.msra.mxu0 0.0
    %1919 = vmatprep.mubr.f32.mxu0 0.0
    %1920 = vmatmul.mubr.f32.gmra.mrb[0].mxu0 %v1851
    %v1921 = vpop.f32.mrb[0].mxu0
    %v1922 = vadd.f32 0.0, %v1921
    %v1923 = vpop.f32.mrb[0].mxu0
    %1924 = vdwg.mxu0
    %1925 = vrot.lane.b32.xlu0 %v148, 108
    %v1926 = vpop.permute.xlu0 %1925
    %1927 = vrot.lane.b32.xlu0 %v144, 76
    %v1928 = vpop.permute.xlu0 %1927
    %v1929 = vsel %vm152, %v1926, 0
    %v1931 = vsel %vm152, %v1928, 0
    %1933 = vmatprep.subr.mxu0 0.0
    %1934 = vmatpush1.xpose.msra.mxu0 %v1931
    %1935 = vmatprep.subr.mxu0 0.0
    %1936 = vmatpush1.xpose.msra.mxu0 0.0
    %1937 = vmatprep.subr.mxu0 0.0
    %1938 = vmatpush1.xpose.msra.mxu0 0.0
    %1939 = vmatprep.subr.mxu0 0.0
    %1940 = vmatpush1.xpose.msra.mxu0 0.0
    %1941 = vmatprep.subr.mxu0 0.0
    %1942 = vmatpush1.xpose.msra.mxu0 0.0
    %1943 = vmatprep.subr.mxu0 0.0
    %1944 = vmatpush1.xpose.msra.mxu0 0.0
    %1945 = vmatprep.subr.mxu0 0.0
    %1946 = vmatpush1.xpose.msra.mxu0 0.0
    %1947 = vmatprep.subr.mxu0 0.0
    %1948 = vmatpush1.xpose.msra.mxu0 0.0
    %1949 = vmatprep.subr.mxu0 0.0
    %1950 = vmatpush1.xpose.msra.mxu0 0.0
    %1951 = vmatprep.subr.mxu0 0.0
    %1952 = vmatpush1.xpose.msra.mxu0 0.0
    %1953 = vmatprep.subr.mxu0 0.0
    %1954 = vmatpush1.xpose.msra.mxu0 0.0
    %1955 = vmatprep.subr.mxu0 0.0
    %1956 = vmatpush1.xpose.msra.mxu0 0.0
    %1957 = vmatprep.subr.mxu0 0.0
    %1958 = vmatpush1.xpose.msra.mxu0 0.0
    %1959 = vmatprep.subr.mxu0 0.0
    %1960 = vmatpush1.xpose.msra.mxu0 0.0
    %1961 = vmatprep.subr.mxu0 0.0
    %1962 = vmatpush1.xpose.msra.mxu0 0.0
    %1963 = vmatprep.subr.mxu0 0.0
    %1964 = vmatpush1.xpose.msra.mxu0 0.0
    %1965 = vmatprep.subr.mxu0 0.0
    %1966 = vmatpush1.xpose.msra.mxu0 0.0
    %1967 = vmatprep.subr.mxu0 0.0
    %1968 = vmatpush1.xpose.msra.mxu0 0.0
    %1969 = vmatprep.subr.mxu0 0.0
    %1970 = vmatpush1.xpose.msra.mxu0 0.0
    %1971 = vmatprep.subr.mxu0 0.0
    %1972 = vmatpush1.xpose.msra.mxu0 0.0
    %1973 = vmatprep.subr.mxu0 0.0
    %1974 = vmatpush1.xpose.msra.mxu0 0.0
    %1975 = vmatprep.subr.mxu0 0.0
    %1976 = vmatpush1.xpose.msra.mxu0 0.0
    %1977 = vmatprep.subr.mxu0 0.0
    %1978 = vmatpush1.xpose.msra.mxu0 0.0
    %1979 = vmatprep.subr.mxu0 0.0
    %1980 = vmatpush1.xpose.msra.mxu0 0.0
    %1981 = vmatprep.subr.mxu0 0.0
    %1982 = vmatpush1.xpose.msra.mxu0 0.0
    %1983 = vmatprep.subr.mxu0 0.0
    %1984 = vmatpush1.xpose.msra.mxu0 0.0
    %1985 = vmatprep.subr.mxu0 0.0
    %1986 = vmatpush1.xpose.msra.mxu0 0.0
    %1987 = vmatprep.subr.mxu0 0.0
    %1988 = vmatpush1.xpose.msra.mxu0 0.0
    %1989 = vmatprep.subr.mxu0 0.0
    %1990 = vmatpush1.xpose.msra.mxu0 0.0
    %1991 = vmatprep.subr.mxu0 0.0
    %1992 = vmatpush1.xpose.msra.mxu0 0.0
    %1993 = vmatprep.subr.mxu0 0.0
    %1994 = vmatpush1.xpose.msra.mxu0 0.0
    %1995 = vmatprep.subr.mxu0 0.0
    %1996 = vmatpush1.xpose.msra.mxu0 0.0
    %1997 = vmatprep.mubr.f32.mxu0 0.0
    %1998 = vmatmul.mubr.f32.gmra.mrb[0].mxu0 %v1929
    %v1999 = vpop.f32.mrb[0].mxu0
    %v2000 = vadd.f32 0.0, %v1999
    %v2001 = vpop.f32.mrb[0].mxu0
    %2002 = vdwg.mxu0
    %v2003 = vsel %vm306, %v1922, -inf
    %2004 = vmax.xlane.f32.xlu0 %v2003
    %v2005 = vpop.xlane.xlu0 %2004
    %v2006 = vsel %vm306, %v2000, -inf
    %2007 = vmax.xlane.f32.xlu0 %v2006
    %v2008 = vpop.xlane.xlu0 %2007
    %v2009 = vsub.f32 %v1922, %v2005
    %v2010 = vsub.f32 %v2000, %v2008
    %v2011 = vmul.f32 %v2009, 1.442695
    %v2012 = vpow.pop %v2011
    %v2013 = vmul.f32 %v2010, 1.442695
    %v2014 = vpow.pop %v2013
    %v2015 = vsel %vm306, %v2012, 0.0
    %2016 = vadd.xlane.f32.xlu0 %v2015
    %v2017 = vpop.xlane.xlu0 %2016
    %v2018 = vsel %vm306, %v2014, 0.0
    %2019 = vadd.xlane.f32.xlu0 %v2018
    %v2020 = vpop.xlane.xlu0 %2019
    %v2021 = vrcp.pop %v2017
    %v2022 = vrcp.pop %v2020
    %v2023 = vmul.f32 %v2012, %v2021
    %v2024 = vmul.f32 %v2014, %v2022
    %2025 = vrot.lane.b32.xlu0 %v139, 44
    %v2026 = vpop.permute.xlu0 %2025
    %v2029 = vsel %vm306, %v2023, 0
    %2031 = vmatprep.subr.mxu0 0.0
    %2032 = vmatpush1.msra.mxu0 %v2026
    %2033 = vmatprep.subr.mxu0 0.0
    %2034 = vmatpush1.msra.mxu0 0.0
    %2035 = vmatprep.subr.mxu0 0.0
    %2036 = vmatpush1.msra.mxu0 0.0
    %2037 = vmatprep.subr.mxu0 0.0
    %2038 = vmatpush1.msra.mxu0 0.0
    %2039 = vmatprep.subr.mxu0 0.0
    %2040 = vmatpush1.msra.mxu0 0.0
    %2041 = vmatprep.subr.mxu0 0.0
    %2042 = vmatpush1.msra.mxu0 0.0
    %2043 = vmatprep.subr.mxu0 0.0
    %2044 = vmatpush1.msra.mxu0 0.0
    %2045 = vmatprep.subr.mxu0 0.0
    %2046 = vmatpush1.msra.mxu0 0.0
    %2047 = vmatprep.subr.mxu0 0.0
    %2048 = vmatpush1.msra.mxu0 0.0
    %2049 = vmatprep.subr.mxu0 0.0
    %2050 = vmatpush1.msra.mxu0 0.0
    %2051 = vmatprep.subr.mxu0 0.0
    %2052 = vmatpush1.msra.mxu0 0.0
    %2053 = vmatprep.subr.mxu0 0.0
    %2054 = vmatpush1.msra.mxu0 0.0
    %2055 = vmatprep.subr.mxu0 0.0
    %2056 = vmatpush1.msra.mxu0 0.0
    %2057 = vmatprep.subr.mxu0 0.0
    %2058 = vmatpush1.msra.mxu0 0.0
    %2059 = vmatprep.subr.mxu0 0.0
    %2060 = vmatpush1.msra.mxu0 0.0
    %2061 = vmatprep.subr.mxu0 0.0
    %2062 = vmatpush1.msra.mxu0 0.0
    %2063 = vmatprep.subr.mxu0 0.0
    %2064 = vmatpush1.msra.mxu0 0.0
    %2065 = vmatprep.subr.mxu0 0.0
    %2066 = vmatpush1.msra.mxu0 0.0
    %2067 = vmatprep.subr.mxu0 0.0
    %2068 = vmatpush1.msra.mxu0 0.0
    %2069 = vmatprep.subr.mxu0 0.0
    %2070 = vmatpush1.msra.mxu0 0.0
    %2071 = vmatprep.subr.mxu0 0.0
    %2072 = vmatpush1.msra.mxu0 0.0
    %2073 = vmatprep.subr.mxu0 0.0
    %2074 = vmatpush1.msra.mxu0 0.0
    %2075 = vmatprep.subr.mxu0 0.0
    %2076 = vmatpush1.msra.mxu0 0.0
    %2077 = vmatprep.subr.mxu0 0.0
    %2078 = vmatpush1.msra.mxu0 0.0
    %2079 = vmatprep.subr.mxu0 0.0
    %2080 = vmatpush1.msra.mxu0 0.0
    %2081 = vmatprep.subr.mxu0 0.0
    %2082 = vmatpush1.msra.mxu0 0.0
    %2083 = vmatprep.subr.mxu0 0.0
    %2084 = vmatpush1.msra.mxu0 0.0
    %2085 = vmatprep.subr.mxu0 0.0
    %2086 = vmatpush1.msra.mxu0 0.0
    %2087 = vmatprep.subr.mxu0 0.0
    %2088 = vmatpush1.msra.mxu0 0.0
    %2089 = vmatprep.subr.mxu0 0.0
    %2090 = vmatpush1.msra.mxu0 0.0
    %2091 = vmatprep.subr.mxu0 0.0
    %2092 = vmatpush1.msra.mxu0 0.0
    %2093 = vmatprep.subr.mxu0 0.0
    %2094 = vmatpush1.msra.mxu0 0.0
    %2095 = vmatprep.mubr.f32.mxu0 0.0
    %2096 = vmatmul.mubr.f32.gmra.mrb[0].mxu0 %v2029
    %v2097 = vpop.f32.mrb[0].mxu0
    %v2098 = vadd.f32 0.0, %v2097
    %v2099 = vpop.f32.mrb[0].mxu0
    %2100 = vdwg.mxu0
    %2101 = vrot.lane.b32.xlu0 %v144, 44
    %v2102 = vpop.permute.xlu0 %2101
    %v2105 = vsel %vm306, %v2024, 0
    %2107 = vmatprep.subr.mxu0 0.0
    %2108 = vmatpush1.msra.mxu0 %v2102
    %2109 = vmatprep.subr.mxu0 0.0
    %2110 = vmatpush1.msra.mxu0 0.0
    %2111 = vmatprep.subr.mxu0 0.0
    %2112 = vmatpush1.msra.mxu0 0.0
    %2113 = vmatprep.subr.mxu0 0.0
    %2114 = vmatpush1.msra.mxu0 0.0
    %2115 = vmatprep.subr.mxu0 0.0
    %2116 = vmatpush1.msra.mxu0 0.0
    %2117 = vmatprep.subr.mxu0 0.0
    %2118 = vmatpush1.msra.mxu0 0.0
    %2119 = vmatprep.subr.mxu0 0.0
    %2120 = vmatpush1.msra.mxu0 0.0
    %2121 = vmatprep.subr.mxu0 0.0
    %2122 = vmatpush1.msra.mxu0 0.0
    %2123 = vmatprep.subr.mxu0 0.0
    %2124 = vmatpush1.msra.mxu0 0.0
    %2125 = vmatprep.subr.mxu0 0.0
    %2126 = vmatpush1.msra.mxu0 0.0
    %2127 = vmatprep.subr.mxu0 0.0
    %2128 = vmatpush1.msra.mxu0 0.0
    %2129 = vmatprep.subr.mxu0 0.0
    %2130 = vmatpush1.msra.mxu0 0.0
    %2131 = vmatprep.subr.mxu0 0.0
    %2132 = vmatpush1.msra.mxu0 0.0
    %2133 = vmatprep.subr.mxu0 0.0
    %2134 = vmatpush1.msra.mxu0 0.0
    %2135 = vmatprep.subr.mxu0 0.0
    %2136 = vmatpush1.msra.mxu0 0.0
    %2137 = vmatprep.subr.mxu0 0.0
    %2138 = vmatpush1.msra.mxu0 0.0
    %2139 = vmatprep.subr.mxu0 0.0
    %2140 = vmatpush1.msra.mxu0 0.0
    %2141 = vmatprep.subr.mxu0 0.0
    %2142 = vmatpush1.msra.mxu0 0.0
    %2143 = vmatprep.subr.mxu0 0.0
    %2144 = vmatpush1.msra.mxu0 0.0
    %2145 = vmatprep.subr.mxu0 0.0
    %2146 = vmatpush1.msra.mxu0 0.0
    %2147 = vmatprep.subr.mxu0 0.0
    %2148 = vmatpush1.msra.mxu0 0.0
    %2149 = vmatprep.subr.mxu0 0.0
    %2150 = vmatpush1.msra.mxu0 0.0
    %2151 = vmatprep.subr.mxu0 0.0
    %2152 = vmatpush1.msra.mxu0 0.0
    %2153 = vmatprep.subr.mxu0 0.0
    %2154 = vmatpush1.msra.mxu0 0.0
    %2155 = vmatprep.subr.mxu0 0.0
    %2156 = vmatpush1.msra.mxu0 0.0
    %2157 = vmatprep.subr.mxu0 0.0
    %2158 = vmatpush1.msra.mxu0 0.0
    %2159 = vmatprep.subr.mxu0 0.0
    %2160 = vmatpush1.msra.mxu0 0.0
    %2161 = vmatprep.subr.mxu0 0.0
    %2162 = vmatpush1.msra.mxu0 0.0
    %2163 = vmatprep.subr.mxu0 0.0
    %2164 = vmatpush1.msra.mxu0 0.0
    %2165 = vmatprep.subr.mxu0 0.0
    %2166 = vmatpush1.msra.mxu0 0.0
    %2167 = vmatprep.subr.mxu0 0.0
    %2168 = vmatpush1.msra.mxu0 0.0
    %2169 = vmatprep.subr.mxu0 0.0
    %2170 = vmatpush1.msra.mxu0 0.0
    %2171 = vmatprep.mubr.f32.mxu0 0.0
    %2172 = vmatmul.mubr.f32.gmra.mrb[0].mxu0 %v2105
    %v2173 = vpop.f32.mrb[0].mxu0
    %v2174 = vadd.f32 0.0, %v2173
    %v2175 = vpop.f32.mrb[0].mxu0
    %2176 = vdwg.mxu0
    %2179 = vrot.lane.b32.xlu0 %v2098, 20
    %v2180 = vpop.permute.xlu0 %2179
    %2181 = vrot.lane.b32.xlu0 %v2174, 20
    %v2182 = vpop.permute.xlu0 %2181
    %vm2185 = vcmask 195744
    %2186 = vst.msk [vmem:[#allocation2] sm:$0xff] %vm2185, %v2180
    %2187 = vst.msk [vmem:[#allocation2 + $0x8] sm:$0xff] %vm2185, %v2182
    %2188 = vrot.lane.b32.xlu0 %v147, 104
    %v2189 = vpop.permute.xlu0 %2188
    %2190 = vrot.lane.b32.xlu0 %v139, 72
    %v2191 = vpop.permute.xlu0 %2190
    %v2192 = vsel %vm152, %v2189, 0
    %v2194 = vsel %vm152, %v2191, 0
    %2196 = vmatprep.subr.mxu0 0.0
    %2197 = vmatpush1.xpose.msra.mxu0 %v2194
    %2198 = vmatprep.subr.mxu0 0.0
    %2199 = vmatpush1.xpose.msra.mxu0 0.0
    %2200 = vmatprep.subr.mxu0 0.0
    %2201 = vmatpush1.xpose.msra.mxu0 0.0
    %2202 = vmatprep.subr.mxu0 0.0
    %2203 = vmatpush1.xpose.msra.mxu0 0.0
    %2204 = vmatprep.subr.mxu0 0.0
    %2205 = vmatpush1.xpose.msra.mxu0 0.0
    %2206 = vmatprep.subr.mxu0 0.0
    %2207 = vmatpush1.xpose.msra.mxu0 0.0
    %2208 = vmatprep.subr.mxu0 0.0
    %2209 = vmatpush1.xpose.msra.mxu0 0.0
    %2210 = vmatprep.subr.mxu0 0.0
    %2211 = vmatpush1.xpose.msra.mxu0 0.0
    %2212 = vmatprep.subr.mxu0 0.0
    %2213 = vmatpush1.xpose.msra.mxu0 0.0
    %2214 = vmatprep.subr.mxu0 0.0
    %2215 = vmatpush1.xpose.msra.mxu0 0.0
    %2216 = vmatprep.subr.mxu0 0.0
    %2217 = vmatpush1.xpose.msra.mxu0 0.0
    %2218 = vmatprep.subr.mxu0 0.0
    %2219 = vmatpush1.xpose.msra.mxu0 0.0
    %2220 = vmatprep.subr.mxu0 0.0
    %2221 = vmatpush1.xpose.msra.mxu0 0.0
    %2222 = vmatprep.subr.mxu0 0.0
    %2223 = vmatpush1.xpose.msra.mxu0 0.0
    %2224 = vmatprep.subr.mxu0 0.0
    %2225 = vmatpush1.xpose.msra.mxu0 0.0
    %2226 = vmatprep.subr.mxu0 0.0
    %2227 = vmatpush1.xpose.msra.mxu0 0.0
    %2228 = vmatprep.subr.mxu0 0.0
    %2229 = vmatpush1.xpose.msra.mxu0 0.0
    %2230 = vmatprep.subr.mxu0 0.0
    %2231 = vmatpush1.xpose.msra.mxu0 0.0
    %2232 = vmatprep.subr.mxu0 0.0
    %2233 = vmatpush1.xpose.msra.mxu0 0.0
    %2234 = vmatprep.subr.mxu0 0.0
    %2235 = vmatpush1.xpose.msra.mxu0 0.0
    %2236 = vmatprep.subr.mxu0 0.0
    %2237 = vmatpush1.xpose.msra.mxu0 0.0
    %2238 = vmatprep.subr.mxu0 0.0
    %2239 = vmatpush1.xpose.msra.mxu0 0.0
    %2240 = vmatprep.subr.mxu0 0.0
    %2241 = vmatpush1.xpose.msra.mxu0 0.0
    %2242 = vmatprep.subr.mxu0 0.0
    %2243 = vmatpush1.xpose.msra.mxu0 0.0
    %2244 = vmatprep.subr.mxu0 0.0
    %2245 = vmatpush1.xpose.msra.mxu0 0.0
    %2246 = vmatprep.subr.mxu0 0.0
    %2247 = vmatpush1.xpose.msra.mxu0 0.0
    %2248 = vmatprep.subr.mxu0 0.0
    %2249 = vmatpush1.xpose.msra.mxu0 0.0
    %2250 = vmatprep.subr.mxu0 0.0
    %2251 = vmatpush1.xpose.msra.mxu0 0.0
    %2252 = vmatprep.subr.mxu0 0.0
    %2253 = vmatpush1.xpose.msra.mxu0 0.0
    %2254 = vmatprep.subr.mxu0 0.0
    %2255 = vmatpush1.xpose.msra.mxu0 0.0
    %2256 = vmatprep.subr.mxu0 0.0
    %2257 = vmatpush1.xpose.msra.mxu0 0.0
    %2258 = vmatprep.subr.mxu0 0.0
    %2259 = vmatpush1.xpose.msra.mxu0 0.0
    %2260 = vmatprep.mubr.f32.mxu0 0.0
    %2261 = vmatmul.mubr.f32.gmra.mrb[0].mxu0 %v2192
    %v2262 = vpop.f32.mrb[0].mxu0
    %v2263 = vadd.f32 0.0, %v2262
    %v2264 = vpop.f32.mrb[0].mxu0
    %2265 = vdwg.mxu0
    %2266 = vrot.lane.b32.xlu0 %v148, 104
    %v2267 = vpop.permute.xlu0 %2266
    %2268 = vrot.lane.b32.xlu0 %v144, 72
    %v2269 = vpop.permute.xlu0 %2268
    %v2270 = vsel %vm152, %v2267, 0
    %v2272 = vsel %vm152, %v2269, 0
    %2274 = vmatprep.subr.mxu0 0.0
    %2275 = vmatpush1.xpose.msra.mxu0 %v2272
    %2276 = vmatprep.subr.mxu0 0.0
    %2277 = vmatpush1.xpose.msra.mxu0 0.0
    %2278 = vmatprep.subr.mxu0 0.0
    %2279 = vmatpush1.xpose.msra.mxu0 0.0
    %2280 = vmatprep.subr.mxu0 0.0
    %2281 = vmatpush1.xpose.msra.mxu0 0.0
    %2282 = vmatprep.subr.mxu0 0.0
    %2283 = vmatpush1.xpose.msra.mxu0 0.0
    %2284 = vmatprep.subr.mxu0 0.0
    %2285 = vmatpush1.xpose.msra.mxu0 0.0
    %2286 = vmatprep.subr.mxu0 0.0
    %2287 = vmatpush1.xpose.msra.mxu0 0.0
    %2288 = vmatprep.subr.mxu0 0.0
    %2289 = vmatpush1.xpose.msra.mxu0 0.0
    %2290 = vmatprep.subr.mxu0 0.0
    %2291 = vmatpush1.xpose.msra.mxu0 0.0
    %2292 = vmatprep.subr.mxu0 0.0
    %2293 = vmatpush1.xpose.msra.mxu0 0.0
    %2294 = vmatprep.subr.mxu0 0.0
    %2295 = vmatpush1.xpose.msra.mxu0 0.0
    %2296 = vmatprep.subr.mxu0 0.0
    %2297 = vmatpush1.xpose.msra.mxu0 0.0
    %2298 = vmatprep.subr.mxu0 0.0
    %2299 = vmatpush1.xpose.msra.mxu0 0.0
    %2300 = vmatprep.subr.mxu0 0.0
    %2301 = vmatpush1.xpose.msra.mxu0 0.0
    %2302 = vmatprep.subr.mxu0 0.0
    %2303 = vmatpush1.xpose.msra.mxu0 0.0
    %2304 = vmatprep.subr.mxu0 0.0
    %2305 = vmatpush1.xpose.msra.mxu0 0.0
    %2306 = vmatprep.subr.mxu0 0.0
    %2307 = vmatpush1.xpose.msra.mxu0 0.0
    %2308 = vmatprep.subr.mxu0 0.0
    %2309 = vmatpush1.xpose.msra.mxu0 0.0
    %2310 = vmatprep.subr.mxu0 0.0
    %2311 = vmatpush1.xpose.msra.mxu0 0.0
    %2312 = vmatprep.subr.mxu0 0.0
    %2313 = vmatpush1.xpose.msra.mxu0 0.0
    %2314 = vmatprep.subr.mxu0 0.0
    %2315 = vmatpush1.xpose.msra.mxu0 0.0
    %2316 = vmatprep.subr.mxu0 0.0
    %2317 = vmatpush1.xpose.msra.mxu0 0.0
    %2318 = vmatprep.subr.mxu0 0.0
    %2319 = vmatpush1.xpose.msra.mxu0 0.0
    %2320 = vmatprep.subr.mxu0 0.0
    %2321 = vmatpush1.xpose.msra.mxu0 0.0
    %2322 = vmatprep.subr.mxu0 0.0
    %2323 = vmatpush1.xpose.msra.mxu0 0.0
    %2324 = vmatprep.subr.mxu0 0.0
    %2325 = vmatpush1.xpose.msra.mxu0 0.0
    %2326 = vmatprep.subr.mxu0 0.0
    %2327 = vmatpush1.xpose.msra.mxu0 0.0
    %2328 = vmatprep.subr.mxu0 0.0
    %2329 = vmatpush1.xpose.msra.mxu0 0.0
    %2330 = vmatprep.subr.mxu0 0.0
    %2331 = vmatpush1.xpose.msra.mxu0 0.0
    %2332 = vmatprep.subr.mxu0 0.0
    %2333 = vmatpush1.xpose.msra.mxu0 0.0
    %2334 = vmatprep.subr.mxu0 0.0
    %2335 = vmatpush1.xpose.msra.mxu0 0.0
    %2336 = vmatprep.subr.mxu0 0.0
    %2337 = vmatpush1.xpose.msra.mxu0 0.0
    %2338 = vmatprep.mubr.f32.mxu0 0.0
    %2339 = vmatmul.mubr.f32.gmra.mrb[0].mxu0 %v2270
    %v2340 = vpop.f32.mrb[0].mxu0
    %v2341 = vadd.f32 0.0, %v2340
    %v2342 = vpop.f32.mrb[0].mxu0
    %2343 = vdwg.mxu0
    %v2344 = vsel %vm306, %v2263, -inf
    %2345 = vmax.xlane.f32.xlu0 %v2344
    %v2346 = vpop.xlane.xlu0 %2345
    %v2347 = vsel %vm306, %v2341, -inf
    %2348 = vmax.xlane.f32.xlu0 %v2347
    %v2349 = vpop.xlane.xlu0 %2348
    %v2350 = vsub.f32 %v2263, %v2346
    %v2351 = vsub.f32 %v2341, %v2349
    %v2352 = vmul.f32 %v2350, 1.442695
    %v2353 = vpow.pop %v2352
    %v2354 = vmul.f32 %v2351, 1.442695
    %v2355 = vpow.pop %v2354
    %v2356 = vsel %vm306, %v2353, 0.0
    %2357 = vadd.xlane.f32.xlu0 %v2356
    %v2358 = vpop.xlane.xlu0 %2357
    %v2359 = vsel %vm306, %v2355, 0.0
    %2360 = vadd.xlane.f32.xlu0 %v2359
    %v2361 = vpop.xlane.xlu0 %2360
    %v2362 = vrcp.pop %v2358
    %v2363 = vrcp.pop %v2361
    %v2364 = vmul.f32 %v2353, %v2362
    %v2365 = vmul.f32 %v2355, %v2363
    %2366 = vrot.lane.b32.xlu0 %v139, 40
    %v2367 = vpop.permute.xlu0 %2366
    %v2370 = vsel %vm306, %v2364, 0
    %2372 = vmatprep.subr.mxu0 0.0
    %2373 = vmatpush1.msra.mxu0 %v2367
    %2374 = vmatprep.subr.mxu0 0.0
    %2375 = vmatpush1.msra.mxu0 0.0
    %2376 = vmatprep.subr.mxu0 0.0
    %2377 = vmatpush1.msra.mxu0 0.0
    %2378 = vmatprep.subr.mxu0 0.0
    %2379 = vmatpush1.msra.mxu0 0.0
    %2380 = vmatprep.subr.mxu0 0.0
    %2381 = vmatpush1.msra.mxu0 0.0
    %2382 = vmatprep.subr.mxu0 0.0
    %2383 = vmatpush1.msra.mxu0 0.0
    %2384 = vmatprep.subr.mxu0 0.0
    %2385 = vmatpush1.msra.mxu0 0.0
    %2386 = vmatprep.subr.mxu0 0.0
    %2387 = vmatpush1.msra.mxu0 0.0
    %2388 = vmatprep.subr.mxu0 0.0
    %2389 = vmatpush1.msra.mxu0 0.0
    %2390 = vmatprep.subr.mxu0 0.0
    %2391 = vmatpush1.msra.mxu0 0.0
    %2392 = vmatprep.subr.mxu0 0.0
    %2393 = vmatpush1.msra.mxu0 0.0
    %2394 = vmatprep.subr.mxu0 0.0
    %2395 = vmatpush1.msra.mxu0 0.0
    %2396 = vmatprep.subr.mxu0 0.0
    %2397 = vmatpush1.msra.mxu0 0.0
    %2398 = vmatprep.subr.mxu0 0.0
    %2399 = vmatpush1.msra.mxu0 0.0
    %2400 = vmatprep.subr.mxu0 0.0
    %2401 = vmatpush1.msra.mxu0 0.0
    %2402 = vmatprep.subr.mxu0 0.0
    %2403 = vmatpush1.msra.mxu0 0.0
    %2404 = vmatprep.subr.mxu0 0.0
    %2405 = vmatpush1.msra.mxu0 0.0
    %2406 = vmatprep.subr.mxu0 0.0
    %2407 = vmatpush1.msra.mxu0 0.0
    %2408 = vmatprep.subr.mxu0 0.0
    %2409 = vmatpush1.msra.mxu0 0.0
    %2410 = vmatprep.subr.mxu0 0.0
    %2411 = vmatpush1.msra.mxu0 0.0
    %2412 = vmatprep.subr.mxu0 0.0
    %2413 = vmatpush1.msra.mxu0 0.0
    %2414 = vmatprep.subr.mxu0 0.0
    %2415 = vmatpush1.msra.mxu0 0.0
    %2416 = vmatprep.subr.mxu0 0.0
    %2417 = vmatpush1.msra.mxu0 0.0
    %2418 = vmatprep.subr.mxu0 0.0
    %2419 = vmatpush1.msra.mxu0 0.0
    %2420 = vmatprep.subr.mxu0 0.0
    %2421 = vmatpush1.msra.mxu0 0.0
    %2422 = vmatprep.subr.mxu0 0.0
    %2423 = vmatpush1.msra.mxu0 0.0
    %2424 = vmatprep.subr.mxu0 0.0
    %2425 = vmatpush1.msra.mxu0 0.0
    %2426 = vmatprep.subr.mxu0 0.0
    %2427 = vmatpush1.msra.mxu0 0.0
    %2428 = vmatprep.subr.mxu0 0.0
    %2429 = vmatpush1.msra.mxu0 0.0
    %2430 = vmatprep.subr.mxu0 0.0
    %2431 = vmatpush1.msra.mxu0 0.0
    %2432 = vmatprep.subr.mxu0 0.0
    %2433 = vmatpush1.msra.mxu0 0.0
    %2434 = vmatprep.subr.mxu0 0.0
    %2435 = vmatpush1.msra.mxu0 0.0
    %2436 = vmatprep.mubr.f32.mxu0 0.0
    %2437 = vmatmul.mubr.f32.gmra.mrb[0].mxu0 %v2370
    %v2438 = vpop.f32.mrb[0].mxu0
    %v2439 = vadd.f32 0.0, %v2438
    %v2440 = vpop.f32.mrb[0].mxu0
    %2441 = vdwg.mxu0
    %2442 = vrot.lane.b32.xlu0 %v144, 40
    %v2443 = vpop.permute.xlu0 %2442
    %v2446 = vsel %vm306, %v2365, 0
    %2448 = vmatprep.subr.mxu0 0.0
    %2449 = vmatpush1.msra.mxu0 %v2443
    %2450 = vmatprep.subr.mxu0 0.0
    %2451 = vmatpush1.msra.mxu0 0.0
    %2452 = vmatprep.subr.mxu0 0.0
    %2453 = vmatpush1.msra.mxu0 0.0
    %2454 = vmatprep.subr.mxu0 0.0
    %2455 = vmatpush1.msra.mxu0 0.0
    %2456 = vmatprep.subr.mxu0 0.0
    %2457 = vmatpush1.msra.mxu0 0.0
    %2458 = vmatprep.subr.mxu0 0.0
    %2459 = vmatpush1.msra.mxu0 0.0
    %2460 = vmatprep.subr.mxu0 0.0
    %2461 = vmatpush1.msra.mxu0 0.0
    %2462 = vmatprep.subr.mxu0 0.0
    %2463 = vmatpush1.msra.mxu0 0.0
    %2464 = vmatprep.subr.mxu0 0.0
    %2465 = vmatpush1.msra.mxu0 0.0
    %2466 = vmatprep.subr.mxu0 0.0
    %2467 = vmatpush1.msra.mxu0 0.0
    %2468 = vmatprep.subr.mxu0 0.0
    %2469 = vmatpush1.msra.mxu0 0.0
    %2470 = vmatprep.subr.mxu0 0.0
    %2471 = vmatpush1.msra.mxu0 0.0
    %2472 = vmatprep.subr.mxu0 0.0
    %2473 = vmatpush1.msra.mxu0 0.0
    %2474 = vmatprep.subr.mxu0 0.0
    %2475 = vmatpush1.msra.mxu0 0.0
    %2476 = vmatprep.subr.mxu0 0.0
    %2477 = vmatpush1.msra.mxu0 0.0
    %2478 = vmatprep.subr.mxu0 0.0
    %2479 = vmatpush1.msra.mxu0 0.0
    %2480 = vmatprep.subr.mxu0 0.0
    %2481 = vmatpush1.msra.mxu0 0.0
    %2482 = vmatprep.subr.mxu0 0.0
    %2483 = vmatpush1.msra.mxu0 0.0
    %2484 = vmatprep.subr.mxu0 0.0
    %2485 = vmatpush1.msra.mxu0 0.0
    %2486 = vmatprep.subr.mxu0 0.0
    %2487 = vmatpush1.msra.mxu0 0.0
    %2488 = vmatprep.subr.mxu0 0.0
    %2489 = vmatpush1.msra.mxu0 0.0
    %2490 = vmatprep.subr.mxu0 0.0
    %2491 = vmatpush1.msra.mxu0 0.0
    %2492 = vmatprep.subr.mxu0 0.0
    %2493 = vmatpush1.msra.mxu0 0.0
    %2494 = vmatprep.subr.mxu0 0.0
    %2495 = vmatpush1.msra.mxu0 0.0
    %2496 = vmatprep.subr.mxu0 0.0
    %2497 = vmatpush1.msra.mxu0 0.0
    %2498 = vmatprep.subr.mxu0 0.0
    %2499 = vmatpush1.msra.mxu0 0.0
    %2500 = vmatprep.subr.mxu0 0.0
    %2501 = vmatpush1.msra.mxu0 0.0
    %2502 = vmatprep.subr.mxu0 0.0
    %2503 = vmatpush1.msra.mxu0 0.0
    %2504 = vmatprep.subr.mxu0 0.0
    %2505 = vmatpush1.msra.mxu0 0.0
    %2506 = vmatprep.subr.mxu0 0.0
    %2507 = vmatpush1.msra.mxu0 0.0
    %2508 = vmatprep.subr.mxu0 0.0
    %2509 = vmatpush1.msra.mxu0 0.0
    %2510 = vmatprep.subr.mxu0 0.0
    %2511 = vmatpush1.msra.mxu0 0.0
    %2512 = vmatprep.mubr.f32.mxu0 0.0
    %2513 = vmatmul.mubr.f32.gmra.mrb[0].mxu0 %v2446
    %v2514 = vpop.f32.mrb[0].mxu0
    %v2515 = vadd.f32 0.0, %v2514
    %v2516 = vpop.f32.mrb[0].mxu0
    %2517 = vdwg.mxu0
    %2520 = vrot.lane.b32.xlu0 %v2439, 24
    %v2521 = vpop.permute.xlu0 %2520
    %2522 = vrot.lane.b32.xlu0 %v2515, 24
    %v2523 = vpop.permute.xlu0 %2522
    %vm2526 = vcmask 228544
    %2527 = vst.msk [vmem:[#allocation2] sm:$0xff] %vm2526, %v2521
    %2528 = vst.msk [vmem:[#allocation2 + $0x8] sm:$0xff] %vm2526, %v2523
    %2529 = vrot.lane.b32.xlu0 %v147, 100
    %v2530 = vpop.permute.xlu0 %2529
    %2531 = vrot.lane.b32.xlu0 %v139, 68
    %v2532 = vpop.permute.xlu0 %2531
    %v2533 = vsel %vm152, %v2530, 0
    %v2535 = vsel %vm152, %v2532, 0
    %2537 = vmatprep.subr.mxu0 0.0
    %2538 = vmatpush1.xpose.msra.mxu0 %v2535
    %2539 = vmatprep.subr.mxu0 0.0
    %2540 = vmatpush1.xpose.msra.mxu0 0.0
    %2541 = vmatprep.subr.mxu0 0.0
    %2542 = vmatpush1.xpose.msra.mxu0 0.0
    %2543 = vmatprep.subr.mxu0 0.0
    %2544 = vmatpush1.xpose.msra.mxu0 0.0
    %2545 = vmatprep.subr.mxu0 0.0
    %2546 = vmatpush1.xpose.msra.mxu0 0.0
    %2547 = vmatprep.subr.mxu0 0.0
    %2548 = vmatpush1.xpose.msra.mxu0 0.0
    %2549 = vmatprep.subr.mxu0 0.0
    %2550 = vmatpush1.xpose.msra.mxu0 0.0
    %2551 = vmatprep.subr.mxu0 0.0
    %2552 = vmatpush1.xpose.msra.mxu0 0.0
    %2553 = vmatprep.subr.mxu0 0.0
    %2554 = vmatpush1.xpose.msra.mxu0 0.0
    %2555 = vmatprep.subr.mxu0 0.0
    %2556 = vmatpush1.xpose.msra.mxu0 0.0
    %2557 = vmatprep.subr.mxu0 0.0
    %2558 = vmatpush1.xpose.msra.mxu0 0.0
    %2559 = vmatprep.subr.mxu0 0.0
    %2560 = vmatpush1.xpose.msra.mxu0 0.0
    %2561 = vmatprep.subr.mxu0 0.0
    %2562 = vmatpush1.xpose.msra.mxu0 0.0
    %2563 = vmatprep.subr.mxu0 0.0
    %2564 = vmatpush1.xpose.msra.mxu0 0.0
    %2565 = vmatprep.subr.mxu0 0.0
    %2566 = vmatpush1.xpose.msra.mxu0 0.0
    %2567 = vmatprep.subr.mxu0 0.0
    %2568 = vmatpush1.xpose.msra.mxu0 0.0
    %2569 = vmatprep.subr.mxu0 0.0
    %2570 = vmatpush1.xpose.msra.mxu0 0.0
    %2571 = vmatprep.subr.mxu0 0.0
    %2572 = vmatpush1.xpose.msra.mxu0 0.0
    %2573 = vmatprep.subr.mxu0 0.0
    %2574 = vmatpush1.xpose.msra.mxu0 0.0
    %2575 = vmatprep.subr.mxu0 0.0
    %2576 = vmatpush1.xpose.msra.mxu0 0.0
    %2577 = vmatprep.subr.mxu0 0.0
    %2578 = vmatpush1.xpose.msra.mxu0 0.0
    %2579 = vmatprep.subr.mxu0 0.0
    %2580 = vmatpush1.xpose.msra.mxu0 0.0
    %2581 = vmatprep.subr.mxu0 0.0
    %2582 = vmatpush1.xpose.msra.mxu0 0.0
    %2583 = vmatprep.subr.mxu0 0.0
    %2584 = vmatpush1.xpose.msra.mxu0 0.0
    %2585 = vmatprep.subr.mxu0 0.0
    %2586 = vmatpush1.xpose.msra.mxu0 0.0
    %2587 = vmatprep.subr.mxu0 0.0
    %2588 = vmatpush1.xpose.msra.mxu0 0.0
    %2589 = vmatprep.subr.mxu0 0.0
    %2590 = vmatpush1.xpose.msra.mxu0 0.0
    %2591 = vmatprep.subr.mxu0 0.0
    %2592 = vmatpush1.xpose.msra.mxu0 0.0
    %2593 = vmatprep.subr.mxu0 0.0
    %2594 = vmatpush1.xpose.msra.mxu0 0.0
    %2595 = vmatprep.subr.mxu0 0.0
    %2596 = vmatpush1.xpose.msra.mxu0 0.0
    %2597 = vmatprep.subr.mxu0 0.0
    %2598 = vmatpush1.xpose.msra.mxu0 0.0
    %2599 = vmatprep.subr.mxu0 0.0
    %2600 = vmatpush1.xpose.msra.mxu0 0.0
    %2601 = vmatprep.mubr.f32.mxu0 0.0
    %2602 = vmatmul.mubr.f32.gmra.mrb[0].mxu0 %v2533
    %v2603 = vpop.f32.mrb[0].mxu0
    %v2604 = vadd.f32 0.0, %v2603
    %v2605 = vpop.f32.mrb[0].mxu0
    %2606 = vdwg.mxu0
    %2607 = vrot.lane.b32.xlu0 %v148, 100
    %v2608 = vpop.permute.xlu0 %2607
    %2609 = vrot.lane.b32.xlu0 %v144, 68
    %v2610 = vpop.permute.xlu0 %2609
    %v2611 = vsel %vm152, %v2608, 0
    %v2613 = vsel %vm152, %v2610, 0
    %2615 = vmatprep.subr.mxu0 0.0
    %2616 = vmatpush1.xpose.msra.mxu0 %v2613
    %2617 = vmatprep.subr.mxu0 0.0
    %2618 = vmatpush1.xpose.msra.mxu0 0.0
    %2619 = vmatprep.subr.mxu0 0.0
    %2620 = vmatpush1.xpose.msra.mxu0 0.0
    %2621 = vmatprep.subr.mxu0 0.0
    %2622 = vmatpush1.xpose.msra.mxu0 0.0
    %2623 = vmatprep.subr.mxu0 0.0
    %2624 = vmatpush1.xpose.msra.mxu0 0.0
    %2625 = vmatprep.subr.mxu0 0.0
    %2626 = vmatpush1.xpose.msra.mxu0 0.0
    %2627 = vmatprep.subr.mxu0 0.0
    %2628 = vmatpush1.xpose.msra.mxu0 0.0
    %2629 = vmatprep.subr.mxu0 0.0
    %2630 = vmatpush1.xpose.msra.mxu0 0.0
    %2631 = vmatprep.subr.mxu0 0.0
    %2632 = vmatpush1.xpose.msra.mxu0 0.0
    %2633 = vmatprep.subr.mxu0 0.0
    %2634 = vmatpush1.xpose.msra.mxu0 0.0
    %2635 = vmatprep.subr.mxu0 0.0
    %2636 = vmatpush1.xpose.msra.mxu0 0.0
    %2637 = vmatprep.subr.mxu0 0.0
    %2638 = vmatpush1.xpose.msra.mxu0 0.0
    %2639 = vmatprep.subr.mxu0 0.0
    %2640 = vmatpush1.xpose.msra.mxu0 0.0
    %2641 = vmatprep.subr.mxu0 0.0
    %2642 = vmatpush1.xpose.msra.mxu0 0.0
    %2643 = vmatprep.subr.mxu0 0.0
    %2644 = vmatpush1.xpose.msra.mxu0 0.0
    %2645 = vmatprep.subr.mxu0 0.0
    %2646 = vmatpush1.xpose.msra.mxu0 0.0
    %2647 = vmatprep.subr.mxu0 0.0
    %2648 = vmatpush1.xpose.msra.mxu0 0.0
    %2649 = vmatprep.subr.mxu0 0.0
    %2650 = vmatpush1.xpose.msra.mxu0 0.0
    %2651 = vmatprep.subr.mxu0 0.0
    %2652 = vmatpush1.xpose.msra.mxu0 0.0
    %2653 = vmatprep.subr.mxu0 0.0
    %2654 = vmatpush1.xpose.msra.mxu0 0.0
    %2655 = vmatprep.subr.mxu0 0.0
    %2656 = vmatpush1.xpose.msra.mxu0 0.0
    %2657 = vmatprep.subr.mxu0 0.0
    %2658 = vmatpush1.xpose.msra.mxu0 0.0
    %2659 = vmatprep.subr.mxu0 0.0
    %2660 = vmatpush1.xpose.msra.mxu0 0.0
    %2661 = vmatprep.subr.mxu0 0.0
    %2662 = vmatpush1.xpose.msra.mxu0 0.0
    %2663 = vmatprep.subr.mxu0 0.0
    %2664 = vmatpush1.xpose.msra.mxu0 0.0
    %2665 = vmatprep.subr.mxu0 0.0
    %2666 = vmatpush1.xpose.msra.mxu0 0.0
    %2667 = vmatprep.subr.mxu0 0.0
    %2668 = vmatpush1.xpose.msra.mxu0 0.0
    %2669 = vmatprep.subr.mxu0 0.0
    %2670 = vmatpush1.xpose.msra.mxu0 0.0
    %2671 = vmatprep.subr.mxu0 0.0
    %2672 = vmatpush1.xpose.msra.mxu0 0.0
    %2673 = vmatprep.subr.mxu0 0.0
    %2674 = vmatpush1.xpose.msra.mxu0 0.0
    %2675 = vmatprep.subr.mxu0 0.0
    %2676 = vmatpush1.xpose.msra.mxu0 0.0
    %2677 = vmatprep.subr.mxu0 0.0
    %2678 = vmatpush1.xpose.msra.mxu0 0.0
    %2679 = vmatprep.mubr.f32.mxu0 0.0
    %2680 = vmatmul.mubr.f32.gmra.mrb[0].mxu0 %v2611
    %v2681 = vpop.f32.mrb[0].mxu0
    %v2682 = vadd.f32 0.0, %v2681
    %v2683 = vpop.f32.mrb[0].mxu0
    %2684 = vdwg.mxu0
    %v2685 = vsel %vm306, %v2604, -inf
    %2686 = vmax.xlane.f32.xlu0 %v2685
    %v2687 = vpop.xlane.xlu0 %2686
    %v2688 = vsel %vm306, %v2682, -inf
    %2689 = vmax.xlane.f32.xlu0 %v2688
    %v2690 = vpop.xlane.xlu0 %2689
    %v2691 = vsub.f32 %v2604, %v2687
    %v2692 = vsub.f32 %v2682, %v2690
    %v2693 = vmul.f32 %v2691, 1.442695
    %v2694 = vpow.pop %v2693
    %v2695 = vmul.f32 %v2692, 1.442695
    %v2696 = vpow.pop %v2695
    %v2697 = vsel %vm306, %v2694, 0.0
    %2698 = vadd.xlane.f32.xlu0 %v2697
    %v2699 = vpop.xlane.xlu0 %2698
    %v2700 = vsel %vm306, %v2696, 0.0
    %2701 = vadd.xlane.f32.xlu0 %v2700
    %v2702 = vpop.xlane.xlu0 %2701
    %v2703 = vrcp.pop %v2699
    %v2704 = vrcp.pop %v2702
    %v2705 = vmul.f32 %v2694, %v2703
    %v2706 = vmul.f32 %v2696, %v2704
    %2707 = vrot.lane.b32.xlu0 %v139, 36
    %v2708 = vpop.permute.xlu0 %2707
    %v2711 = vsel %vm306, %v2705, 0
    %2713 = vmatprep.subr.mxu0 0.0
    %2714 = vmatpush1.msra.mxu0 %v2708
    %2715 = vmatprep.subr.mxu0 0.0
    %2716 = vmatpush1.msra.mxu0 0.0
    %2717 = vmatprep.subr.mxu0 0.0
    %2718 = vmatpush1.msra.mxu0 0.0
    %2719 = vmatprep.subr.mxu0 0.0
    %2720 = vmatpush1.msra.mxu0 0.0
    %2721 = vmatprep.subr.mxu0 0.0
    %2722 = vmatpush1.msra.mxu0 0.0
    %2723 = vmatprep.subr.mxu0 0.0
    %2724 = vmatpush1.msra.mxu0 0.0
    %2725 = vmatprep.subr.mxu0 0.0
    %2726 = vmatpush1.msra.mxu0 0.0
    %2727 = vmatprep.subr.mxu0 0.0
    %2728 = vmatpush1.msra.mxu0 0.0
    %2729 = vmatprep.subr.mxu0 0.0
    %2730 = vmatpush1.msra.mxu0 0.0
    %2731 = vmatprep.subr.mxu0 0.0
    %2732 = vmatpush1.msra.mxu0 0.0
    %2733 = vmatprep.subr.mxu0 0.0
    %2734 = vmatpush1.msra.mxu0 0.0
    %2735 = vmatprep.subr.mxu0 0.0
    %2736 = vmatpush1.msra.mxu0 0.0
    %2737 = vmatprep.subr.mxu0 0.0
    %2738 = vmatpush1.msra.mxu0 0.0
    %2739 = vmatprep.subr.mxu0 0.0
    %2740 = vmatpush1.msra.mxu0 0.0
    %2741 = vmatprep.subr.mxu0 0.0
    %2742 = vmatpush1.msra.mxu0 0.0
    %2743 = vmatprep.subr.mxu0 0.0
    %2744 = vmatpush1.msra.mxu0 0.0
    %2745 = vmatprep.subr.mxu0 0.0
    %2746 = vmatpush1.msra.mxu0 0.0
    %2747 = vmatprep.subr.mxu0 0.0
    %2748 = vmatpush1.msra.mxu0 0.0
    %2749 = vmatprep.subr.mxu0 0.0
    %2750 = vmatpush1.msra.mxu0 0.0
    %2751 = vmatprep.subr.mxu0 0.0
    %2752 = vmatpush1.msra.mxu0 0.0
    %2753 = vmatprep.subr.mxu0 0.0
    %2754 = vmatpush1.msra.mxu0 0.0
    %2755 = vmatprep.subr.mxu0 0.0
    %2756 = vmatpush1.msra.mxu0 0.0
    %2757 = vmatprep.subr.mxu0 0.0
    %2758 = vmatpush1.msra.mxu0 0.0
    %2759 = vmatprep.subr.mxu0 0.0
    %2760 = vmatpush1.msra.mxu0 0.0
    %2761 = vmatprep.subr.mxu0 0.0
    %2762 = vmatpush1.msra.mxu0 0.0
    %2763 = vmatprep.subr.mxu0 0.0
    %2764 = vmatpush1.msra.mxu0 0.0
    %2765 = vmatprep.subr.mxu0 0.0
    %2766 = vmatpush1.msra.mxu0 0.0
    %2767 = vmatprep.subr.mxu0 0.0
    %2768 = vmatpush1.msra.mxu0 0.0
    %2769 = vmatprep.subr.mxu0 0.0
    %2770 = vmatpush1.msra.mxu0 0.0
    %2771 = vmatprep.subr.mxu0 0.0
    %2772 = vmatpush1.msra.mxu0 0.0
    %2773 = vmatprep.subr.mxu0 0.0
    %2774 = vmatpush1.msra.mxu0 0.0
    %2775 = vmatprep.subr.mxu0 0.0
    %2776 = vmatpush1.msra.mxu0 0.0
    %2777 = vmatprep.mubr.f32.mxu0 0.0
    %2778 = vmatmul.mubr.f32.gmra.mrb[0].mxu0 %v2711
    %v2779 = vpop.f32.mrb[0].mxu0
    %v2780 = vadd.f32 0.0, %v2779
    %v2781 = vpop.f32.mrb[0].mxu0
    %2782 = vdwg.mxu0
    %2783 = vrot.lane.b32.xlu0 %v144, 36
    %v2784 = vpop.permute.xlu0 %2783
    %v2787 = vsel %vm306, %v2706, 0
    %2789 = vmatprep.subr.mxu0 0.0
    %2790 = vmatpush1.msra.mxu0 %v2784
    %2791 = vmatprep.subr.mxu0 0.0
    %2792 = vmatpush1.msra.mxu0 0.0
    %2793 = vmatprep.subr.mxu0 0.0
    %2794 = vmatpush1.msra.mxu0 0.0
    %2795 = vmatprep.subr.mxu0 0.0
    %2796 = vmatpush1.msra.mxu0 0.0
    %2797 = vmatprep.subr.mxu0 0.0
    %2798 = vmatpush1.msra.mxu0 0.0
    %2799 = vmatprep.subr.mxu0 0.0
    %2800 = vmatpush1.msra.mxu0 0.0
    %2801 = vmatprep.subr.mxu0 0.0
    %2802 = vmatpush1.msra.mxu0 0.0
    %2803 = vmatprep.subr.mxu0 0.0
    %2804 = vmatpush1.msra.mxu0 0.0
    %2805 = vmatprep.subr.mxu0 0.0
    %2806 = vmatpush1.msra.mxu0 0.0
    %2807 = vmatprep.subr.mxu0 0.0
    %2808 = vmatpush1.msra.mxu0 0.0
    %2809 = vmatprep.subr.mxu0 0.0
    %2810 = vmatpush1.msra.mxu0 0.0
    %2811 = vmatprep.subr.mxu0 0.0
    %2812 = vmatpush1.msra.mxu0 0.0
    %2813 = vmatprep.subr.mxu0 0.0
    %2814 = vmatpush1.msra.mxu0 0.0
    %2815 = vmatprep.subr.mxu0 0.0
    %2816 = vmatpush1.msra.mxu0 0.0
    %2817 = vmatprep.subr.mxu0 0.0
    %2818 = vmatpush1.msra.mxu0 0.0
    %2819 = vmatprep.subr.mxu0 0.0
    %2820 = vmatpush1.msra.mxu0 0.0
    %2821 = vmatprep.subr.mxu0 0.0
    %2822 = vmatpush1.msra.mxu0 0.0
    %2823 = vmatprep.subr.mxu0 0.0
    %2824 = vmatpush1.msra.mxu0 0.0
    %2825 = vmatprep.subr.mxu0 0.0
    %2826 = vmatpush1.msra.mxu0 0.0
    %2827 = vmatprep.subr.mxu0 0.0
    %2828 = vmatpush1.msra.mxu0 0.0
    %2829 = vmatprep.subr.mxu0 0.0
    %2830 = vmatpush1.msra.mxu0 0.0
    %2831 = vmatprep.subr.mxu0 0.0
    %2832 = vmatpush1.msra.mxu0 0.0
    %2833 = vmatprep.subr.mxu0 0.0
    %2834 = vmatpush1.msra.mxu0 0.0
    %2835 = vmatprep.subr.mxu0 0.0
    %2836 = vmatpush1.msra.mxu0 0.0
    %2837 = vmatprep.subr.mxu0 0.0
    %2838 = vmatpush1.msra.mxu0 0.0
    %2839 = vmatprep.subr.mxu0 0.0
    %2840 = vmatpush1.msra.mxu0 0.0
    %2841 = vmatprep.subr.mxu0 0.0
    %2842 = vmatpush1.msra.mxu0 0.0
    %2843 = vmatprep.subr.mxu0 0.0
    %2844 = vmatpush1.msra.mxu0 0.0
    %2845 = vmatprep.subr.mxu0 0.0
    %2846 = vmatpush1.msra.mxu0 0.0
    %2847 = vmatprep.subr.mxu0 0.0
    %2848 = vmatpush1.msra.mxu0 0.0
    %2849 = vmatprep.subr.mxu0 0.0
    %2850 = vmatpush1.msra.mxu0 0.0
    %2851 = vmatprep.subr.mxu0 0.0
    %2852 = vmatpush1.msra.mxu0 0.0
    %2853 = vmatprep.mubr.f32.mxu0 0.0
    %2854 = vmatmul.mubr.f32.gmra.mrb[0].mxu0 %v2787
    %v2855 = vpop.f32.mrb[0].mxu0
    %v2856 = vadd.f32 0.0, %v2855
    %v2857 = vpop.f32.mrb[0].mxu0
    %2858 = vdwg.mxu0
    %2861 = vrot.lane.b32.xlu0 %v2780, 28
    %v2862 = vpop.permute.xlu0 %2861
    %2863 = vrot.lane.b32.xlu0 %v2856, 28
    %v2864 = vpop.permute.xlu0 %2863
    %vm2867 = vcmask 261344
    %2868 = vst.msk [vmem:[#allocation2] sm:$0xff] %vm2867, %v2862
    %2869 = vst.msk [vmem:[#allocation2 + $0x8] sm:$0xff] %vm2867, %v2864
    %v2870 = vld [vmem:[#allocation2] sm:$0xff]
    %v2871 = vld [vmem:[#allocation2 + $0x8] sm:$0xff]
    %v2872 = vld [vmem:[#allocation8] sm:$0xff]
    %v2873 = vld [vmem:[#allocation8 + $0x8] sm:$0xff]
    %v2874 = vld [vmem:[#allocation8 + $0x10] sm:$0xff]
    %v2875 = vld [vmem:[#allocation8 + $0x18] sm:$0xff]
    %v2876 = vld [vmem:[%s3] sm:$0x1]
    %v2878 = vlaneseq
    %v2879 = vshrl.u32 %v2878, 7
    %v2880 = vsub.s32 0, %v2879
    %v2881 = vrot.slane %v2876, %v2880
    %v2884 = vsel %vm65, %v2870, 0
    %v2887 = vsel %vm65, %v2871, 0
    %2889 = vmatprep.subr.mxu0 0.0
    %2890 = vmatpush1.msra.mxu0 %v2872
    %2891 = vmatprep.subr.mxu0 0.0
    %2892 = vmatpush1.msra.mxu0 %v2873
    %2893 = vmatprep.subr.mxu0 0.0
    %2894 = vmatpush1.msra.mxu0 %v2874
    %2895 = vmatprep.subr.mxu0 0.0
    %2896 = vmatpush1.msra.mxu0 %v2875
    %2897 = vmatprep.subr.mxu0 0.0
    %2898 = vmatpush1.msra.mxu0 0.0
    %2899 = vmatprep.subr.mxu0 0.0
    %2900 = vmatpush1.msra.mxu0 0.0
    %2901 = vmatprep.subr.mxu0 0.0
    %2902 = vmatpush1.msra.mxu0 0.0
    %2903 = vmatprep.subr.mxu0 0.0
    %2904 = vmatpush1.msra.mxu0 0.0
    %2905 = vmatprep.subr.mxu0 0.0
    %2906 = vmatpush1.msra.mxu0 0.0
    %2907 = vmatprep.subr.mxu0 0.0
    %2908 = vmatpush1.msra.mxu0 0.0
    %2909 = vmatprep.subr.mxu0 0.0
    %2910 = vmatpush1.msra.mxu0 0.0
    %2911 = vmatprep.subr.mxu0 0.0
    %2912 = vmatpush1.msra.mxu0 0.0
    %2913 = vmatprep.subr.mxu0 0.0
    %2914 = vmatpush1.msra.mxu0 0.0
    %2915 = vmatprep.subr.mxu0 0.0
    %2916 = vmatpush1.msra.mxu0 0.0
    %2917 = vmatprep.subr.mxu0 0.0
    %2918 = vmatpush1.msra.mxu0 0.0
    %2919 = vmatprep.subr.mxu0 0.0
    %2920 = vmatpush1.msra.mxu0 0.0
    %2921 = vmatprep.subr.mxu0 0.0
    %2922 = vmatpush1.msra.mxu0 0.0
    %2923 = vmatprep.subr.mxu0 0.0
    %2924 = vmatpush1.msra.mxu0 0.0
    %2925 = vmatprep.subr.mxu0 0.0
    %2926 = vmatpush1.msra.mxu0 0.0
    %2927 = vmatprep.subr.mxu0 0.0
    %2928 = vmatpush1.msra.mxu0 0.0
    %2929 = vmatprep.subr.mxu0 0.0
    %2930 = vmatpush1.msra.mxu0 0.0
    %2931 = vmatprep.subr.mxu0 0.0
    %2932 = vmatpush1.msra.mxu0 0.0
    %2933 = vmatprep.subr.mxu0 0.0
    %2934 = vmatpush1.msra.mxu0 0.0
    %2935 = vmatprep.subr.mxu0 0.0
    %2936 = vmatpush1.msra.mxu0 0.0
    %2937 = vmatprep.subr.mxu0 0.0
    %2938 = vmatpush1.msra.mxu0 0.0
    %2939 = vmatprep.subr.mxu0 0.0
    %2940 = vmatpush1.msra.mxu0 0.0
    %2941 = vmatprep.subr.mxu0 0.0
    %2942 = vmatpush1.msra.mxu0 0.0
    %2943 = vmatprep.subr.mxu0 0.0
    %2944 = vmatpush1.msra.mxu0 0.0
    %2945 = vmatprep.subr.mxu0 0.0
    %2946 = vmatpush1.msra.mxu0 0.0
    %2947 = vmatprep.subr.mxu0 0.0
    %2948 = vmatpush1.msra.mxu0 0.0
    %2949 = vmatprep.subr.mxu0 0.0
    %2950 = vmatpush1.msra.mxu0 0.0
    %2951 = vmatprep.subr.mxu0 0.0
    %2952 = vmatpush1.msra.mxu0 0.0
    %2953 = vmatprep.mubr.f32.mxu0 0.0
    %2954 = vmatmul.mubr.f32.gmra.mrb[0].mxu0 %v2884
    %v2955 = vpop.f32.mrb[0].mxu0
    %v2956 = vadd.f32 %v2881, %v2955
    %v2957 = vpop.f32.mrb[0].mxu0
    %2958 = vmatprep.mubr.f32.mxu0 0.0
    %2959 = vmatmul.mubr.f32.gmra.mrb[0].mxu0 %v2887
    %v2960 = vpop.f32.mrb[0].mxu0
    %v2961 = vadd.f32 %v2881, %v2960
    %v2962 = vpop.f32.mrb[0].mxu0
    %2963 = vdwg.mxu0
    %2964 = vst.msk [vmem:[#allocation9] sm:$0xff] %vm65, %v2956
    %2965 = vst.msk [vmem:[#allocation9 + $0x8] sm:$0xff] %vm65, %v2961
    // Predicated region
    $region30: #{tpu_custom_call.1} parent=1 // pred_check
      _
    $region31: #{tpu_custom_call.1} parent=1 // pred_check_branch
      %2967 = sbr.rel (0) target = $region33
    $region32: #{tpu_custom_call.1} parent=1 // pred_region
      %s2969 = ssub.s32 256, 256
      %2970 = vsyncadd [#allocation5], %s2969
      %s2971 = sshll.u32 [#allocation9], 4
      %s2972 = int_to_ptr.vmem [resolvable:$true] %s2971
      %2977 = dma.vmem_to_hbm [thread:$0]  %s2972, 256, %s4, [#allocation5], 128, 128, 8
    $region33: #{tpu_custom_call.1} parent=1 // pred_fallthru
      _
    // Predicated region
    $region34: #{tpu_custom_call.1} parent=1 // pred_check
      _
    $region35: #{tpu_custom_call.1} parent=1 // pred_check_branch
      %2979 = sbr.rel (0) target = $region37
    $region36: #{tpu_custom_call.1} parent=1 // pred_region
      %2980 = dma.done [#allocation5], 256
    $region37: #{tpu_custom_call.1} parent=1 // pred_fallthru
      _
    %2981 = vsyncpa [#allocation4], 1
    %2982 = vsyncpa [#allocation7], 1
    %2983 = vsyncpa [#allocation5], 1

</llo_original>
